<compile_context>
chip_gen: v6e
topology: v6e:2x2x1
jax: 0.10.0
libtpu: 0.0.40
codegen_flags: <defaults>
</compile_context>

<pallas_src>
import functools
import math

import jax
import jax.numpy as jnp
from jax import lax
from jax.experimental import pallas as pl
from jax.experimental.pallas import tpu as pltpu

LANE = 128
_EPS = 1e-5


# --------------------------------------------------------------------------- #
# Helpers
# --------------------------------------------------------------------------- #
def _round_up(x, m):
    return ((x + m - 1) // m) * m


def _pad_last(a, size):
    pad = size - a.shape[-1]
    if pad == 0:
        return a
    return jnp.pad(a, [(0, 0)] * (a.ndim - 1) + [(0, pad)])


def _pad2(a, rows, cols):
    return jnp.pad(a, ((0, rows - a.shape[0]), (0, cols - a.shape[1])))


def _mosaic_params(*blocks, scratch_bytes=0, temp_bytes=0):
    """CompilerParams with a VMEM limit sized from the actual per-step buffers."""
    tile = sum(math.prod(shape) * jnp.dtype(dtype).itemsize
               for shape, dtype in blocks)
    need = 2 * tile + scratch_bytes + temp_bytes      # 2x: double-buffering
    limit = int(min(max(2 * need + (4 << 20), 32 << 20), 64 << 20))
    return pltpu.CompilerParams(
        dimension_semantics=("parallel",),
        vmem_limit_bytes=limit,
    )


def _scale_bias(partial_stats, gamma, beta, count, eps=_EPS):
    """Reduce per-tile (sum, sumsq) partials -> per-channel BN scale / bias."""
    s = jnp.sum(partial_stats, axis=0)                     # (2, C)
    mean = s[0] / count
    var = jnp.maximum(s[1] / count - mean * mean, 0.0)     # biased (training BN)
    scale = gamma * lax.rsqrt(var + eps)
    bias = beta - mean * scale
    return scale[None, :], bias[None, :]                   # (1, C) each


# --------------------------------------------------------------------------- #
# Kernels
# --------------------------------------------------------------------------- #
def _conv1x1_stats_kernel(x_ref, w_ref, y_ref, stats_ref):
    """y = x @ w (one batch element) + per-channel sum / sum-of-squares of y."""
    x = x_ref[0]                                            # (HW, Cin) f32
    y = jnp.dot(x.astype(w_ref.dtype), w_ref[...],
                preferred_element_type=jnp.float32)         # (HW, Cout) f32
    y_ref[0] = y
    s = jnp.sum(y, axis=0, keepdims=True)
    ss = jnp.sum(y * y, axis=0, keepdims=True)
    stats_ref[0] = jnp.concatenate([s, ss], axis=0)


def _bn_relu_conv1x1_stats_kernel(h_ref, scale_ref, bias_ref, w_ref,
                                  y_ref, stats_ref):
    """y = relu(h*scale+bias) @ w  + per-channel sum / sum-of-squares of y."""
    a = jnp.maximum(h_ref[0] * scale_ref[...] + bias_ref[...], 0.0)  # f32
    y = jnp.dot(a.astype(w_ref.dtype), w_ref[...],
                preferred_element_type=jnp.float32)
    y_ref[0] = y
    s = jnp.sum(y, axis=0, keepdims=True)
    ss = jnp.sum(y * y, axis=0, keepdims=True)
    stats_ref[0] = jnp.concatenate([s, ss], axis=0)


def _bn_relu_conv3x3_stats_kernel(h_ref, scale_ref, bias_ref, w_ref,
                                  y_ref, stats_ref, xpad_ref):
    """3x3 / stride 1 / pad 1 conv of relu(h*scale+bias) as a single im2col
    matmul with K = 9*C, plus per-channel sum / sum-of-squares of the output."""
    _, H, W, C = h_ref.shape
    cd = xpad_ref.dtype
    cout = w_ref.shape[1]

    # bn1 + relu fused, cast to the MXU compute dtype.
    a = jnp.maximum(h_ref[0] * scale_ref[...] + bias_ref[...], 0.0).astype(cd)

    # Zero only the 1-pixel halo; the interior is fully overwritten every step
    # (safe under "parallel" megacore sharding -- no cross-iteration state).
    xpad_ref[0:1, :, :] = jnp.zeros((1, W + 2, C), cd)
    xpad_ref[H + 1:H + 2, :, :] = jnp.zeros((1, W + 2, C), cd)
    xpad_ref[:, 0:1, :] = jnp.zeros((H + 2, 1, C), cd)
    xpad_ref[:, W + 1:W + 2, :] = jnp.zeros((H + 2, 1, C), cd)
    xpad_ref[1:H + 1, 1:W + 1, :] = a

    # im2col: build one (HW, 9C) patch slab, issue ONE MXU matmul.
    taps = [xpad_ref[dh:dh + H, dw:dw + W, :]
            for dh in range(3) for dw in range(3)]
    patches = jnp.concatenate(taps, axis=-1).reshape(H * W, 9 * C)
    y = jnp.dot(patches, w_ref[...], preferred_element_type=jnp.float32)

    y_ref[0] = y.reshape(H, W, cout)
    s = jnp.sum(y, axis=0, keepdims=True)
    ss = jnp.sum(y * y, axis=0, keepdims=True)
    stats_ref[0] = jnp.concatenate([s, ss], axis=0)


def _bn_residual_relu_kernel(h_ref, x_ref, scale_ref, bias_ref, out_ref):
    """out = relu(h*scale + bias + residual), all in f32."""
    out_ref[0] = jnp.maximum(
        h_ref[0] * scale_ref[...] + bias_ref[...] + x_ref[0], 0.0)


# --------------------------------------------------------------------------- #
# Forward wrapper
# --------------------------------------------------------------------------- #
@functools.partial(jax.jit, static_argnames=("compute_dtype",))
def bottleneck_forward(x_nchw, params, compute_dtype=jnp.bfloat16):
    """x_nchw: (N, inplanes, H, W) f32.  Returns (N, planes*4, H, W) f32."""
    (w1, g1, b1, w2, g2, b2, w3, g3, b3) = params
    N, Cin, H, W = x_nchw.shape
    P = w1.shape[0]                    # planes
    Cout = w3.shape[0]                 # planes * 4
    assert Cout == Cin, "downsample is None -> inplanes must equal planes*4"
    HW = H * W
    cd = jnp.dtype(compute_dtype)

    # Lane-dense channel padding (multiple of 128).
    Ci = _round_up(Cin, LANE)
    Cp = _round_up(P, LANE)
    Co = _round_up(Cout, LANE)

    # ---- layout: NCHW -> NHWC slab, zero-padded channels --------------------
    x_nhwc = jnp.transpose(x_nchw, (0, 2, 3, 1)).astype(jnp.float32)
    x_slab = _pad_last(x_nhwc, Ci).reshape(N, HW, Ci)

    # ---- weights: OIHW -> channels-last matmul layout, padded, compute dtype
    w1_t = _pad2(jnp.transpose(w1[:, :, 0, 0], (1, 0)), Ci, Cp).astype(cd)
    w2_t = jnp.transpose(w2, (2, 3, 1, 0))                    # (3,3,I,O)
    w2_t = jnp.pad(w2_t, ((0, 0), (0, 0), (0, Cp - P), (0, Cp - P)))
    w2_t = w2_t.reshape(9 * Cp, Cp).astype(cd)
    w3_t = _pad2(jnp.transpose(w3[:, :, 0, 0], (1, 0)), Cp, Co).astype(cd)

    g1p = jnp.pad(g1, (0, Cp - P)); b1p = jnp.pad(b1, (0, Cp - P))
    g2p = jnp.pad(g2, (0, Cp - P)); b2p = jnp.pad(b2, (0, Cp - P))
    g3p = jnp.pad(g3, (0, Co - Cout)); b3p = jnp.pad(b3, (0, Co - Cout))

    # ---- BlockSpec helpers ---------------------------------------------------
    def slab_spec(C):      # (N, HW, C), one batch element per grid step
        return pl.BlockSpec((1, HW, C), lambda n: (n, 0, 0))

    def img_spec(C):       # (N, H, W, C), one batch element per grid step
        return pl.BlockSpec((1, H, W, C), lambda n: (n, 0, 0, 0))

    def stats_spec(C):     # per-tile (sum, sumsq) partials
        return pl.BlockSpec((1, 2, C), lambda n: (n, 0, 0))

    def full_spec(shape):  # weights / per-channel params: resident in VMEM
        nd = len(shape)
        return pl.BlockSpec(shape, lambda n, _nd=nd: (0,) * _nd)

    f32 = jnp.float32
    count = N * HW

    # ---- K1: conv1 (1x1) + stats ---------------------------------------------
    h1, st1 = pl.pallas_call(
        _conv1x1_stats_kernel,
        grid=(N,),
        in_specs=[slab_spec(Ci), full_spec((Ci, Cp))],
        out_specs=(slab_spec(Cp), stats_spec(Cp)),
        out_shape=(jax.ShapeDtypeStruct((N, HW, Cp), f32),
                   jax.ShapeDtypeStruct((N, 2, Cp), f32)),
        compiler_params=_mosaic_params(
            ((1, HW, Ci), f32), ((1, HW, Cp), f32),
            ((Ci, Cp), cd), ((1, 2, Cp), f32)),
    )(x_slab, w1_t)
    s1, bb1 = _scale_bias(st1, g1p, b1p, count)

    # ---- K2: bn1+relu fused, conv2 (3x3, im2col) + stats -----------------------
    h1_img = h1.reshape(N, H, W, Cp)     # free row-major reshape
    h2, st2 = pl.pallas_call(
        _bn_relu_conv3x3_stats_kernel,
        grid=(N,),
        in_specs=[img_spec(Cp), full_spec((1, Cp)), full_spec((1, Cp)),
                  full_spec((9 * Cp, Cp))],
        out_specs=(img_spec(Cp), stats_spec(Cp)),
        out_shape=(jax.ShapeDtypeStruct((N, H, W, Cp), f32),
                   jax.ShapeDtypeStruct((N, 2, Cp), f32)),
        scratch_shapes=[pltpu.VMEM((H + 2, W + 2, Cp), cd)],
        compiler_params=_mosaic_params(
            ((1, H, W, Cp), f32), ((1, H, W, Cp), f32),
            ((9 * Cp, Cp), cd), ((1, 2, Cp), f32),
            scratch_bytes=(H + 2) * (W + 2) * Cp * cd.itemsize,
            temp_bytes=HW * 9 * Cp * cd.itemsize),
    )(h1_img, s1, bb1, w2_t)
    s2, bb2 = _scale_bias(st2, g2p, b2p, count)

    # ---- K3: bn2+relu fused, conv3 (1x1) + stats -------------------------------
    h2_slab = h2.reshape(N, HW, Cp)
    h3, st3 = pl.pallas_call(
        _bn_relu_conv1x1_stats_kernel,
        grid=(N,),
        in_specs=[slab_spec(Cp), full_spec((1, Cp)), full_spec((1, Cp)),
                  full_spec((Cp, Co))],
        out_specs=(slab_spec(Co), stats_spec(Co)),
        out_shape=(jax.ShapeDtypeStruct((N, HW, Co), f32),
                   jax.ShapeDtypeStruct((N, 2, Co), f32)),
        compiler_params=_mosaic_params(
            ((1, HW, Cp), f32), ((1, HW, Co), f32),
            ((Cp, Co), cd), ((1, 2, Co), f32)),
    )(h2_slab, s2, bb2, w3_t)
    s3, bb3 = _scale_bias(st3, g3p, b3p, count)

    # ---- K4: bn3 fused + residual add + relu -----------------------------------
    out_slab = pl.pallas_call(
        _bn_residual_relu_kernel,
        grid=(N,),
        in_specs=[slab_spec(Co), slab_spec(Ci),
                  full_spec((1, Co)), full_spec((1, Co))],
        out_specs=slab_spec(Co),
        out_shape=jax.ShapeDtypeStruct((N, HW, Co), f32),
        compiler_params=_mosaic_params(
            ((1, HW, Co), f32), ((1, HW, Ci), f32), ((1, HW, Co), f32)),
    )(h3, x_slab, s3, bb3)

    out_nhwc = out_slab[:, :, :Cout].reshape(N, H, W, Cout)
    return jnp.transpose(out_nhwc, (0, 3, 1, 2))


# --------------------------------------------------------------------------- #
# Pure-JAX reference (NCHW, f32, training-mode BN -- matches PyTorch Bottleneck)
# --------------------------------------------------------------------------- #
def _conv(x, w, stride=1, pad=0):
    return lax.conv_general_dilated(
        x, w, (stride, stride), [(pad, pad), (pad, pad)],
        dimension_numbers=('NCHW', 'OIHW', 'NCHW'))


def _bn_ref(x, g, b, eps=_EPS):
    mean = jnp.mean(x, axis=(0, 2, 3), keepdims=True)
    var = jnp.mean((x - mean) ** 2, axis=(0, 2, 3), keepdims=True)
    return (x - mean) * lax.rsqrt(var + eps) * g.reshape(1, -1, 1, 1) \
        + b.reshape(1, -1, 1, 1)


def bottleneck_reference(x, params):
    (w1, g1, b1, w2, g2, b2, w3, g3, b3) = params
    out = jnp.maximum(_bn_ref(_conv(x, w1), g1, b1), 0.0)
    out = jnp.maximum(_bn_ref(_conv(out, w2, stride=1, pad=1), g2, b2), 0.0)
    out = _bn_ref(_conv(out, w3), g3, b3)
    return jnp.maximum(out + x, 0.0)


# --------------------------------------------------------------------------- #
# Test
# --------------------------------------------------------------------------- #
if __name__ == "__main__":
    # inplanes = planes * expansion so the identity shortcut is valid.
    N, planes, H, W = 2, 4, 16, 16
    inplanes = planes * 4  # 16

    key = jax.random.PRNGKey(0)
    kx, k1, k2, k3, kg1, kg2, kg3 = jax.random.split(key, 7)

    x = jax.random.normal(kx, (N, inplanes, H, W), jnp.float32)

    # Conv weights in PyTorch OIHW layout (bias=False).
    w1 = 0.1 * jax.random.normal(k1, (planes, inplanes, 1, 1), jnp.float32)
    w2 = 0.1 * jax.random.normal(k2, (planes, planes, 3, 3), jnp.float32)
    w3 = 0.1 * jax.random.normal(k3, (planes * 4, planes, 1, 1), jnp.float32)

    # BatchNorm affine params (deterministic, non-trivial).
    g1 = 1.0 + 0.1 * jax.random.normal(kg1, (planes,), jnp.float32)
    b1 = 0.05 * jnp.arange(planes, dtype=jnp.float32)
    g2 = 1.0 + 0.1 * jax.random.normal(kg2, (planes,), jnp.float32)
    b2 = -0.05 * jnp.arange(planes, dtype=jnp.float32)
    g3 = 1.0 + 0.1 * jax.random.normal(kg3, (planes * 4,), jnp.float32)
    b3 = 0.02 * jnp.arange(planes * 4, dtype=jnp.float32)

    params = (w1, g1, b1, w2, g2, b2, w3, g3, b3)
    ref = bottleneck_reference(x, params)

    # f32 compute path: exact semantics check against the reference.
    out_f32 = jax.block_until_ready(
        bottleneck_forward(x, params, compute_dtype=jnp.float32))
    assert out_f32.shape == (N, planes * 4, H, W)
    assert jnp.allclose(out_f32, ref, rtol=1e-3, atol=1e-3), \
        f"f32 max abs err = {jnp.max(jnp.abs(out_f32 - ref))}"

    # bf16 MXU fast path (f32 accumulation / stats / residual): looser tolerance.
    out_bf16 = jax.block_until_ready(
        bottleneck_forward(x, params, compute_dtype=jnp.bfloat16))
    assert out_bf16.shape == (N, planes * 4, H, W)
    assert jnp.allclose(out_bf16, ref, rtol=5e-2, atol=5e-2), \
        f"bf16 max abs err = {jnp.max(jnp.abs(out_bf16 - ref))}"

    print("KERNEL_OK")
</pallas_src>

<mosaic_0001>
module attributes {stable_mosaic.version = 11 : i64} {
  func.func @_conv1x1_stats_kernel(%arg0: i32, %arg1: memref<1x256x128xf32, #tpu.memory_space<vmem>>, %arg2: memref<128x128xf32, #tpu.memory_space<vmem>>, %arg3: memref<1x256x128xf32, #tpu.memory_space<vmem>>, %arg4: memref<1x2x128xf32, #tpu.memory_space<vmem>>) attributes {dimension_semantics = [#tpu.dimension_semantics<parallel>], iteration_bounds = array<i64: 2>, scalar_prefetch = 0 : i64, scratch_operands = 0 : i64, tpu.core_type = #tpu.core_type<tc>, window_params = [{transform_indices = @transform_0, window_bounds = array<i64: 1, 256, 128>}, {pipeline_mode = #tpu.pipeline_mode<synchronous>, transform_indices = @transform_1, window_bounds = array<i64: 128, 128>}, {transform_indices = @transform_2, window_bounds = array<i64: 1, 256, 128>}, {transform_indices = @transform_3, window_bounds = array<i64: 1, 2, 128>}]} {
    %c0 = arith.constant 0 : index
    %c0_0 = arith.constant 0 : index
    %c0_1 = arith.constant 0 : index
    %0 = vector.load %arg1[%c0, %c0_0, %c0_1] : memref<1x256x128xf32, #tpu.memory_space<vmem>>, vector<1x256x128xf32>
    %1 = vector.shape_cast %0 : vector<1x256x128xf32> to vector<256x128xf32>
    %c0_2 = arith.constant 0 : index
    %c0_3 = arith.constant 0 : index
    %2 = vector.load %arg2[%c0_2, %c0_3] : memref<128x128xf32, #tpu.memory_space<vmem>>, vector<128x128xf32>
    %cst = arith.constant dense<0.000000e+00> : vector<256x128xf32>
    %3 = tpu.matmul %1, %2, %cst {dimension_numbers = #tpu.dot_dimension_numbers<[1], [0], [0], [1], [0, 0, 1, 1], [], []>} : vector<256x128xf32>, vector<128x128xf32>, vector<256x128xf32> -> vector<256x128xf32>
    %c0_4 = arith.constant 0 : index
    %c0_5 = arith.constant 0 : index
    %c0_6 = arith.constant 0 : index
    %4 = vector.load %arg3[%c0_4, %c0_5, %c0_6] : memref<1x256x128xf32, #tpu.memory_space<vmem>>, vector<1x256x128xf32>
    %5 = vector.shape_cast %4 : vector<1x256x128xf32> to vector<256x128xf32>
    %6 = vector.shape_cast %3 : vector<256x128xf32> to vector<1x256x128xf32>
    tpu.vector_store %arg3[%c0_4, %c0_5, %c0_6], %6 {strides = array<i32>} : memref<1x256x128xf32, #tpu.memory_space<vmem>>, vector<1x256x128xf32>,
    %cst_7 = arith.constant dense<0.000000e+00> : vector<128xf32>
    %7 = vector.multi_reduction <add>, %3, %cst_7 [0] : vector<256x128xf32> to vector<128xf32>
    %8 = vector.shape_cast %7 : vector<128xf32> to vector<1x128xf32>
    %9 = arith.mulf %3, %3 : vector<256x128xf32>
    %cst_8 = arith.constant dense<0.000000e+00> : vector<128xf32>
    %10 = vector.multi_reduction <add>, %9, %cst_8 [0] : vector<256x128xf32> to vector<128xf32>
    %11 = vector.shape_cast %10 : vector<128xf32> to vector<1x128xf32>
    %12 = tpu.concatenate %8, %11 in 0 : vector<1x128xf32>, vector<1x128xf32> -> vector<2x128xf32>
    %c0_9 = arith.constant 0 : index
    %c0_10 = arith.constant 0 : index
    %c0_11 = arith.constant 0 : index
    %13 = vector.load %arg4[%c0_9, %c0_10, %c0_11] : memref<1x2x128xf32, #tpu.memory_space<vmem>>, vector<1x2x128xf32>
    %14 = vector.shape_cast %13 : vector<1x2x128xf32> to vector<2x128xf32>
    %15 = vector.shape_cast %12 : vector<2x128xf32> to vector<1x2x128xf32>
    tpu.vector_store %arg4[%c0_9, %c0_10, %c0_11], %15 {strides = array<i32>} : memref<1x2x128xf32, #tpu.memory_space<vmem>>, vector<1x2x128xf32>,
    return
  }
  func.func @transform_0(%arg0: i32) -> (i32, i32, i32) {
    %c0_i32 = arith.constant 0 : i32
    %c0_i32_0 = arith.constant 0 : i32
    %c0_i32_1 = arith.constant 0 : i32
    return %arg0, %c0_i32, %c0_i32_0 : i32, i32, i32
  }
  func.func @transform_1(%arg0: i32) -> (i32, i32) {
    %c0_i32 = arith.constant 0 : i32
    %c0_i32_0 = arith.constant 0 : i32
    %c0_i32_1 = arith.constant 0 : i32
    return %c0_i32, %c0_i32_0 : i32, i32
  }
  func.func @transform_2(%arg0: i32) -> (i32, i32, i32) {
    %c0_i32 = arith.constant 0 : i32
    %c0_i32_0 = arith.constant 0 : i32
    %c0_i32_1 = arith.constant 0 : i32
    return %arg0, %c0_i32, %c0_i32_0 : i32, i32, i32
  }
  func.func @transform_3(%arg0: i32) -> (i32, i32, i32) {
    %c0_i32 = arith.constant 0 : i32
    %c0_i32_0 = arith.constant 0 : i32
    %c0_i32_1 = arith.constant 0 : i32
    return %arg0, %c0_i32, %c0_i32_0 : i32, i32, i32
  }
}

module attributes {stable_mosaic.version = 11 : i64} {
  func.func @_bn_relu_conv3x3_stats_kernel(%arg0: i32, %arg1: memref<1x16x16x128xf32, #tpu.memory_space<vmem>>, %arg2: memref<1x128xf32, #tpu.memory_space<vmem>>, %arg3: memref<1x128xf32, #tpu.memory_space<vmem>>, %arg4: memref<1152x128xf32, #tpu.memory_space<vmem>>, %arg5: memref<1x16x16x128xf32, #tpu.memory_space<vmem>>, %arg6: memref<1x2x128xf32, #tpu.memory_space<vmem>>, %arg7: memref<18x18x128xf32, #tpu.memory_space<vmem>>) attributes {dimension_semantics = [#tpu.dimension_semantics<parallel>], iteration_bounds = array<i64: 2>, scalar_prefetch = 0 : i64, scratch_operands = 1 : i64, tpu.core_type = #tpu.core_type<tc>, window_params = [{transform_indices = @transform_0, window_bounds = array<i64: 1, 16, 16, 128>}, {pipeline_mode = #tpu.pipeline_mode<synchronous>, transform_indices = @transform_1, window_bounds = array<i64: 1, 128>}, {pipeline_mode = #tpu.pipeline_mode<synchronous>, transform_indices = @transform_2, window_bounds = array<i64: 1, 128>}, {pipeline_mode = #tpu.pipeline_mode<synchronous>, transform_indices = @transform_3, window_bounds = array<i64: 1152, 128>}, {transform_indices = @transform_4, window_bounds = array<i64: 1, 16, 16, 128>}, {transform_indices = @transform_5, window_bounds = array<i64: 1, 2, 128>}]} {
    %c0 = arith.constant 0 : index
    %c0_0 = arith.constant 0 : index
    %c0_1 = arith.constant 0 : index
    %c0_2 = arith.constant 0 : index
    %0 = vector.load %arg1[%c0, %c0_0, %c0_1, %c0_2] : memref<1x16x16x128xf32, #tpu.memory_space<vmem>>, vector<1x16x16x128xf32>
    %1 = vector.shape_cast %0 : vector<1x16x16x128xf32> to vector<16x16x128xf32>
    %c0_3 = arith.constant 0 : index
    %c0_4 = arith.constant 0 : index
    %2 = vector.load %arg2[%c0_3, %c0_4] : memref<1x128xf32, #tpu.memory_space<vmem>>, vector<1x128xf32>
    %3 = vector.shape_cast %2 : vector<1x128xf32> to vector<1x1x128xf32>
    %4 = vector.broadcast %3 : vector<1x1x128xf32> to vector<16x16x128xf32>
    %5 = arith.mulf %1, %4 : vector<16x16x128xf32>
    %c0_5 = arith.constant 0 : index
    %c0_6 = arith.constant 0 : index
    %6 = vector.load %arg3[%c0_5, %c0_6] : memref<1x128xf32, #tpu.memory_space<vmem>>, vector<1x128xf32>
    %7 = vector.shape_cast %6 : vector<1x128xf32> to vector<1x1x128xf32>
    %8 = vector.broadcast %7 : vector<1x1x128xf32> to vector<16x16x128xf32>
    %9 = arith.addf %5, %8 : vector<16x16x128xf32>
    %cst = arith.constant 0.000000e+00 : f32
    %10 = vector.broadcast %cst : f32 to vector<16x16x128xf32>
    %11 = arith.maximumf %9, %10 : vector<16x16x128xf32>
    %cst_7 = arith.constant 0.000000e+00 : f32
    %12 = vector.broadcast %cst_7 : f32 to vector<1x18x128xf32>
    %c0_8 = arith.constant 0 : index
    %c0_9 = arith.constant 0 : index
    %c0_10 = arith.constant 0 : index
    %13 = vector.load %arg7[%c0_8, %c0_9, %c0_10] : memref<18x18x128xf32, #tpu.memory_space<vmem>>, vector<1x18x128xf32>
    tpu.vector_store %arg7[%c0_8, %c0_9, %c0_10], %12 {strides = array<i32>} : memref<18x18x128xf32, #tpu.memory_space<vmem>>, vector<1x18x128xf32>,
    %cst_11 = arith.constant 0.000000e+00 : f32
    %14 = vector.broadcast %cst_11 : f32 to vector<1x18x128xf32>
    %c17 = arith.constant 17 : index
    %c0_12 = arith.constant 0 : index
    %c0_13 = arith.constant 0 : index
    %15 = vector.load %arg7[%c17, %c0_12, %c0_13] : memref<18x18x128xf32, #tpu.memory_space<vmem>>, vector<1x18x128xf32>
    tpu.vector_store %arg7[%c17, %c0_12, %c0_13], %14 {strides = array<i32>} : memref<18x18x128xf32, #tpu.memory_space<vmem>>, vector<1x18x128xf32>,
    %cst_14 = arith.constant 0.000000e+00 : f32
    %16 = vector.broadcast %cst_14 : f32 to vector<18x1x128xf32>
    %c0_15 = arith.constant 0 : index
    %c0_16 = arith.constant 0 : index
    %c0_17 = arith.constant 0 : index
    %17 = vector.load %arg7[%c0_15, %c0_16, %c0_17] : memref<18x18x128xf32, #tpu.memory_space<vmem>>, vector<18x1x128xf32>
    tpu.vector_store %arg7[%c0_15, %c0_16, %c0_17], %16 {strides = array<i32>} : memref<18x18x128xf32, #tpu.memory_space<vmem>>, vector<18x1x128xf32>,
    %cst_18 = arith.constant 0.000000e+00 : f32
    %18 = vector.broadcast %cst_18 : f32 to vector<18x1x128xf32>
    %c0_19 = arith.constant 0 : index
    %c17_20 = arith.constant 17 : index
    %c0_21 = arith.constant 0 : index
    %19 = vector.load %arg7[%c0_19, %c17_20, %c0_21] : memref<18x18x128xf32, #tpu.memory_space<vmem>>, vector<18x1x128xf32>
    tpu.vector_store %arg7[%c0_19, %c17_20, %c0_21], %18 {strides = array<i32>} : memref<18x18x128xf32, #tpu.memory_space<vmem>>, vector<18x1x128xf32>,
    %c1 = arith.constant 1 : index
    %c1_22 = arith.constant 1 : index
    %c0_23 = arith.constant 0 : index
    %20 = vector.load %arg7[%c1, %c1_22, %c0_23] : memref<18x18x128xf32, #tpu.memory_space<vmem>>, vector<16x16x128xf32>
    tpu.vector_store %arg7[%c1, %c1_22, %c0_23], %11 {strides = array<i32>} : memref<18x18x128xf32, #tpu.memory_space<vmem>>, vector<16x16x128xf32>,
    %c0_24 = arith.constant 0 : index
    %c0_25 = arith.constant 0 : index
    %c0_26 = arith.constant 0 : index
    %21 = vector.load %arg7[%c0_24, %c0_25, %c0_26] : memref<18x18x128xf32, #tpu.memory_space<vmem>>, vector<16x16x128xf32>
    %c0_27 = arith.constant 0 : index
    %c1_28 = arith.constant 1 : index
    %c0_29 = arith.constant 0 : index
    %22 = vector.load %arg7[%c0_27, %c1_28, %c0_29] : memref<18x18x128xf32, #tpu.memory_space<vmem>>, vector<16x16x128xf32>
    %c0_30 = arith.constant 0 : index
    %c2 = arith.constant 2 : index
    %c0_31 = arith.constant 0 : index
    %23 = vector.load %arg7[%c0_30, %c2, %c0_31] : memref<18x18x128xf32, #tpu.memory_space<vmem>>, vector<16x16x128xf32>
    %c1_32 = arith.constant 1 : index
    %c0_33 = arith.constant 0 : index
    %c0_34 = arith.constant 0 : index
    %24 = vector.load %arg7[%c1_32, %c0_33, %c0_34] : memref<18x18x128xf32, #tpu.memory_space<vmem>>, vector<16x16x128xf32>
    %c1_35 = arith.constant 1 : index
    %c1_36 = arith.constant 1 : index
    %c0_37 = arith.constant 0 : index
    %25 = vector.load %arg7[%c1_35, %c1_36, %c0_37] : memref<18x18x128xf32, #tpu.memory_space<vmem>>, vector<16x16x128xf32>
    %c1_38 = arith.constant 1 : index
    %c2_39 = arith.constant 2 : index
    %c0_40 = arith.constant 0 : index
    %26 = vector.load %arg7[%c1_38, %c2_39, %c0_40] : memref<18x18x128xf32, #tpu.memory_space<vmem>>, vector<16x16x128xf32>
    %c2_41 = arith.constant 2 : index
    %c0_42 = arith.constant 0 : index
    %c0_43 = arith.constant 0 : index
    %27 = vector.load %arg7[%c2_41, %c0_42, %c0_43] : memref<18x18x128xf32, #tpu.memory_space<vmem>>, vector<16x16x128xf32>
    %c2_44 = arith.constant 2 : index
    %c1_45 = arith.constant 1 : index
    %c0_46 = arith.constant 0 : index
    %28 = vector.load %arg7[%c2_44, %c1_45, %c0_46] : memref<18x18x128xf32, #tpu.memory_space<vmem>>, vector<16x16x128xf32>
    %c2_47 = arith.constant 2 : index
    %c2_48 = arith.constant 2 : index
    %c0_49 = arith.constant 0 : index
    %29 = vector.load %arg7[%c2_47, %c2_48, %c0_49] : memref<18x18x128xf32, #tpu.memory_space<vmem>>, vector<16x16x128xf32>
    %30 = tpu.concatenate %21, %22, %23, %24, %25, %26, %27, %28, %29 in 2 : vector<16x16x128xf32>, vector<16x16x128xf32>, vector<16x16x128xf32>, vector<16x16x128xf32>, vector<16x16x128xf32>, vector<16x16x128xf32>, vector<16x16x128xf32>, vector<16x16x128xf32>, vector<16x16x128xf32> -> vector<16x16x1152xf32>
    %31 = vector.shape_cast %30 : vector<16x16x1152xf32> to vector<256x1152xf32>
    %c0_50 = arith.constant 0 : index
    %c0_51 = arith.constant 0 : index
    %32 = vector.load %arg4[%c0_50, %c0_51] : memref<1152x128xf32, #tpu.memory_space<vmem>>, vector<1152x128xf32>
    %cst_52 = arith.constant dense<0.000000e+00> : vector<256x128xf32>
    %33 = tpu.matmul %31, %32, %cst_52 {dimension_numbers = #tpu.dot_dimension_numbers<[1], [0], [0], [1], [0, 0, 1, 1], [], []>} : vector<256x1152xf32>, vector<1152x128xf32>, vector<256x128xf32> -> vector<256x128xf32>
    %34 = vector.shape_cast %33 : vector<256x128xf32> to vector<16x16x128xf32>
    %c0_53 = arith.constant 0 : index
    %c0_54 = arith.constant 0 : index
    %c0_55 = arith.constant 0 : index
    %c0_56 = arith.constant 0 : index
    %35 = vector.load %arg5[%c0_53, %c0_54, %c0_55, %c0_56] : memref<1x16x16x128xf32, #tpu.memory_space<vmem>>, vector<1x16x16x128xf32>
    %36 = vector.shape_cast %35 : vector<1x16x16x128xf32> to vector<16x16x128xf32>
    %37 = vector.shape_cast %34 : vector<16x16x128xf32> to vector<1x16x16x128xf32>
    tpu.vector_store %arg5[%c0_53, %c0_54, %c0_55, %c0_56], %37 {strides = array<i32>} : memref<1x16x16x128xf32, #tpu.memory_space<vmem>>, vector<1x16x16x128xf32>,
    %cst_57 = arith.constant dense<0.000000e+00> : vector<128xf32>
    %38 = vector.multi_reduction <add>, %33, %cst_57 [0] : vector<256x128xf32> to vector<128xf32>
    %39 = vector.shape_cast %38 : vector<128xf32> to vector<1x128xf32>
    %40 = arith.mulf %33, %33 : vector<256x128xf32>
    %cst_58 = arith.constant dense<0.000000e+00> : vector<128xf32>
    %41 = vector.multi_reduction <add>, %40, %cst_58 [0] : vector<256x128xf32> to vector<128xf32>
    %42 = vector.shape_cast %41 : vector<128xf32> to vector<1x128xf32>
    %43 = tpu.concatenate %39, %42 in 0 : vector<1x128xf32>, vector<1x128xf32> -> vector<2x128xf32>
    %c0_59 = arith.constant 0 : index
    %c0_60 = arith.constant 0 : index
    %c0_61 = arith.constant 0 : index
    %44 = vector.load %arg6[%c0_59, %c0_60, %c0_61] : memref<1x2x128xf32, #tpu.memory_space<vmem>>, vector<1x2x128xf32>
    %45 = vector.shape_cast %44 : vector<1x2x128xf32> to vector<2x128xf32>
    %46 = vector.shape_cast %43 : vector<2x128xf32> to vector<1x2x128xf32>
    tpu.vector_store %arg6[%c0_59, %c0_60, %c0_61], %46 {strides = array<i32>} : memref<1x2x128xf32, #tpu.memory_space<vmem>>, vector<1x2x128xf32>,
    return
  }
  func.func @transform_0(%arg0: i32) -> (i32, i32, i32, i32) {
    %c0_i32 = arith.constant 0 : i32
    %c0_i32_0 = arith.constant 0 : i32
    %c0_i32_1 = arith.constant 0 : i32
    %c0_i32_2 = arith.constant 0 : i32
    return %arg0, %c0_i32, %c0_i32_0, %c0_i32_1 : i32, i32, i32, i32
  }
  func.func @transform_1(%arg0: i32) -> (i32, i32) {
    %c0_i32 = arith.constant 0 : i32
    %c0_i32_0 = arith.constant 0 : i32
    %c0_i32_1 = arith.constant 0 : i32
    return %c0_i32, %c0_i32_0 : i32, i32
  }
  func.func @transform_2(%arg0: i32) -> (i32, i32) {
    %c0_i32 = arith.constant 0 : i32
    %c0_i32_0 = arith.constant 0 : i32
    %c0_i32_1 = arith.constant 0 : i32
    return %c0_i32, %c0_i32_0 : i32, i32
  }
  func.func @transform_3(%arg0: i32) -> (i32, i32) {
    %c0_i32 = arith.constant 0 : i32
    %c0_i32_0 = arith.constant 0 : i32
    %c0_i32_1 = arith.constant 0 : i32
    return %c0_i32, %c0_i32_0 : i32, i32
  }
  func.func @transform_4(%arg0: i32) -> (i32, i32, i32, i32) {
    %c0_i32 = arith.constant 0 : i32
    %c0_i32_0 = arith.constant 0 : i32
    %c0_i32_1 = arith.constant 0 : i32
    %c0_i32_2 = arith.constant 0 : i32
    return %arg0, %c0_i32, %c0_i32_0, %c0_i32_1 : i32, i32, i32, i32
  }
  func.func @transform_5(%arg0: i32) -> (i32, i32, i32) {
    %c0_i32 = arith.constant 0 : i32
    %c0_i32_0 = arith.constant 0 : i32
    %c0_i32_1 = arith.constant 0 : i32
    return %arg0, %c0_i32, %c0_i32_0 : i32, i32, i32
  }
}

module attributes {stable_mosaic.version = 11 : i64} {
  func.func @_bn_relu_conv1x1_stats_kernel(%arg0: i32, %arg1: memref<1x256x128xf32, #tpu.memory_space<vmem>>, %arg2: memref<1x128xf32, #tpu.memory_space<vmem>>, %arg3: memref<1x128xf32, #tpu.memory_space<vmem>>, %arg4: memref<128x128xf32, #tpu.memory_space<vmem>>, %arg5: memref<1x256x128xf32, #tpu.memory_space<vmem>>, %arg6: memref<1x2x128xf32, #tpu.memory_space<vmem>>) attributes {dimension_semantics = [#tpu.dimension_semantics<parallel>], iteration_bounds = array<i64: 2>, scalar_prefetch = 0 : i64, scratch_operands = 0 : i64, tpu.core_type = #tpu.core_type<tc>, window_params = [{transform_indices = @transform_0, window_bounds = array<i64: 1, 256, 128>}, {pipeline_mode = #tpu.pipeline_mode<synchronous>, transform_indices = @transform_1, window_bounds = array<i64: 1, 128>}, {pipeline_mode = #tpu.pipeline_mode<synchronous>, transform_indices = @transform_2, window_bounds = array<i64: 1, 128>}, {pipeline_mode = #tpu.pipeline_mode<synchronous>, transform_indices = @transform_3, window_bounds = array<i64: 128, 128>}, {transform_indices = @transform_4, window_bounds = array<i64: 1, 256, 128>}, {transform_indices = @transform_5, window_bounds = array<i64: 1, 2, 128>}]} {
    %c0 = arith.constant 0 : index
    %c0_0 = arith.constant 0 : index
    %c0_1 = arith.constant 0 : index
    %0 = vector.load %arg1[%c0, %c0_0, %c0_1] : memref<1x256x128xf32, #tpu.memory_space<vmem>>, vector<1x256x128xf32>
    %1 = vector.shape_cast %0 : vector<1x256x128xf32> to vector<256x128xf32>
    %c0_2 = arith.constant 0 : index
    %c0_3 = arith.constant 0 : index
    %2 = vector.load %arg2[%c0_2, %c0_3] : memref<1x128xf32, #tpu.memory_space<vmem>>, vector<1x128xf32>
    %3 = vector.broadcast %2 : vector<1x128xf32> to vector<256x128xf32>
    %4 = arith.mulf %1, %3 : vector<256x128xf32>
    %c0_4 = arith.constant 0 : index
    %c0_5 = arith.constant 0 : index
    %5 = vector.load %arg3[%c0_4, %c0_5] : memref<1x128xf32, #tpu.memory_space<vmem>>, vector<1x128xf32>
    %6 = vector.broadcast %5 : vector<1x128xf32> to vector<256x128xf32>
    %7 = arith.addf %4, %6 : vector<256x128xf32>
    %cst = arith.constant 0.000000e+00 : f32
    %8 = vector.broadcast %cst : f32 to vector<256x128xf32>
    %9 = arith.maximumf %7, %8 : vector<256x128xf32>
    %c0_6 = arith.constant 0 : index
    %c0_7 = arith.constant 0 : index
    %10 = vector.load %arg4[%c0_6, %c0_7] : memref<128x128xf32, #tpu.memory_space<vmem>>, vector<128x128xf32>
    %cst_8 = arith.constant dense<0.000000e+00> : vector<256x128xf32>
    %11 = tpu.matmul %9, %10, %cst_8 {dimension_numbers = #tpu.dot_dimension_numbers<[1], [0], [0], [1], [0, 0, 1, 1], [], []>} : vector<256x128xf32>, vector<128x128xf32>, vector<256x128xf32> -> vector<256x128xf32>
    %c0_9 = arith.constant 0 : index
    %c0_10 = arith.constant 0 : index
    %c0_11 = arith.constant 0 : index
    %12 = vector.load %arg5[%c0_9, %c0_10, %c0_11] : memref<1x256x128xf32, #tpu.memory_space<vmem>>, vector<1x256x128xf32>
    %13 = vector.shape_cast %12 : vector<1x256x128xf32> to vector<256x128xf32>
    %14 = vector.shape_cast %11 : vector<256x128xf32> to vector<1x256x128xf32>
    tpu.vector_store %arg5[%c0_9, %c0_10, %c0_11], %14 {strides = array<i32>} : memref<1x256x128xf32, #tpu.memory_space<vmem>>, vector<1x256x128xf32>,
    %cst_12 = arith.constant dense<0.000000e+00> : vector<128xf32>
    %15 = vector.multi_reduction <add>, %11, %cst_12 [0] : vector<256x128xf32> to vector<128xf32>
    %16 = vector.shape_cast %15 : vector<128xf32> to vector<1x128xf32>
    %17 = arith.mulf %11, %11 : vector<256x128xf32>
    %cst_13 = arith.constant dense<0.000000e+00> : vector<128xf32>
    %18 = vector.multi_reduction <add>, %17, %cst_13 [0] : vector<256x128xf32> to vector<128xf32>
    %19 = vector.shape_cast %18 : vector<128xf32> to vector<1x128xf32>
    %20 = tpu.concatenate %16, %19 in 0 : vector<1x128xf32>, vector<1x128xf32> -> vector<2x128xf32>
    %c0_14 = arith.constant 0 : index
    %c0_15 = arith.constant 0 : index
    %c0_16 = arith.constant 0 : index
    %21 = vector.load %arg6[%c0_14, %c0_15, %c0_16] : memref<1x2x128xf32, #tpu.memory_space<vmem>>, vector<1x2x128xf32>
    %22 = vector.shape_cast %21 : vector<1x2x128xf32> to vector<2x128xf32>
    %23 = vector.shape_cast %20 : vector<2x128xf32> to vector<1x2x128xf32>
    tpu.vector_store %arg6[%c0_14, %c0_15, %c0_16], %23 {strides = array<i32>} : memref<1x2x128xf32, #tpu.memory_space<vmem>>, vector<1x2x128xf32>,
    return
  }
  func.func @transform_0(%arg0: i32) -> (i32, i32, i32) {
    %c0_i32 = arith.constant 0 : i32
    %c0_i32_0 = arith.constant 0 : i32
    %c0_i32_1 = arith.constant 0 : i32
    return %arg0, %c0_i32, %c0_i32_0 : i32, i32, i32
  }
  func.func @transform_1(%arg0: i32) -> (i32, i32) {
    %c0_i32 = arith.constant 0 : i32
    %c0_i32_0 = arith.constant 0 : i32
    %c0_i32_1 = arith.constant 0 : i32
    return %c0_i32, %c0_i32_0 : i32, i32
  }
  func.func @transform_2(%arg0: i32) -> (i32, i32) {
    %c0_i32 = arith.constant 0 : i32
    %c0_i32_0 = arith.constant 0 : i32
    %c0_i32_1 = arith.constant 0 : i32
    return %c0_i32, %c0_i32_0 : i32, i32
  }
  func.func @transform_3(%arg0: i32) -> (i32, i32) {
    %c0_i32 = arith.constant 0 : i32
    %c0_i32_0 = arith.constant 0 : i32
    %c0_i32_1 = arith.constant 0 : i32
    return %c0_i32, %c0_i32_0 : i32, i32
  }
  func.func @transform_4(%arg0: i32) -> (i32, i32, i32) {
    %c0_i32 = arith.constant 0 : i32
    %c0_i32_0 = arith.constant 0 : i32
    %c0_i32_1 = arith.constant 0 : i32
    return %arg0, %c0_i32, %c0_i32_0 : i32, i32, i32
  }
  func.func @transform_5(%arg0: i32) -> (i32, i32, i32) {
    %c0_i32 = arith.constant 0 : i32
    %c0_i32_0 = arith.constant 0 : i32
    %c0_i32_1 = arith.constant 0 : i32
    return %arg0, %c0_i32, %c0_i32_0 : i32, i32, i32
  }
}

module attributes {stable_mosaic.version = 11 : i64} {
  func.func @_bn_residual_relu_kernel(%arg0: i32, %arg1: memref<1x256x128xf32, #tpu.memory_space<vmem>>, %arg2: memref<1x256x128xf32, #tpu.memory_space<vmem>>, %arg3: memref<1x128xf32, #tpu.memory_space<vmem>>, %arg4: memref<1x128xf32, #tpu.memory_space<vmem>>, %arg5: memref<1x256x128xf32, #tpu.memory_space<vmem>>) attributes {dimension_semantics = [#tpu.dimension_semantics<parallel>], iteration_bounds = array<i64: 2>, scalar_prefetch = 0 : i64, scratch_operands = 0 : i64, tpu.core_type = #tpu.core_type<tc>, window_params = [{transform_indices = @transform_0, window_bounds = array<i64: 1, 256, 128>}, {transform_indices = @transform_1, window_bounds = array<i64: 1, 256, 128>}, {pipeline_mode = #tpu.pipeline_mode<synchronous>, transform_indices = @transform_2, window_bounds = array<i64: 1, 128>}, {pipeline_mode = #tpu.pipeline_mode<synchronous>, transform_indices = @transform_3, window_bounds = array<i64: 1, 128>}, {transform_indices = @transform_4, window_bounds = array<i64: 1, 256, 128>}]} {
    %c0 = arith.constant 0 : index
    %c0_0 = arith.constant 0 : index
    %c0_1 = arith.constant 0 : index
    %0 = vector.load %arg1[%c0, %c0_0, %c0_1] : memref<1x256x128xf32, #tpu.memory_space<vmem>>, vector<1x256x128xf32>
    %1 = vector.shape_cast %0 : vector<1x256x128xf32> to vector<256x128xf32>
    %c0_2 = arith.constant 0 : index
    %c0_3 = arith.constant 0 : index
    %2 = vector.load %arg3[%c0_2, %c0_3] : memref<1x128xf32, #tpu.memory_space<vmem>>, vector<1x128xf32>
    %3 = vector.broadcast %2 : vector<1x128xf32> to vector<256x128xf32>
    %4 = arith.mulf %1, %3 : vector<256x128xf32>
    %c0_4 = arith.constant 0 : index
    %c0_5 = arith.constant 0 : index
    %5 = vector.load %arg4[%c0_4, %c0_5] : memref<1x128xf32, #tpu.memory_space<vmem>>, vector<1x128xf32>
    %6 = vector.broadcast %5 : vector<1x128xf32> to vector<256x128xf32>
    %7 = arith.addf %4, %6 : vector<256x128xf32>
    %c0_6 = arith.constant 0 : index
    %c0_7 = arith.constant 0 : index
    %c0_8 = arith.constant 0 : index
    %8 = vector.load %arg2[%c0_6, %c0_7, %c0_8] : memref<1x256x128xf32, #tpu.memory_space<vmem>>, vector<1x256x128xf32>
    %9 = vector.shape_cast %8 : vector<1x256x128xf32> to vector<256x128xf32>
    %10 = arith.addf %7, %9 : vector<256x128xf32>
    %cst = arith.constant 0.000000e+00 : f32
    %11 = vector.broadcast %cst : f32 to vector<256x128xf32>
    %12 = arith.maximumf %10, %11 : vector<256x128xf32>
    %c0_9 = arith.constant 0 : index
    %c0_10 = arith.constant 0 : index
    %c0_11 = arith.constant 0 : index
    %13 = vector.load %arg5[%c0_9, %c0_10, %c0_11] : memref<1x256x128xf32, #tpu.memory_space<vmem>>, vector<1x256x128xf32>
    %14 = vector.shape_cast %13 : vector<1x256x128xf32> to vector<256x128xf32>
    %15 = vector.shape_cast %12 : vector<256x128xf32> to vector<1x256x128xf32>
    tpu.vector_store %arg5[%c0_9, %c0_10, %c0_11], %15 {strides = array<i32>} : memref<1x256x128xf32, #tpu.memory_space<vmem>>, vector<1x256x128xf32>,
    return
  }
  func.func @transform_0(%arg0: i32) -> (i32, i32, i32) {
    %c0_i32 = arith.constant 0 : i32
    %c0_i32_0 = arith.constant 0 : i32
    %c0_i32_1 = arith.constant 0 : i32
    return %arg0, %c0_i32, %c0_i32_0 : i32, i32, i32
  }
  func.func @transform_1(%arg0: i32) -> (i32, i32, i32) {
    %c0_i32 = arith.constant 0 : i32
    %c0_i32_0 = arith.constant 0 : i32
    %c0_i32_1 = arith.constant 0 : i32
    return %arg0, %c0_i32, %c0_i32_0 : i32, i32, i32
  }
  func.func @transform_2(%arg0: i32) -> (i32, i32) {
    %c0_i32 = arith.constant 0 : i32
    %c0_i32_0 = arith.constant 0 : i32
    %c0_i32_1 = arith.constant 0 : i32
    return %c0_i32, %c0_i32_0 : i32, i32
  }
  func.func @transform_3(%arg0: i32) -> (i32, i32) {
    %c0_i32 = arith.constant 0 : i32
    %c0_i32_0 = arith.constant 0 : i32
    %c0_i32_1 = arith.constant 0 : i32
    return %c0_i32, %c0_i32_0 : i32, i32
  }
  func.func @transform_4(%arg0: i32) -> (i32, i32, i32) {
    %c0_i32 = arith.constant 0 : i32
    %c0_i32_0 = arith.constant 0 : i32
    %c0_i32_1 = arith.constant 0 : i32
    return %arg0, %c0_i32, %c0_i32_0 : i32, i32, i32
  }
}

</mosaic_0001>

<llo_original>
// kernel: bottleneck_forward.4
$region0: #{bottleneck_forward.4}
  #allocation0 [shape = 'u32[]', space=smem, size = 0x4, offset = 0x4, fixed_abs, tag = 'smem constant byte address 0x4 - core index']
  #allocation1 [shape = 'u32[144,128]{1,0:T(1,128)}', space=vmem, size = 0x12000, scoped, tag = 'internal scratch']
  %s0 = inlined_call_operand.vmem [shape: f32[2,256,128], index: 0, kind: input, shape index: {}]
  %s1 = inlined_call_operand.vmem [shape: f32[128,128], index: 1, kind: input, shape index: {}]
  %s2 = inlined_call_operand.vmem [shape: f32[2,256,128], index: 2, kind: output, shape index: {0}]
  %s3 = inlined_call_operand.vmem [shape: f32[2,2,128], index: 3, kind: output, shape index: {1}]
  %4 = xla_tuple %s2, %s3
  %s5 = sld [smem:[#allocation0]]
  $region49: #{bottleneck_forward.4} parent=0
    _
  %s7 = ssub.s32 1, %s5
  %s8 = scalar_select 0, %s7, %s5
  loop: start=0, step=1, limit=4
  $region2: #{bottleneck_forward.4} parent=0 // loop_pre_header
    _
  $region3: #{bottleneck_forward.4} parent=0 // loop_header
    %s10 = sphi 0, %s14
    %p11 = scmp.ge.s32.totalorder %s10, 4
    %s20 = sphi 0, %s22
    %s23 = sphi 0, %s20
    %s24 = sphi 0, %s23
    %s40 = sphi 0, %s24
    %s44 = sphi 0, %s44
    %s46 = sphi 0, %s44
    %s47 = sphi 0, %s46
    %s61 = sphi 0, %s47
    %s67 = sphi 0, %s69
    %s70 = sphi 0, %s67
    %s71 = sphi 0, %s70
    %s87 = sphi 0, %s71
    %s93 = sphi 0, %s95
    %s96 = sphi 0, %s93
    %s97 = sphi 0, %s96
    %s113 = sphi 0, %s97
  $region4: #{bottleneck_forward.4} parent=0 // loop_header_branch
    %13 = sbr.rel (%p11) target = $region8
  $region5: #{bottleneck_forward.4} parent=0 // loop_body
    %s15 = ssub.s32 %s10, 1
    %s16 = ssub.s32 %s10, 2
    %s17 = sadd.s32 %s10, 1
    %s18 = ssub.s32 %s10, %s17
    %p19 = scmp.eq.s32.totalorder %s18, 0
    %s21 = sadd.s32 %s20, 1
    %s22 = scalar_select %p19, %s20, %s21
    %p25 = pneg %p19
    %p26 = scmp.eq.s32.totalorder %s10, 1
    %p27 = por %p25, %p26
    %p28 = scmp.ne.s32.totalorder %s20, %s23
    %p29 = scmp.eq.s32.totalorder %s10, 0
    %p30 = por %p28, %p29
    %p31 = scmp.ne.s32.totalorder %s20, %s23
    %p32 = scmp.eq.s32.totalorder %s15, 1
    %p33 = por %p31, %p32
    %p34 = scmp.ne.s32.totalorder %s23, %s24
    %p35 = scmp.eq.s32.totalorder %s15, 0
    %p36 = por %p34, %p35
    %p37 = scmp.ne.s32.totalorder %s23, %s24
    %p38 = scmp.eq.s32.totalorder %s16, 1
    %p39 = por %p37, %p38
    %p41 = scmp.ne.s32.totalorder %s24, %s40
    %p42 = scmp.eq.s32.totalorder %s16, 0
    %p43 = por %p41, %p42
    %s45 = sadd.s32 %s44, 1
    %p48 = scmp.eq.s32.totalorder %s10, 1
    %p49 = scmp.ne.s32.totalorder %s44, %s46
    %p50 = scmp.eq.s32.totalorder %s10, 0
    %p51 = por %p49, %p50
    %p52 = scmp.ne.s32.totalorder %s44, %s46
    %p53 = scmp.eq.s32.totalorder %s15, 1
    %p54 = por %p52, %p53
    %p55 = scmp.ne.s32.totalorder %s46, %s47
    %p56 = scmp.eq.s32.totalorder %s15, 0
    %p57 = por %p55, %p56
    %p58 = scmp.ne.s32.totalorder %s46, %s47
    %p59 = scmp.eq.s32.totalorder %s16, 1
    %p60 = por %p58, %p59
    %p62 = scmp.ne.s32.totalorder %s47, %s61
    %p63 = scmp.eq.s32.totalorder %s16, 0
    %p64 = por %p62, %p63
    %s65 = ssub.s32 %s10, %s17
    %p66 = scmp.eq.s32.totalorder %s65, 0
    %s68 = sadd.s32 %s67, 1
    %s69 = scalar_select %p66, %s67, %s68
    %p72 = pneg %p66
    %p73 = scmp.eq.s32.totalorder %s10, 1
    %p74 = por %p72, %p73
    %p75 = scmp.ne.s32.totalorder %s67, %s70
    %p76 = scmp.eq.s32.totalorder %s10, 0
    %p77 = por %p75, %p76
    %p78 = scmp.ne.s32.totalorder %s67, %s70
    %p79 = scmp.eq.s32.totalorder %s15, 1
    %p80 = por %p78, %p79
    %p81 = scmp.ne.s32.totalorder %s70, %s71
    %p82 = scmp.eq.s32.totalorder %s15, 0
    %p83 = por %p81, %p82
    %p84 = scmp.ne.s32.totalorder %s70, %s71
    %p85 = scmp.eq.s32.totalorder %s16, 1
    %p86 = por %p84, %p85
    %p88 = scmp.ne.s32.totalorder %s71, %s87
    %p89 = scmp.eq.s32.totalorder %s16, 0
    %p90 = por %p88, %p89
    %s91 = ssub.s32 %s10, %s17
    %p92 = scmp.eq.s32.totalorder %s91, 0
    %s94 = sadd.s32 %s93, 1
    %s95 = scalar_select %p92, %s93, %s94
    %p98 = pneg %p92
    %p99 = scmp.eq.s32.totalorder %s10, 1
    %p100 = por %p98, %p99
    %p101 = scmp.ne.s32.totalorder %s93, %s96
    %p102 = scmp.eq.s32.totalorder %s10, 0
    %p103 = por %p101, %p102
    %p104 = scmp.ne.s32.totalorder %s93, %s96
    %p105 = scmp.eq.s32.totalorder %s15, 1
    %p106 = por %p104, %p105
    %p107 = scmp.ne.s32.totalorder %s96, %s97
    %p108 = scmp.eq.s32.totalorder %s15, 0
    %p109 = por %p107, %p108
    %p110 = scmp.ne.s32.totalorder %s96, %s97
    %p111 = scmp.eq.s32.totalorder %s16, 1
    %p112 = por %p110, %p111
    %p114 = scmp.ne.s32.totalorder %s97, %s113
    %p115 = scmp.eq.s32.totalorder %s16, 0
    %p116 = por %p114, %p115
    %p117 = scmp.le.s32.totalorder 1, %s10
    %p118 = scmp.lt.s32.totalorder %s10, 3
    %p119 = pnand %p117, %p118
    %p120 = pneg %p119
    // Predicated region
    $region9: #{bottleneck_forward.4} parent=5 // pred_check
      _
    $region10: #{bottleneck_forward.4} parent=5 // pred_check_branch
      %122 = sbr.rel (%p119) target = $region12
    $region11: #{bottleneck_forward.4} parent=5 // pred_region
      %s123 = ssub.s32 %s10, 1
      // Predicated region
      $region13: #{bottleneck_forward.4} parent=11 // pred_check
        %p124 = pneg %p57
      $region14: #{bottleneck_forward.4} parent=11 // pred_check_branch
        %126 = sbr.rel (%p124) target = $region16
      $region15: #{bottleneck_forward.4} parent=11 // pred_region
        _
      $region16: #{bottleneck_forward.4} parent=11 // pred_fallthru
        _
    $region12: #{bottleneck_forward.4} parent=5 // pred_fallthru
      _
    %p127 = scmp.lt.s32.totalorder %s10, 2
    // Predicated region
    $region17: #{bottleneck_forward.4} parent=5 // pred_check
      %p128 = pneg %p127
    $region18: #{bottleneck_forward.4} parent=5 // pred_check_branch
      %130 = sbr.rel (%p128) target = $region20
    $region19: #{bottleneck_forward.4} parent=5 // pred_region
      // Predicated region
      $region21: #{bottleneck_forward.4} parent=19 // pred_check
        %p131 = pneg %p30
      $region22: #{bottleneck_forward.4} parent=19 // pred_check_branch
        %133 = sbr.rel (%p131) target = $region24
      $region23: #{bottleneck_forward.4} parent=19 // pred_region
        %p134 = scmp.lt.s32.totalorder %s10, 1
        %s135 = scalar_select %p134, %s10, 1
        %s136 = smul.addr %s135, 32
        %s137 = smul.addr %s136, 8
        %s138 = scalar_lea.vmem %s0, %s137
      $region24: #{bottleneck_forward.4} parent=19 // pred_fallthru
        _
    $region20: #{bottleneck_forward.4} parent=5 // pred_fallthru
      _
    %p139 = scmp.le.s32.totalorder 1, %s10
    %p140 = scmp.lt.s32.totalorder %s10, 3
    %p141 = pnand %p139, %p140
    %p142 = pneg %p141
    // Predicated region
    $region25: #{bottleneck_forward.4} parent=5 // pred_check
      _
    $region26: #{bottleneck_forward.4} parent=5 // pred_check_branch
      %144 = sbr.rel (%p141) target = $region28
    $region27: #{bottleneck_forward.4} parent=5 // pred_region
      %s145 = ssub.s32 %s10, 1
      %p146 = scmp.lt.s32.totalorder %s15, 1
      %s147 = scalar_select %p146, %s15, 1
      %s148 = smul.addr %s147, 32
      %s149 = smul.addr %s148, 8
      %s150 = scalar_lea.vmem %s0, %s149
      %p151 = pneg %p36
      %p152 = pneg %p33
      %p153 = pneg %p57
      %p154 = pneg %p54
      %p155 = pneg %p83
      %p156 = pneg %p80
      %p157 = scmp.lt.s32.totalorder %s15, 1
      %s158 = scalar_select %p157, %s15, 1
      %s159 = smul.addr %s158, 32
      %s160 = smul.addr %s159, 8
      %s161 = scalar_lea.vmem %s2, %s160
      %p162 = pneg %p109
      %p163 = pneg %p106
      %p164 = scmp.lt.s32.totalorder %s15, 1
      %s165 = scalar_select %p164, %s15, 1
      %s166 = smul.addr %s165, 2
      %s167 = scalar_lea.vmem %s3, %s166
      %p168 = scmp.lt.s32.totalorder %s15, 1
      %s169 = scalar_select %p168, %s15, 1
      %s170 = smul.addr %s169, 32
      %s171 = smul.addr %s170, 8
      %s172 = scalar_lea.vmem %s0, %s171
      %p173 = scmp.lt.s32.totalorder %s15, 1
      %s174 = scalar_select %p173, %s15, 1
      %s175 = smul.addr %s174, 32
      %s176 = smul.addr %s175, 8
      %s177 = scalar_lea.vmem %s2, %s176
      %p178 = scmp.lt.s32.totalorder %s15, 1
      %s179 = scalar_select %p178, %s15, 1
      %s180 = smul.addr %s179, 2
      %s181 = scalar_lea.vmem %s3, %s180
      %v182 = vld [vmem:[%s172] sm:$0xff]
      %v183 = vld [vmem:[%s172 + $0x8] sm:$0xff]
      %v184 = vld [vmem:[%s172 + $0x10] sm:$0xff]
      %v185 = vld [vmem:[%s172 + $0x18] sm:$0xff]
      %v186 = vld [vmem:[%s172 + $0x20] sm:$0xff]
      %v187 = vld [vmem:[%s172 + $0x28] sm:$0xff]
      %v188 = vld [vmem:[%s172 + $0x30] sm:$0xff]
      %v189 = vld [vmem:[%s172 + $0x38] sm:$0xff]
      %v190 = vld [vmem:[%s172 + $0x40] sm:$0xff]
      %v191 = vld [vmem:[%s172 + $0x48] sm:$0xff]
      %v192 = vld [vmem:[%s172 + $0x50] sm:$0xff]
      %v193 = vld [vmem:[%s172 + $0x58] sm:$0xff]
      %v194 = vld [vmem:[%s172 + $0x60] sm:$0xff]
      %v195 = vld [vmem:[%s172 + $0x68] sm:$0xff]
      %v196 = vld [vmem:[%s172 + $0x70] sm:$0xff]
      %v197 = vld [vmem:[%s172 + $0x78] sm:$0xff]
      %v198 = vld [vmem:[%s172 + $0x80] sm:$0xff]
      %v199 = vld [vmem:[%s172 + $0x88] sm:$0xff]
      %v200 = vld [vmem:[%s172 + $0x90] sm:$0xff]
      %v201 = vld [vmem:[%s172 + $0x98] sm:$0xff]
      %v202 = vld [vmem:[%s172 + $0xa0] sm:$0xff]
      %v203 = vld [vmem:[%s172 + $0xa8] sm:$0xff]
      %v204 = vld [vmem:[%s172 + $0xb0] sm:$0xff]
      %v205 = vld [vmem:[%s172 + $0xb8] sm:$0xff]
      %v206 = vld [vmem:[%s172 + $0xc0] sm:$0xff]
      %v207 = vld [vmem:[%s172 + $0xc8] sm:$0xff]
      %v208 = vld [vmem:[%s172 + $0xd0] sm:$0xff]
      %v209 = vld [vmem:[%s172 + $0xd8] sm:$0xff]
      %v210 = vld [vmem:[%s172 + $0xe0] sm:$0xff]
      %v211 = vld [vmem:[%s172 + $0xe8] sm:$0xff]
      %v212 = vld [vmem:[%s172 + $0xf0] sm:$0xff]
      %v213 = vld [vmem:[%s172 + $0xf8] sm:$0xff]
      %v214 = vld [vmem:[%s1] sm:$0xff]
      %v215 = vld [vmem:[%s1 + $0x8] sm:$0xff]
      %v216 = vld [vmem:[%s1 + $0x10] sm:$0xff]
      %v217 = vld [vmem:[%s1 + $0x18] sm:$0xff]
      %v218 = vld [vmem:[%s1 + $0x20] sm:$0xff]
      %v219 = vld [vmem:[%s1 + $0x28] sm:$0xff]
      %v220 = vld [vmem:[%s1 + $0x30] sm:$0xff]
      %v221 = vld [vmem:[%s1 + $0x38] sm:$0xff]
      %v222 = vld [vmem:[%s1 + $0x40] sm:$0xff]
      %v223 = vld [vmem:[%s1 + $0x48] sm:$0xff]
      %v224 = vld [vmem:[%s1 + $0x50] sm:$0xff]
      %v225 = vld [vmem:[%s1 + $0x58] sm:$0xff]
      %v226 = vld [vmem:[%s1 + $0x60] sm:$0xff]
      %v227 = vld [vmem:[%s1 + $0x68] sm:$0xff]
      %v228 = vld [vmem:[%s1 + $0x70] sm:$0xff]
      %v229 = vld [vmem:[%s1 + $0x78] sm:$0xff]
      %230 = vmatprep.subr.mxu0 0.0
      %231 = vmatpush1.msra.mxu0 %v229
      %232 = vmatprep.subr.mxu0 0.0
      %233 = vmatpush1.msra.mxu0 %v228
      %234 = vmatprep.subr.mxu0 0.0
      %235 = vmatpush1.msra.mxu0 %v227
      %236 = vmatprep.subr.mxu0 0.0
      %237 = vmatpush1.msra.mxu0 %v226
      %238 = vmatprep.subr.mxu0 0.0
      %239 = vmatpush1.msra.mxu0 %v225
      %240 = vmatprep.subr.mxu0 0.0
      %241 = vmatpush1.msra.mxu0 %v224
      %242 = vmatprep.subr.mxu0 0.0
      %243 = vmatpush1.msra.mxu0 %v223
      %244 = vmatprep.subr.mxu0 0.0
      %245 = vmatpush1.msra.mxu0 %v222
      %246 = vmatprep.subr.mxu0 0.0
      %247 = vmatpush1.msra.mxu0 %v221
      %248 = vmatprep.subr.mxu0 0.0
      %249 = vmatpush1.msra.mxu0 %v220
      %250 = vmatprep.subr.mxu0 0.0
      %251 = vmatpush1.msra.mxu0 %v219
      %252 = vmatprep.subr.mxu0 0.0
      %253 = vmatpush1.msra.mxu0 %v218
      %254 = vmatprep.subr.mxu0 0.0
      %255 = vmatpush1.msra.mxu0 %v217
      %256 = vmatprep.subr.mxu0 0.0
      %257 = vmatpush1.msra.mxu0 %v216
      %258 = vmatprep.subr.mxu0 0.0
      %259 = vmatpush1.msra.mxu0 %v215
      %260 = vmatprep.subr.mxu0 0.0
      %261 = vmatpush1.msra.mxu0 %v214
      %262 = vmatprep.subr.mxu0 0.0
      %263 = vmatpush2.msra.mxu0 0.0
      %264 = vmatprep.subr.mxu0 0.0
      %265 = vmatpush2.msra.mxu0 0.0
      %266 = vmatprep.subr.mxu0 0.0
      %267 = vmatpush2.msra.mxu0 0.0
      %268 = vmatprep.subr.mxu0 0.0
      %269 = vmatpush2.msra.mxu0 0.0
      %270 = vmatprep.subr.mxu0 0.0
      %271 = vmatpush2.msra.mxu0 0.0
      %272 = vmatprep.subr.mxu0 0.0
      %273 = vmatpush2.msra.mxu0 0.0
      %274 = vmatprep.subr.mxu0 0.0
      %275 = vmatpush2.msra.mxu0 0.0
      %276 = vmatprep.subr.mxu0 0.0
      %277 = vmatpush2.msra.mxu0 0.0
      %278 = vmatprep.subr.mxu0 0.0
      %279 = vmatpush2.msra.mxu0 0.0
      %280 = vmatprep.subr.mxu0 0.0
      %281 = vmatpush2.msra.mxu0 0.0
      %282 = vmatprep.subr.mxu0 0.0
      %283 = vmatpush2.msra.mxu0 0.0
      %284 = vmatprep.subr.mxu0 0.0
      %285 = vmatpush2.msra.mxu0 0.0
      %286 = vmatprep.subr.mxu0 0.0
      %287 = vmatpush2.msra.mxu0 0.0
      %288 = vmatprep.subr.mxu0 0.0
      %289 = vmatpush2.msra.mxu0 0.0
      %290 = vmatprep.subr.mxu0 0.0
      %291 = vmatpush2.msra.mxu0 0.0
      %292 = vmatprep.subr.mxu0 0.0
      %293 = vmatpush2.msra.mxu0 0.0
      %294 = vmatprep.mubr.f32.mxu0 0.0
      %295 = vmatmul.mubr.f32.gmra.mxu0 %v182
      %v296 = vpop.f32.mrf.mxu0
      %v297 = vadd.f32 0.0, %v296
      %v298 = vpop.f32.mrf.mxu0
      %299 = vmatprep.mubr.f32.mxu0 0.0
      %300 = vmatmul.mubr.f32.gmra.mxu0 %v183
      %v301 = vpop.f32.mrf.mxu0
      %v302 = vadd.f32 0.0, %v301
      %v303 = vpop.f32.mrf.mxu0
      %304 = vmatprep.mubr.f32.mxu0 0.0
      %305 = vmatmul.mubr.f32.gmra.mxu0 %v184
      %v306 = vpop.f32.mrf.mxu0
      %v307 = vadd.f32 0.0, %v306
      %v308 = vpop.f32.mrf.mxu0
      %309 = vmatprep.mubr.f32.mxu0 0.0
      %310 = vmatmul.mubr.f32.gmra.mxu0 %v185
      %v311 = vpop.f32.mrf.mxu0
      %v312 = vadd.f32 0.0, %v311
      %v313 = vpop.f32.mrf.mxu0
      %314 = vmatprep.mubr.f32.mxu0 0.0
      %315 = vmatmul.mubr.f32.gmra.mxu0 %v186
      %v316 = vpop.f32.mrf.mxu0
      %v317 = vadd.f32 0.0, %v316
      %v318 = vpop.f32.mrf.mxu0
      %319 = vmatprep.mubr.f32.mxu0 0.0
      %320 = vmatmul.mubr.f32.gmra.mxu0 %v187
      %v321 = vpop.f32.mrf.mxu0
      %v322 = vadd.f32 0.0, %v321
      %v323 = vpop.f32.mrf.mxu0
      %324 = vmatprep.mubr.f32.mxu0 0.0
      %325 = vmatmul.mubr.f32.gmra.mxu0 %v188
      %v326 = vpop.f32.mrf.mxu0
      %v327 = vadd.f32 0.0, %v326
      %v328 = vpop.f32.mrf.mxu0
      %329 = vmatprep.mubr.f32.mxu0 0.0
      %330 = vmatmul.mubr.f32.gmra.mxu0 %v189
      %v331 = vpop.f32.mrf.mxu0
      %v332 = vadd.f32 0.0, %v331
      %v333 = vpop.f32.mrf.mxu0
      %334 = vmatprep.mubr.f32.mxu0 0.0
      %335 = vmatmul.mubr.f32.gmra.mxu0 %v190
      %v336 = vpop.f32.mrf.mxu0
      %v337 = vadd.f32 0.0, %v336
      %v338 = vpop.f32.mrf.mxu0
      %339 = vmatprep.mubr.f32.mxu0 0.0
      %340 = vmatmul.mubr.f32.gmra.mxu0 %v191
      %v341 = vpop.f32.mrf.mxu0
      %v342 = vadd.f32 0.0, %v341
      %v343 = vpop.f32.mrf.mxu0
      %344 = vmatprep.mubr.f32.mxu0 0.0
      %345 = vmatmul.mubr.f32.gmra.mxu0 %v192
      %v346 = vpop.f32.mrf.mxu0
      %v347 = vadd.f32 0.0, %v346
      %v348 = vpop.f32.mrf.mxu0
      %349 = vmatprep.mubr.f32.mxu0 0.0
      %350 = vmatmul.mubr.f32.gmra.mxu0 %v193
      %v351 = vpop.f32.mrf.mxu0
      %v352 = vadd.f32 0.0, %v351
      %v353 = vpop.f32.mrf.mxu0
      %354 = vmatprep.mubr.f32.mxu0 0.0
      %355 = vmatmul.mubr.f32.gmra.mxu0 %v194
      %v356 = vpop.f32.mrf.mxu0
      %v357 = vadd.f32 0.0, %v356
      %v358 = vpop.f32.mrf.mxu0
      %359 = vmatprep.mubr.f32.mxu0 0.0
      %360 = vmatmul.mubr.f32.gmra.mxu0 %v195
      %v361 = vpop.f32.mrf.mxu0
      %v362 = vadd.f32 0.0, %v361
      %v363 = vpop.f32.mrf.mxu0
      %364 = vmatprep.mubr.f32.mxu0 0.0
      %365 = vmatmul.mubr.f32.gmra.mxu0 %v196
      %v366 = vpop.f32.mrf.mxu0
      %v367 = vadd.f32 0.0, %v366
      %v368 = vpop.f32.mrf.mxu0
      %369 = vmatprep.mubr.f32.mxu0 0.0
      %370 = vmatmul.mubr.f32.gmra.mxu0 %v197
      %v371 = vpop.f32.mrf.mxu0
      %v372 = vadd.f32 0.0, %v371
      %v373 = vpop.f32.mrf.mxu0
      %374 = vmatprep.mubr.f32.mxu0 0.0
      %375 = vmatmul.mubr.f32.gmra.mxu0 %v198
      %v376 = vpop.f32.mrf.mxu0
      %v377 = vadd.f32 0.0, %v376
      %v378 = vpop.f32.mrf.mxu0
      %379 = vmatprep.mubr.f32.mxu0 0.0
      %380 = vmatmul.mubr.f32.gmra.mxu0 %v199
      %v381 = vpop.f32.mrf.mxu0
      %v382 = vadd.f32 0.0, %v381
      %v383 = vpop.f32.mrf.mxu0
      %384 = vmatprep.mubr.f32.mxu0 0.0
      %385 = vmatmul.mubr.f32.gmra.mxu0 %v200
      %v386 = vpop.f32.mrf.mxu0
      %v387 = vadd.f32 0.0, %v386
      %v388 = vpop.f32.mrf.mxu0
      %389 = vmatprep.mubr.f32.mxu0 0.0
      %390 = vmatmul.mubr.f32.gmra.mxu0 %v201
      %v391 = vpop.f32.mrf.mxu0
      %v392 = vadd.f32 0.0, %v391
      %v393 = vpop.f32.mrf.mxu0
      %394 = vmatprep.mubr.f32.mxu0 0.0
      %395 = vmatmul.mubr.f32.gmra.mxu0 %v202
      %v396 = vpop.f32.mrf.mxu0
      %v397 = vadd.f32 0.0, %v396
      %v398 = vpop.f32.mrf.mxu0
      %399 = vmatprep.mubr.f32.mxu0 0.0
      %400 = vmatmul.mubr.f32.gmra.mxu0 %v203
      %v401 = vpop.f32.mrf.mxu0
      %v402 = vadd.f32 0.0, %v401
      %v403 = vpop.f32.mrf.mxu0
      %404 = vmatprep.mubr.f32.mxu0 0.0
      %405 = vmatmul.mubr.f32.gmra.mxu0 %v204
      %v406 = vpop.f32.mrf.mxu0
      %v407 = vadd.f32 0.0, %v406
      %v408 = vpop.f32.mrf.mxu0
      %409 = vmatprep.mubr.f32.mxu0 0.0
      %410 = vmatmul.mubr.f32.gmra.mxu0 %v205
      %v411 = vpop.f32.mrf.mxu0
      %v412 = vadd.f32 0.0, %v411
      %v413 = vpop.f32.mrf.mxu0
      %414 = vmatprep.mubr.f32.mxu0 0.0
      %415 = vmatmul.mubr.f32.gmra.mxu0 %v206
      %v416 = vpop.f32.mrf.mxu0
      %v417 = vadd.f32 0.0, %v416
      %v418 = vpop.f32.mrf.mxu0
      %419 = vmatprep.mubr.f32.mxu0 0.0
      %420 = vmatmul.mubr.f32.gmra.mxu0 %v207
      %v421 = vpop.f32.mrf.mxu0
      %v422 = vadd.f32 0.0, %v421
      %v423 = vpop.f32.mrf.mxu0
      %424 = vmatprep.mubr.f32.mxu0 0.0
      %425 = vmatmul.mubr.f32.gmra.mxu0 %v208
      %v426 = vpop.f32.mrf.mxu0
      %v427 = vadd.f32 0.0, %v426
      %v428 = vpop.f32.mrf.mxu0
      %429 = vmatprep.mubr.f32.mxu0 0.0
      %430 = vmatmul.mubr.f32.gmra.mxu0 %v209
      %v431 = vpop.f32.mrf.mxu0
      %v432 = vadd.f32 0.0, %v431
      %v433 = vpop.f32.mrf.mxu0
      %434 = vmatprep.mubr.f32.mxu0 0.0
      %435 = vmatmul.mubr.f32.gmra.mxu0 %v210
      %v436 = vpop.f32.mrf.mxu0
      %v437 = vadd.f32 0.0, %v436
      %v438 = vpop.f32.mrf.mxu0
      %439 = vmatprep.mubr.f32.mxu0 0.0
      %440 = vmatmul.mubr.f32.gmra.mxu0 %v211
      %v441 = vpop.f32.mrf.mxu0
      %v442 = vadd.f32 0.0, %v441
      %v443 = vpop.f32.mrf.mxu0
      %444 = vmatprep.mubr.f32.mxu0 0.0
      %445 = vmatmul.mubr.f32.gmra.mxu0 %v212
      %v446 = vpop.f32.mrf.mxu0
      %v447 = vadd.f32 0.0, %v446
      %v448 = vpop.f32.mrf.mxu0
      %449 = vmatprep.mubr.f32.mxu0 0.0
      %450 = vmatmul.mubr.f32.gmra.mxu0 %v213
      %v451 = vpop.f32.mrf.mxu0
      %v452 = vadd.f32 0.0, %v451
      %v453 = vpop.f32.mrf.mxu0
      %454 = vdwg.mxu0
      %455 = vst [vmem:[%s177] sm:$0xff] %v297
      %456 = vst [vmem:[%s177 + $0x8] sm:$0xff] %v302
      %457 = vst [vmem:[%s177 + $0x10] sm:$0xff] %v307
      %458 = vst [vmem:[%s177 + $0x18] sm:$0xff] %v312
      %459 = vst [vmem:[%s177 + $0x20] sm:$0xff] %v317
      %460 = vst [vmem:[%s177 + $0x28] sm:$0xff] %v322
      %461 = vst [vmem:[%s177 + $0x30] sm:$0xff] %v327
      %462 = vst [vmem:[%s177 + $0x38] sm:$0xff] %v332
      %463 = vst [vmem:[%s177 + $0x40] sm:$0xff] %v337
      %464 = vst [vmem:[%s177 + $0x48] sm:$0xff] %v342
      %465 = vst [vmem:[%s177 + $0x50] sm:$0xff] %v347
      %466 = vst [vmem:[%s177 + $0x58] sm:$0xff] %v352
      %467 = vst [vmem:[%s177 + $0x60] sm:$0xff] %v357
      %468 = vst [vmem:[%s177 + $0x68] sm:$0xff] %v362
      %469 = vst [vmem:[%s177 + $0x70] sm:$0xff] %v367
      %470 = vst [vmem:[%s177 + $0x78] sm:$0xff] %v372
      %471 = vst [vmem:[%s177 + $0x80] sm:$0xff] %v377
      %472 = vst [vmem:[%s177 + $0x88] sm:$0xff] %v382
      %473 = vst [vmem:[%s177 + $0x90] sm:$0xff] %v387
      %474 = vst [vmem:[%s177 + $0x98] sm:$0xff] %v392
      %475 = vst [vmem:[%s177 + $0xa0] sm:$0xff] %v397
      %476 = vst [vmem:[%s177 + $0xa8] sm:$0xff] %v402
      %477 = vst [vmem:[%s177 + $0xb0] sm:$0xff] %v407
      %478 = vst [vmem:[%s177 + $0xb8] sm:$0xff] %v412
      %479 = vst [vmem:[%s177 + $0xc0] sm:$0xff] %v417
      %480 = vst [vmem:[%s177 + $0xc8] sm:$0xff] %v422
      %481 = vst [vmem:[%s177 + $0xd0] sm:$0xff] %v427
      %482 = vst [vmem:[%s177 + $0xd8] sm:$0xff] %v432
      %483 = vst [vmem:[%s177 + $0xe0] sm:$0xff] %v437
      %484 = vst [vmem:[%s177 + $0xe8] sm:$0xff] %v442
      %485 = vst [vmem:[%s177 + $0xf0] sm:$0xff] %v447
      %486 = vst [vmem:[%s177 + $0xf8] sm:$0xff] %v452
      %v487 = vadd.f32 %v297, %v302
      %v488 = vadd.f32 %v487, %v307
      %v489 = vadd.f32 %v488, %v312
      %v490 = vadd.f32 %v489, %v317
      %v491 = vadd.f32 %v490, %v322
      %v492 = vadd.f32 %v491, %v327
      %v493 = vadd.f32 %v492, %v332
      %v494 = vadd.f32 %v493, %v337
      %v495 = vadd.f32 %v494, %v342
      %v496 = vadd.f32 %v495, %v347
      %v497 = vadd.f32 %v496, %v352
      %v498 = vadd.f32 %v497, %v357
      %v499 = vadd.f32 %v498, %v362
      %v500 = vadd.f32 %v499, %v367
      %v501 = vadd.f32 %v500, %v372
      %v502 = vadd.f32 %v501, %v377
      %v503 = vadd.f32 %v502, %v382
      %v504 = vadd.f32 %v503, %v387
      %v505 = vadd.f32 %v504, %v392
      %v506 = vadd.f32 %v505, %v397
      %v507 = vadd.f32 %v506, %v402
      %v508 = vadd.f32 %v507, %v407
      %v509 = vadd.f32 %v508, %v412
      %v510 = vadd.f32 %v509, %v417
      %v511 = vadd.f32 %v510, %v422
      %v512 = vadd.f32 %v511, %v427
      %v513 = vadd.f32 %v512, %v432
      %v514 = vadd.f32 %v513, %v437
      %v515 = vadd.f32 %v514, %v442
      %v516 = vadd.f32 %v515, %v447
      %v517 = vadd.f32 %v516, %v452
      %v518 = vrot.slane %v517, 4
      %v519 = vadd.f32 %v517, %v518
      %v520 = vrot.slane %v519, 2
      %v521 = vadd.f32 %v519, %v520
      %v522 = vrot.slane %v521, 1
      %v523 = vadd.f32 %v521, %v522
      %v524 = vmul.f32 %v297, %v297
      %v525 = vmul.f32 %v302, %v302
      %v526 = vmul.f32 %v307, %v307
      %v527 = vmul.f32 %v312, %v312
      %v528 = vmul.f32 %v317, %v317
      %v529 = vmul.f32 %v322, %v322
      %v530 = vmul.f32 %v327, %v327
      %v531 = vmul.f32 %v332, %v332
      %v532 = vmul.f32 %v337, %v337
      %v533 = vmul.f32 %v342, %v342
      %v534 = vmul.f32 %v347, %v347
      %v535 = vmul.f32 %v352, %v352
      %v536 = vmul.f32 %v357, %v357
      %v537 = vmul.f32 %v362, %v362
      %v538 = vmul.f32 %v367, %v367
      %v539 = vmul.f32 %v372, %v372
      %v540 = vmul.f32 %v377, %v377
      %v541 = vmul.f32 %v382, %v382
      %v542 = vmul.f32 %v387, %v387
      %v543 = vmul.f32 %v392, %v392
      %v544 = vmul.f32 %v397, %v397
      %v545 = vmul.f32 %v402, %v402
      %v546 = vmul.f32 %v407, %v407
      %v547 = vmul.f32 %v412, %v412
      %v548 = vmul.f32 %v417, %v417
      %v549 = vmul.f32 %v422, %v422
      %v550 = vmul.f32 %v427, %v427
      %v551 = vmul.f32 %v432, %v432
      %v552 = vmul.f32 %v437, %v437
      %v553 = vmul.f32 %v442, %v442
      %v554 = vmul.f32 %v447, %v447
      %v555 = vmul.f32 %v452, %v452
      %v556 = vadd.f32 %v524, %v525
      %v557 = vadd.f32 %v556, %v526
      %v558 = vadd.f32 %v557, %v527
      %v559 = vadd.f32 %v558, %v528
      %v560 = vadd.f32 %v559, %v529
      %v561 = vadd.f32 %v560, %v530
      %v562 = vadd.f32 %v561, %v531
      %v563 = vadd.f32 %v562, %v532
      %v564 = vadd.f32 %v563, %v533
      %v565 = vadd.f32 %v564, %v534
      %v566 = vadd.f32 %v565, %v535
      %v567 = vadd.f32 %v566, %v536
      %v568 = vadd.f32 %v567, %v537
      %v569 = vadd.f32 %v568, %v538
      %v570 = vadd.f32 %v569, %v539
      %v571 = vadd.f32 %v570, %v540
      %v572 = vadd.f32 %v571, %v541
      %v573 = vadd.f32 %v572, %v542
      %v574 = vadd.f32 %v573, %v543
      %v575 = vadd.f32 %v574, %v544
      %v576 = vadd.f32 %v575, %v545
      %v577 = vadd.f32 %v576, %v546
      %v578 = vadd.f32 %v577, %v547
      %v579 = vadd.f32 %v578, %v548
      %v580 = vadd.f32 %v579, %v549
      %v581 = vadd.f32 %v580, %v550
      %v582 = vadd.f32 %v581, %v551
      %v583 = vadd.f32 %v582, %v552
      %v584 = vadd.f32 %v583, %v553
      %v585 = vadd.f32 %v584, %v554
      %v586 = vadd.f32 %v585, %v555
      %v587 = vrot.slane %v586, 4
      %v588 = vadd.f32 %v586, %v587
      %v589 = vrot.slane %v588, 2
      %v590 = vadd.f32 %v588, %v589
      %v591 = vrot.slane %v590, 1
      %v592 = vadd.f32 %v590, %v591
      %vm593 = vcmask 1040384
      %v594 = vsel %vm593, %v523, %v592
      %595 = vst [vmem:[%s181] sm:$0x3] %v594
      %p596 = scmp.lt.s32.totalorder %s15, 1
      %s597 = scalar_select %p596, %s15, 1
      %s598 = smul.addr %s597, 32
      %s599 = smul.addr %s598, 8
      %s600 = scalar_lea.vmem %s2, %s599
      %p601 = scmp.lt.s32.totalorder %s15, 1
      %s602 = scalar_select %p601, %s15, 1
      %s603 = smul.addr %s602, 2
      %s604 = scalar_lea.vmem %s3, %s603
      // Predicated region
      $region29: #{bottleneck_forward.4} parent=27 // pred_check
        %p605 = pneg %p80
      $region30: #{bottleneck_forward.4} parent=27 // pred_check_branch
        %607 = sbr.rel (%p605) target = $region32
      $region31: #{bottleneck_forward.4} parent=27 // pred_region
        _
      $region32: #{bottleneck_forward.4} parent=27 // pred_fallthru
        _
      // Predicated region
      $region33: #{bottleneck_forward.4} parent=27 // pred_check
        %p608 = pneg %p106
      $region34: #{bottleneck_forward.4} parent=27 // pred_check_branch
        %610 = sbr.rel (%p608) target = $region36
      $region35: #{bottleneck_forward.4} parent=27 // pred_region
        _
      $region36: #{bottleneck_forward.4} parent=27 // pred_fallthru
        _
    $region28: #{bottleneck_forward.4} parent=5 // pred_fallthru
      _
    %p611 = scmp.le.s32.totalorder 2, %s10
    // Predicated region
    $region37: #{bottleneck_forward.4} parent=5 // pred_check
      %p612 = pneg %p611
    $region38: #{bottleneck_forward.4} parent=5 // pred_check_branch
      %614 = sbr.rel (%p612) target = $region40
    $region39: #{bottleneck_forward.4} parent=5 // pred_region
      %s615 = ssub.s32 %s10, 2
      // Predicated region
      $region41: #{bottleneck_forward.4} parent=39 // pred_check
        %p616 = pneg %p86
      $region42: #{bottleneck_forward.4} parent=39 // pred_check_branch
        %618 = sbr.rel (%p616) target = $region44
      $region43: #{bottleneck_forward.4} parent=39 // pred_region
        %p619 = scmp.lt.s32.totalorder %s16, 1
        %s620 = scalar_select %p619, %s16, 1
        %s621 = smul.addr %s620, 32
        %s622 = smul.addr %s621, 8
        %s623 = scalar_lea.vmem %s2, %s622
      $region44: #{bottleneck_forward.4} parent=39 // pred_fallthru
        _
      // Predicated region
      $region45: #{bottleneck_forward.4} parent=39 // pred_check
        %p624 = pneg %p112
      $region46: #{bottleneck_forward.4} parent=39 // pred_check_branch
        %626 = sbr.rel (%p624) target = $region48
      $region47: #{bottleneck_forward.4} parent=39 // pred_region
        %p627 = scmp.lt.s32.totalorder %s16, 1
        %s628 = scalar_select %p627, %s16, 1
        %s629 = smul.addr %s628, 2
        %s630 = scalar_lea.vmem %s3, %s629
      $region48: #{bottleneck_forward.4} parent=39 // pred_fallthru
        _
    $region40: #{bottleneck_forward.4} parent=5 // pred_fallthru
      _
  $region6: #{bottleneck_forward.4} parent=0 // loop_footer
    %s14 = sadd.s32 1, %s10
  $region7: #{bottleneck_forward.4} parent=0 // loop_footer_branch
    %9 = sbr.rel target = $region3
  $region8: #{bottleneck_forward.4} parent=0 // loop_exit
    _

// kernel: bottleneck_forward.6
$region0: #{bottleneck_forward.6}
  #allocation0 [shape = 'u32[]', space=smem, size = 0x4, offset = 0x4, fixed_abs, tag = 'smem constant byte address 0x4 - core index']
  #allocation1 [shape = 'u32[144,128]{1,0:T(1,128)}', space=vmem, size = 0x12000, scoped, tag = 'internal scratch']
  %s0 = inlined_call_operand.vmem [shape: f32[2,256,128], index: 0, kind: input, shape index: {}]
  %s1 = inlined_call_operand.vmem [shape: f32[1,128], index: 1, kind: input, shape index: {}]
  %s2 = inlined_call_operand.vmem [shape: f32[1,128], index: 2, kind: input, shape index: {}]
  %s3 = inlined_call_operand.vmem [shape: f32[128,128], index: 3, kind: input, shape index: {}]
  %s4 = inlined_call_operand.vmem [shape: f32[2,256,128], index: 4, kind: output, shape index: {0}]
  %s5 = inlined_call_operand.vmem [shape: f32[2,2,128], index: 5, kind: output, shape index: {1}]
  %6 = xla_tuple %s4, %s5
  %s7 = sld [smem:[#allocation0]]
  $region57: #{bottleneck_forward.6} parent=0
    _
  %s9 = ssub.s32 1, %s7
  %s10 = scalar_select 0, %s9, %s7
  loop: start=0, step=1, limit=4
  $region2: #{bottleneck_forward.6} parent=0 // loop_pre_header
    _
  $region3: #{bottleneck_forward.6} parent=0 // loop_header
    %s12 = sphi 0, %s16
    %p13 = scmp.ge.s32.totalorder %s12, 4
    %s22 = sphi 0, %s24
    %s25 = sphi 0, %s22
    %s26 = sphi 0, %s25
    %s42 = sphi 0, %s26
    %s46 = sphi 0, %s46
    %s48 = sphi 0, %s46
    %s49 = sphi 0, %s48
    %s63 = sphi 0, %s49
    %s67 = sphi 0, %s67
    %s69 = sphi 0, %s67
    %s70 = sphi 0, %s69
    %s84 = sphi 0, %s70
    %s88 = sphi 0, %s88
    %s90 = sphi 0, %s88
    %s91 = sphi 0, %s90
    %s105 = sphi 0, %s91
    %s111 = sphi 0, %s113
    %s114 = sphi 0, %s111
    %s115 = sphi 0, %s114
    %s131 = sphi 0, %s115
    %s137 = sphi 0, %s139
    %s140 = sphi 0, %s137
    %s141 = sphi 0, %s140
    %s157 = sphi 0, %s141
  $region4: #{bottleneck_forward.6} parent=0 // loop_header_branch
    %15 = sbr.rel (%p13) target = $region8
  $region5: #{bottleneck_forward.6} parent=0 // loop_body
    %s17 = ssub.s32 %s12, 1
    %s18 = ssub.s32 %s12, 2
    %s19 = sadd.s32 %s12, 1
    %s20 = ssub.s32 %s12, %s19
    %p21 = scmp.eq.s32.totalorder %s20, 0
    %s23 = sadd.s32 %s22, 1
    %s24 = scalar_select %p21, %s22, %s23
    %p27 = pneg %p21
    %p28 = scmp.eq.s32.totalorder %s12, 1
    %p29 = por %p27, %p28
    %p30 = scmp.ne.s32.totalorder %s22, %s25
    %p31 = scmp.eq.s32.totalorder %s12, 0
    %p32 = por %p30, %p31
    %p33 = scmp.ne.s32.totalorder %s22, %s25
    %p34 = scmp.eq.s32.totalorder %s17, 1
    %p35 = por %p33, %p34
    %p36 = scmp.ne.s32.totalorder %s25, %s26
    %p37 = scmp.eq.s32.totalorder %s17, 0
    %p38 = por %p36, %p37
    %p39 = scmp.ne.s32.totalorder %s25, %s26
    %p40 = scmp.eq.s32.totalorder %s18, 1
    %p41 = por %p39, %p40
    %p43 = scmp.ne.s32.totalorder %s26, %s42
    %p44 = scmp.eq.s32.totalorder %s18, 0
    %p45 = por %p43, %p44
    %s47 = sadd.s32 %s46, 1
    %p50 = scmp.eq.s32.totalorder %s12, 1
    %p51 = scmp.ne.s32.totalorder %s46, %s48
    %p52 = scmp.eq.s32.totalorder %s12, 0
    %p53 = por %p51, %p52
    %p54 = scmp.ne.s32.totalorder %s46, %s48
    %p55 = scmp.eq.s32.totalorder %s17, 1
    %p56 = por %p54, %p55
    %p57 = scmp.ne.s32.totalorder %s48, %s49
    %p58 = scmp.eq.s32.totalorder %s17, 0
    %p59 = por %p57, %p58
    %p60 = scmp.ne.s32.totalorder %s48, %s49
    %p61 = scmp.eq.s32.totalorder %s18, 1
    %p62 = por %p60, %p61
    %p64 = scmp.ne.s32.totalorder %s49, %s63
    %p65 = scmp.eq.s32.totalorder %s18, 0
    %p66 = por %p64, %p65
    %s68 = sadd.s32 %s67, 1
    %p71 = scmp.eq.s32.totalorder %s12, 1
    %p72 = scmp.ne.s32.totalorder %s67, %s69
    %p73 = scmp.eq.s32.totalorder %s12, 0
    %p74 = por %p72, %p73
    %p75 = scmp.ne.s32.totalorder %s67, %s69
    %p76 = scmp.eq.s32.totalorder %s17, 1
    %p77 = por %p75, %p76
    %p78 = scmp.ne.s32.totalorder %s69, %s70
    %p79 = scmp.eq.s32.totalorder %s17, 0
    %p80 = por %p78, %p79
    %p81 = scmp.ne.s32.totalorder %s69, %s70
    %p82 = scmp.eq.s32.totalorder %s18, 1
    %p83 = por %p81, %p82
    %p85 = scmp.ne.s32.totalorder %s70, %s84
    %p86 = scmp.eq.s32.totalorder %s18, 0
    %p87 = por %p85, %p86
    %s89 = sadd.s32 %s88, 1
    %p92 = scmp.eq.s32.totalorder %s12, 1
    %p93 = scmp.ne.s32.totalorder %s88, %s90
    %p94 = scmp.eq.s32.totalorder %s12, 0
    %p95 = por %p93, %p94
    %p96 = scmp.ne.s32.totalorder %s88, %s90
    %p97 = scmp.eq.s32.totalorder %s17, 1
    %p98 = por %p96, %p97
    %p99 = scmp.ne.s32.totalorder %s90, %s91
    %p100 = scmp.eq.s32.totalorder %s17, 0
    %p101 = por %p99, %p100
    %p102 = scmp.ne.s32.totalorder %s90, %s91
    %p103 = scmp.eq.s32.totalorder %s18, 1
    %p104 = por %p102, %p103
    %p106 = scmp.ne.s32.totalorder %s91, %s105
    %p107 = scmp.eq.s32.totalorder %s18, 0
    %p108 = por %p106, %p107
    %s109 = ssub.s32 %s12, %s19
    %p110 = scmp.eq.s32.totalorder %s109, 0
    %s112 = sadd.s32 %s111, 1
    %s113 = scalar_select %p110, %s111, %s112
    %p116 = pneg %p110
    %p117 = scmp.eq.s32.totalorder %s12, 1
    %p118 = por %p116, %p117
    %p119 = scmp.ne.s32.totalorder %s111, %s114
    %p120 = scmp.eq.s32.totalorder %s12, 0
    %p121 = por %p119, %p120
    %p122 = scmp.ne.s32.totalorder %s111, %s114
    %p123 = scmp.eq.s32.totalorder %s17, 1
    %p124 = por %p122, %p123
    %p125 = scmp.ne.s32.totalorder %s114, %s115
    %p126 = scmp.eq.s32.totalorder %s17, 0
    %p127 = por %p125, %p126
    %p128 = scmp.ne.s32.totalorder %s114, %s115
    %p129 = scmp.eq.s32.totalorder %s18, 1
    %p130 = por %p128, %p129
    %p132 = scmp.ne.s32.totalorder %s115, %s131
    %p133 = scmp.eq.s32.totalorder %s18, 0
    %p134 = por %p132, %p133
    %s135 = ssub.s32 %s12, %s19
    %p136 = scmp.eq.s32.totalorder %s135, 0
    %s138 = sadd.s32 %s137, 1
    %s139 = scalar_select %p136, %s137, %s138
    %p142 = pneg %p136
    %p143 = scmp.eq.s32.totalorder %s12, 1
    %p144 = por %p142, %p143
    %p145 = scmp.ne.s32.totalorder %s137, %s140
    %p146 = scmp.eq.s32.totalorder %s12, 0
    %p147 = por %p145, %p146
    %p148 = scmp.ne.s32.totalorder %s137, %s140
    %p149 = scmp.eq.s32.totalorder %s17, 1
    %p150 = por %p148, %p149
    %p151 = scmp.ne.s32.totalorder %s140, %s141
    %p152 = scmp.eq.s32.totalorder %s17, 0
    %p153 = por %p151, %p152
    %p154 = scmp.ne.s32.totalorder %s140, %s141
    %p155 = scmp.eq.s32.totalorder %s18, 1
    %p156 = por %p154, %p155
    %p158 = scmp.ne.s32.totalorder %s141, %s157
    %p159 = scmp.eq.s32.totalorder %s18, 0
    %p160 = por %p158, %p159
    %p161 = scmp.le.s32.totalorder 1, %s12
    %p162 = scmp.lt.s32.totalorder %s12, 3
    %p163 = pnand %p161, %p162
    %p164 = pneg %p163
    // Predicated region
    $region9: #{bottleneck_forward.6} parent=5 // pred_check
      _
    $region10: #{bottleneck_forward.6} parent=5 // pred_check_branch
      %166 = sbr.rel (%p163) target = $region12
    $region11: #{bottleneck_forward.6} parent=5 // pred_region
      %s167 = ssub.s32 %s12, 1
      // Predicated region
      $region13: #{bottleneck_forward.6} parent=11 // pred_check
        %p168 = pneg %p59
      $region14: #{bottleneck_forward.6} parent=11 // pred_check_branch
        %170 = sbr.rel (%p168) target = $region16
      $region15: #{bottleneck_forward.6} parent=11 // pred_region
        _
      $region16: #{bottleneck_forward.6} parent=11 // pred_fallthru
        _
      // Predicated region
      $region17: #{bottleneck_forward.6} parent=11 // pred_check
        %p171 = pneg %p80
      $region18: #{bottleneck_forward.6} parent=11 // pred_check_branch
        %173 = sbr.rel (%p171) target = $region20
      $region19: #{bottleneck_forward.6} parent=11 // pred_region
        _
      $region20: #{bottleneck_forward.6} parent=11 // pred_fallthru
        _
      // Predicated region
      $region21: #{bottleneck_forward.6} parent=11 // pred_check
        %p174 = pneg %p101
      $region22: #{bottleneck_forward.6} parent=11 // pred_check_branch
        %176 = sbr.rel (%p174) target = $region24
      $region23: #{bottleneck_forward.6} parent=11 // pred_region
        _
      $region24: #{bottleneck_forward.6} parent=11 // pred_fallthru
        _
    $region12: #{bottleneck_forward.6} parent=5 // pred_fallthru
      _
    %p177 = scmp.lt.s32.totalorder %s12, 2
    // Predicated region
    $region25: #{bottleneck_forward.6} parent=5 // pred_check
      %p178 = pneg %p177
    $region26: #{bottleneck_forward.6} parent=5 // pred_check_branch
      %180 = sbr.rel (%p178) target = $region28
    $region27: #{bottleneck_forward.6} parent=5 // pred_region
      // Predicated region
      $region29: #{bottleneck_forward.6} parent=27 // pred_check
        %p181 = pneg %p32
      $region30: #{bottleneck_forward.6} parent=27 // pred_check_branch
        %183 = sbr.rel (%p181) target = $region32
      $region31: #{bottleneck_forward.6} parent=27 // pred_region
        %p184 = scmp.lt.s32.totalorder %s12, 1
        %s185 = scalar_select %p184, %s12, 1
        %s186 = smul.addr %s185, 32
        %s187 = smul.addr %s186, 8
        %s188 = scalar_lea.vmem %s0, %s187
      $region32: #{bottleneck_forward.6} parent=27 // pred_fallthru
        _
    $region28: #{bottleneck_forward.6} parent=5 // pred_fallthru
      _
    %p189 = scmp.le.s32.totalorder 1, %s12
    %p190 = scmp.lt.s32.totalorder %s12, 3
    %p191 = pnand %p189, %p190
    %p192 = pneg %p191
    // Predicated region
    $region33: #{bottleneck_forward.6} parent=5 // pred_check
      _
    $region34: #{bottleneck_forward.6} parent=5 // pred_check_branch
      %194 = sbr.rel (%p191) target = $region36
    $region35: #{bottleneck_forward.6} parent=5 // pred_region
      %s195 = ssub.s32 %s12, 1
      %p196 = scmp.lt.s32.totalorder %s17, 1
      %s197 = scalar_select %p196, %s17, 1
      %s198 = smul.addr %s197, 32
      %s199 = smul.addr %s198, 8
      %s200 = scalar_lea.vmem %s0, %s199
      %p201 = pneg %p38
      %p202 = pneg %p35
      %p203 = pneg %p59
      %p204 = pneg %p56
      %p205 = pneg %p80
      %p206 = pneg %p77
      %p207 = pneg %p101
      %p208 = pneg %p98
      %p209 = pneg %p127
      %p210 = pneg %p124
      %p211 = scmp.lt.s32.totalorder %s17, 1
      %s212 = scalar_select %p211, %s17, 1
      %s213 = smul.addr %s212, 32
      %s214 = smul.addr %s213, 8
      %s215 = scalar_lea.vmem %s4, %s214
      %p216 = pneg %p153
      %p217 = pneg %p150
      %p218 = scmp.lt.s32.totalorder %s17, 1
      %s219 = scalar_select %p218, %s17, 1
      %s220 = smul.addr %s219, 2
      %s221 = scalar_lea.vmem %s5, %s220
      %p222 = scmp.lt.s32.totalorder %s17, 1
      %s223 = scalar_select %p222, %s17, 1
      %s224 = smul.addr %s223, 32
      %s225 = smul.addr %s224, 8
      %s226 = scalar_lea.vmem %s0, %s225
      %p227 = scmp.lt.s32.totalorder %s17, 1
      %s228 = scalar_select %p227, %s17, 1
      %s229 = smul.addr %s228, 32
      %s230 = smul.addr %s229, 8
      %s231 = scalar_lea.vmem %s4, %s230
      %p232 = scmp.lt.s32.totalorder %s17, 1
      %s233 = scalar_select %p232, %s17, 1
      %s234 = smul.addr %s233, 2
      %s235 = scalar_lea.vmem %s5, %s234
      %v236 = vld [vmem:[%s226] sm:$0xff]
      %v237 = vld [vmem:[%s226 + $0x8] sm:$0xff]
      %v238 = vld [vmem:[%s226 + $0x10] sm:$0xff]
      %v239 = vld [vmem:[%s226 + $0x18] sm:$0xff]
      %v240 = vld [vmem:[%s226 + $0x20] sm:$0xff]
      %v241 = vld [vmem:[%s226 + $0x28] sm:$0xff]
      %v242 = vld [vmem:[%s226 + $0x30] sm:$0xff]
      %v243 = vld [vmem:[%s226 + $0x38] sm:$0xff]
      %v244 = vld [vmem:[%s226 + $0x40] sm:$0xff]
      %v245 = vld [vmem:[%s226 + $0x48] sm:$0xff]
      %v246 = vld [vmem:[%s226 + $0x50] sm:$0xff]
      %v247 = vld [vmem:[%s226 + $0x58] sm:$0xff]
      %v248 = vld [vmem:[%s226 + $0x60] sm:$0xff]
      %v249 = vld [vmem:[%s226 + $0x68] sm:$0xff]
      %v250 = vld [vmem:[%s226 + $0x70] sm:$0xff]
      %v251 = vld [vmem:[%s226 + $0x78] sm:$0xff]
      %v252 = vld [vmem:[%s226 + $0x80] sm:$0xff]
      %v253 = vld [vmem:[%s226 + $0x88] sm:$0xff]
      %v254 = vld [vmem:[%s226 + $0x90] sm:$0xff]
      %v255 = vld [vmem:[%s226 + $0x98] sm:$0xff]
      %v256 = vld [vmem:[%s226 + $0xa0] sm:$0xff]
      %v257 = vld [vmem:[%s226 + $0xa8] sm:$0xff]
      %v258 = vld [vmem:[%s226 + $0xb0] sm:$0xff]
      %v259 = vld [vmem:[%s226 + $0xb8] sm:$0xff]
      %v260 = vld [vmem:[%s226 + $0xc0] sm:$0xff]
      %v261 = vld [vmem:[%s226 + $0xc8] sm:$0xff]
      %v262 = vld [vmem:[%s226 + $0xd0] sm:$0xff]
      %v263 = vld [vmem:[%s226 + $0xd8] sm:$0xff]
      %v264 = vld [vmem:[%s226 + $0xe0] sm:$0xff]
      %v265 = vld [vmem:[%s226 + $0xe8] sm:$0xff]
      %v266 = vld [vmem:[%s226 + $0xf0] sm:$0xff]
      %v267 = vld [vmem:[%s226 + $0xf8] sm:$0xff]
      %v268 = vld [vmem:[%s1] sm:$0x1]
      %v270 = vlaneseq
      %v271 = vshrl.u32 %v270, 7
      %v272 = vsub.s32 0, %v271
      %v273 = vrot.slane %v268, %v272
      %v275 = vmul.f32 %v236, %v273
      %v276 = vmul.f32 %v237, %v273
      %v277 = vmul.f32 %v238, %v273
      %v278 = vmul.f32 %v239, %v273
      %v279 = vmul.f32 %v240, %v273
      %v280 = vmul.f32 %v241, %v273
      %v281 = vmul.f32 %v242, %v273
      %v282 = vmul.f32 %v243, %v273
      %v283 = vmul.f32 %v244, %v273
      %v284 = vmul.f32 %v245, %v273
      %v285 = vmul.f32 %v246, %v273
      %v286 = vmul.f32 %v247, %v273
      %v287 = vmul.f32 %v248, %v273
      %v288 = vmul.f32 %v249, %v273
      %v289 = vmul.f32 %v250, %v273
      %v290 = vmul.f32 %v251, %v273
      %v291 = vmul.f32 %v252, %v273
      %v292 = vmul.f32 %v253, %v273
      %v293 = vmul.f32 %v254, %v273
      %v294 = vmul.f32 %v255, %v273
      %v295 = vmul.f32 %v256, %v273
      %v296 = vmul.f32 %v257, %v273
      %v297 = vmul.f32 %v258, %v273
      %v298 = vmul.f32 %v259, %v273
      %v299 = vmul.f32 %v260, %v273
      %v300 = vmul.f32 %v261, %v273
      %v301 = vmul.f32 %v262, %v273
      %v302 = vmul.f32 %v263, %v273
      %v303 = vmul.f32 %v264, %v273
      %v304 = vmul.f32 %v265, %v273
      %v305 = vmul.f32 %v266, %v273
      %v306 = vmul.f32 %v267, %v273
      %v307 = vld [vmem:[%s2] sm:$0x1]
      %v309 = vlaneseq
      %v310 = vshrl.u32 %v309, 7
      %v311 = vsub.s32 0, %v310
      %v312 = vrot.slane %v307, %v311
      %v314 = vadd.f32 %v275, %v312
      %v315 = vadd.f32 %v276, %v312
      %v316 = vadd.f32 %v277, %v312
      %v317 = vadd.f32 %v278, %v312
      %v318 = vadd.f32 %v279, %v312
      %v319 = vadd.f32 %v280, %v312
      %v320 = vadd.f32 %v281, %v312
      %v321 = vadd.f32 %v282, %v312
      %v322 = vadd.f32 %v283, %v312
      %v323 = vadd.f32 %v284, %v312
      %v324 = vadd.f32 %v285, %v312
      %v325 = vadd.f32 %v286, %v312
      %v326 = vadd.f32 %v287, %v312
      %v327 = vadd.f32 %v288, %v312
      %v328 = vadd.f32 %v289, %v312
      %v329 = vadd.f32 %v290, %v312
      %v330 = vadd.f32 %v291, %v312
      %v331 = vadd.f32 %v292, %v312
      %v332 = vadd.f32 %v293, %v312
      %v333 = vadd.f32 %v294, %v312
      %v334 = vadd.f32 %v295, %v312
      %v335 = vadd.f32 %v296, %v312
      %v336 = vadd.f32 %v297, %v312
      %v337 = vadd.f32 %v298, %v312
      %v338 = vadd.f32 %v299, %v312
      %v339 = vadd.f32 %v300, %v312
      %v340 = vadd.f32 %v301, %v312
      %v341 = vadd.f32 %v302, %v312
      %v342 = vadd.f32 %v303, %v312
      %v343 = vadd.f32 %v304, %v312
      %v344 = vadd.f32 %v305, %v312
      %v345 = vadd.f32 %v306, %v312
      %v346 = vmax.f32 %v314, 0.0
      %v347 = vmax.f32 %v315, 0.0
      %v348 = vmax.f32 %v316, 0.0
      %v349 = vmax.f32 %v317, 0.0
      %v350 = vmax.f32 %v318, 0.0
      %v351 = vmax.f32 %v319, 0.0
      %v352 = vmax.f32 %v320, 0.0
      %v353 = vmax.f32 %v321, 0.0
      %v354 = vmax.f32 %v322, 0.0
      %v355 = vmax.f32 %v323, 0.0
      %v356 = vmax.f32 %v324, 0.0
      %v357 = vmax.f32 %v325, 0.0
      %v358 = vmax.f32 %v326, 0.0
      %v359 = vmax.f32 %v327, 0.0
      %v360 = vmax.f32 %v328, 0.0
      %v361 = vmax.f32 %v329, 0.0
      %v362 = vmax.f32 %v330, 0.0
      %v363 = vmax.f32 %v331, 0.0
      %v364 = vmax.f32 %v332, 0.0
      %v365 = vmax.f32 %v333, 0.0
      %v366 = vmax.f32 %v334, 0.0
      %v367 = vmax.f32 %v335, 0.0
      %v368 = vmax.f32 %v336, 0.0
      %v369 = vmax.f32 %v337, 0.0
      %v370 = vmax.f32 %v338, 0.0
      %v371 = vmax.f32 %v339, 0.0
      %v372 = vmax.f32 %v340, 0.0
      %v373 = vmax.f32 %v341, 0.0
      %v374 = vmax.f32 %v342, 0.0
      %v375 = vmax.f32 %v343, 0.0
      %v376 = vmax.f32 %v344, 0.0
      %v377 = vmax.f32 %v345, 0.0
      %v378 = vld [vmem:[%s3] sm:$0xff]
      %v379 = vld [vmem:[%s3 + $0x8] sm:$0xff]
      %v380 = vld [vmem:[%s3 + $0x10] sm:$0xff]
      %v381 = vld [vmem:[%s3 + $0x18] sm:$0xff]
      %v382 = vld [vmem:[%s3 + $0x20] sm:$0xff]
      %v383 = vld [vmem:[%s3 + $0x28] sm:$0xff]
      %v384 = vld [vmem:[%s3 + $0x30] sm:$0xff]
      %v385 = vld [vmem:[%s3 + $0x38] sm:$0xff]
      %v386 = vld [vmem:[%s3 + $0x40] sm:$0xff]
      %v387 = vld [vmem:[%s3 + $0x48] sm:$0xff]
      %v388 = vld [vmem:[%s3 + $0x50] sm:$0xff]
      %v389 = vld [vmem:[%s3 + $0x58] sm:$0xff]
      %v390 = vld [vmem:[%s3 + $0x60] sm:$0xff]
      %v391 = vld [vmem:[%s3 + $0x68] sm:$0xff]
      %v392 = vld [vmem:[%s3 + $0x70] sm:$0xff]
      %v393 = vld [vmem:[%s3 + $0x78] sm:$0xff]
      %394 = vmatprep.subr.mxu0 0.0
      %395 = vmatpush1.msra.mxu0 %v393
      %396 = vmatprep.subr.mxu0 0.0
      %397 = vmatpush1.msra.mxu0 %v392
      %398 = vmatprep.subr.mxu0 0.0
      %399 = vmatpush1.msra.mxu0 %v391
      %400 = vmatprep.subr.mxu0 0.0
      %401 = vmatpush1.msra.mxu0 %v390
      %402 = vmatprep.subr.mxu0 0.0
      %403 = vmatpush1.msra.mxu0 %v389
      %404 = vmatprep.subr.mxu0 0.0
      %405 = vmatpush1.msra.mxu0 %v388
      %406 = vmatprep.subr.mxu0 0.0
      %407 = vmatpush1.msra.mxu0 %v387
      %408 = vmatprep.subr.mxu0 0.0
      %409 = vmatpush1.msra.mxu0 %v386
      %410 = vmatprep.subr.mxu0 0.0
      %411 = vmatpush1.msra.mxu0 %v385
      %412 = vmatprep.subr.mxu0 0.0
      %413 = vmatpush1.msra.mxu0 %v384
      %414 = vmatprep.subr.mxu0 0.0
      %415 = vmatpush1.msra.mxu0 %v383
      %416 = vmatprep.subr.mxu0 0.0
      %417 = vmatpush1.msra.mxu0 %v382
      %418 = vmatprep.subr.mxu0 0.0
      %419 = vmatpush1.msra.mxu0 %v381
      %420 = vmatprep.subr.mxu0 0.0
      %421 = vmatpush1.msra.mxu0 %v380
      %422 = vmatprep.subr.mxu0 0.0
      %423 = vmatpush1.msra.mxu0 %v379
      %424 = vmatprep.subr.mxu0 0.0
      %425 = vmatpush1.msra.mxu0 %v378
      %426 = vmatprep.subr.mxu0 0.0
      %427 = vmatpush2.msra.mxu0 0.0
      %428 = vmatprep.subr.mxu0 0.0
      %429 = vmatpush2.msra.mxu0 0.0
      %430 = vmatprep.subr.mxu0 0.0
      %431 = vmatpush2.msra.mxu0 0.0
      %432 = vmatprep.subr.mxu0 0.0
      %433 = vmatpush2.msra.mxu0 0.0
      %434 = vmatprep.subr.mxu0 0.0
      %435 = vmatpush2.msra.mxu0 0.0
      %436 = vmatprep.subr.mxu0 0.0
      %437 = vmatpush2.msra.mxu0 0.0
      %438 = vmatprep.subr.mxu0 0.0
      %439 = vmatpush2.msra.mxu0 0.0
      %440 = vmatprep.subr.mxu0 0.0
      %441 = vmatpush2.msra.mxu0 0.0
      %442 = vmatprep.subr.mxu0 0.0
      %443 = vmatpush2.msra.mxu0 0.0
      %444 = vmatprep.subr.mxu0 0.0
      %445 = vmatpush2.msra.mxu0 0.0
      %446 = vmatprep.subr.mxu0 0.0
      %447 = vmatpush2.msra.mxu0 0.0
      %448 = vmatprep.subr.mxu0 0.0
      %449 = vmatpush2.msra.mxu0 0.0
      %450 = vmatprep.subr.mxu0 0.0
      %451 = vmatpush2.msra.mxu0 0.0
      %452 = vmatprep.subr.mxu0 0.0
      %453 = vmatpush2.msra.mxu0 0.0
      %454 = vmatprep.subr.mxu0 0.0
      %455 = vmatpush2.msra.mxu0 0.0
      %456 = vmatprep.subr.mxu0 0.0
      %457 = vmatpush2.msra.mxu0 0.0
      %458 = vmatprep.mubr.f32.mxu0 0.0
      %459 = vmatmul.mubr.f32.gmra.mxu0 %v346
      %v460 = vpop.f32.mrf.mxu0
      %v461 = vadd.f32 0.0, %v460
      %v462 = vpop.f32.mrf.mxu0
      %463 = vmatprep.mubr.f32.mxu0 0.0
      %464 = vmatmul.mubr.f32.gmra.mxu0 %v347
      %v465 = vpop.f32.mrf.mxu0
      %v466 = vadd.f32 0.0, %v465
      %v467 = vpop.f32.mrf.mxu0
      %468 = vmatprep.mubr.f32.mxu0 0.0
      %469 = vmatmul.mubr.f32.gmra.mxu0 %v348
      %v470 = vpop.f32.mrf.mxu0
      %v471 = vadd.f32 0.0, %v470
      %v472 = vpop.f32.mrf.mxu0
      %473 = vmatprep.mubr.f32.mxu0 0.0
      %474 = vmatmul.mubr.f32.gmra.mxu0 %v349
      %v475 = vpop.f32.mrf.mxu0
      %v476 = vadd.f32 0.0, %v475
      %v477 = vpop.f32.mrf.mxu0
      %478 = vmatprep.mubr.f32.mxu0 0.0
      %479 = vmatmul.mubr.f32.gmra.mxu0 %v350
      %v480 = vpop.f32.mrf.mxu0
      %v481 = vadd.f32 0.0, %v480
      %v482 = vpop.f32.mrf.mxu0
      %483 = vmatprep.mubr.f32.mxu0 0.0
      %484 = vmatmul.mubr.f32.gmra.mxu0 %v351
      %v485 = vpop.f32.mrf.mxu0
      %v486 = vadd.f32 0.0, %v485
      %v487 = vpop.f32.mrf.mxu0
      %488 = vmatprep.mubr.f32.mxu0 0.0
      %489 = vmatmul.mubr.f32.gmra.mxu0 %v352
      %v490 = vpop.f32.mrf.mxu0
      %v491 = vadd.f32 0.0, %v490
      %v492 = vpop.f32.mrf.mxu0
      %493 = vmatprep.mubr.f32.mxu0 0.0
      %494 = vmatmul.mubr.f32.gmra.mxu0 %v353
      %v495 = vpop.f32.mrf.mxu0
      %v496 = vadd.f32 0.0, %v495
      %v497 = vpop.f32.mrf.mxu0
      %498 = vmatprep.mubr.f32.mxu0 0.0
      %499 = vmatmul.mubr.f32.gmra.mxu0 %v354
      %v500 = vpop.f32.mrf.mxu0
      %v501 = vadd.f32 0.0, %v500
      %v502 = vpop.f32.mrf.mxu0
      %503 = vmatprep.mubr.f32.mxu0 0.0
      %504 = vmatmul.mubr.f32.gmra.mxu0 %v355
      %v505 = vpop.f32.mrf.mxu0
      %v506 = vadd.f32 0.0, %v505
      %v507 = vpop.f32.mrf.mxu0
      %508 = vmatprep.mubr.f32.mxu0 0.0
      %509 = vmatmul.mubr.f32.gmra.mxu0 %v356
      %v510 = vpop.f32.mrf.mxu0
      %v511 = vadd.f32 0.0, %v510
      %v512 = vpop.f32.mrf.mxu0
      %513 = vmatprep.mubr.f32.mxu0 0.0
      %514 = vmatmul.mubr.f32.gmra.mxu0 %v357
      %v515 = vpop.f32.mrf.mxu0
      %v516 = vadd.f32 0.0, %v515
      %v517 = vpop.f32.mrf.mxu0
      %518 = vmatprep.mubr.f32.mxu0 0.0
      %519 = vmatmul.mubr.f32.gmra.mxu0 %v358
      %v520 = vpop.f32.mrf.mxu0
      %v521 = vadd.f32 0.0, %v520
      %v522 = vpop.f32.mrf.mxu0
      %523 = vmatprep.mubr.f32.mxu0 0.0
      %524 = vmatmul.mubr.f32.gmra.mxu0 %v359
      %v525 = vpop.f32.mrf.mxu0
      %v526 = vadd.f32 0.0, %v525
      %v527 = vpop.f32.mrf.mxu0
      %528 = vmatprep.mubr.f32.mxu0 0.0
      %529 = vmatmul.mubr.f32.gmra.mxu0 %v360
      %v530 = vpop.f32.mrf.mxu0
      %v531 = vadd.f32 0.0, %v530
      %v532 = vpop.f32.mrf.mxu0
      %533 = vmatprep.mubr.f32.mxu0 0.0
      %534 = vmatmul.mubr.f32.gmra.mxu0 %v361
      %v535 = vpop.f32.mrf.mxu0
      %v536 = vadd.f32 0.0, %v535
      %v537 = vpop.f32.mrf.mxu0
      %538 = vmatprep.mubr.f32.mxu0 0.0
      %539 = vmatmul.mubr.f32.gmra.mxu0 %v362
      %v540 = vpop.f32.mrf.mxu0
      %v541 = vadd.f32 0.0, %v540
      %v542 = vpop.f32.mrf.mxu0
      %543 = vmatprep.mubr.f32.mxu0 0.0
      %544 = vmatmul.mubr.f32.gmra.mxu0 %v363
      %v545 = vpop.f32.mrf.mxu0
      %v546 = vadd.f32 0.0, %v545
      %v547 = vpop.f32.mrf.mxu0
      %548 = vmatprep.mubr.f32.mxu0 0.0
      %549 = vmatmul.mubr.f32.gmra.mxu0 %v364
      %v550 = vpop.f32.mrf.mxu0
      %v551 = vadd.f32 0.0, %v550
      %v552 = vpop.f32.mrf.mxu0
      %553 = vmatprep.mubr.f32.mxu0 0.0
      %554 = vmatmul.mubr.f32.gmra.mxu0 %v365
      %v555 = vpop.f32.mrf.mxu0
      %v556 = vadd.f32 0.0, %v555
      %v557 = vpop.f32.mrf.mxu0
      %558 = vmatprep.mubr.f32.mxu0 0.0
      %559 = vmatmul.mubr.f32.gmra.mxu0 %v366
      %v560 = vpop.f32.mrf.mxu0
      %v561 = vadd.f32 0.0, %v560
      %v562 = vpop.f32.mrf.mxu0
      %563 = vmatprep.mubr.f32.mxu0 0.0
      %564 = vmatmul.mubr.f32.gmra.mxu0 %v367
      %v565 = vpop.f32.mrf.mxu0
      %v566 = vadd.f32 0.0, %v565
      %v567 = vpop.f32.mrf.mxu0
      %568 = vmatprep.mubr.f32.mxu0 0.0
      %569 = vmatmul.mubr.f32.gmra.mxu0 %v368
      %v570 = vpop.f32.mrf.mxu0
      %v571 = vadd.f32 0.0, %v570
      %v572 = vpop.f32.mrf.mxu0
      %573 = vmatprep.mubr.f32.mxu0 0.0
      %574 = vmatmul.mubr.f32.gmra.mxu0 %v369
      %v575 = vpop.f32.mrf.mxu0
      %v576 = vadd.f32 0.0, %v575
      %v577 = vpop.f32.mrf.mxu0
      %578 = vmatprep.mubr.f32.mxu0 0.0
      %579 = vmatmul.mubr.f32.gmra.mxu0 %v370
      %v580 = vpop.f32.mrf.mxu0
      %v581 = vadd.f32 0.0, %v580
      %v582 = vpop.f32.mrf.mxu0
      %583 = vmatprep.mubr.f32.mxu0 0.0
      %584 = vmatmul.mubr.f32.gmra.mxu0 %v371
      %v585 = vpop.f32.mrf.mxu0
      %v586 = vadd.f32 0.0, %v585
      %v587 = vpop.f32.mrf.mxu0
      %588 = vmatprep.mubr.f32.mxu0 0.0
      %589 = vmatmul.mubr.f32.gmra.mxu0 %v372
      %v590 = vpop.f32.mrf.mxu0
      %v591 = vadd.f32 0.0, %v590
      %v592 = vpop.f32.mrf.mxu0
      %593 = vmatprep.mubr.f32.mxu0 0.0
      %594 = vmatmul.mubr.f32.gmra.mxu0 %v373
      %v595 = vpop.f32.mrf.mxu0
      %v596 = vadd.f32 0.0, %v595
      %v597 = vpop.f32.mrf.mxu0
      %598 = vmatprep.mubr.f32.mxu0 0.0
      %599 = vmatmul.mubr.f32.gmra.mxu0 %v374
      %v600 = vpop.f32.mrf.mxu0
      %v601 = vadd.f32 0.0, %v600
      %v602 = vpop.f32.mrf.mxu0
      %603 = vmatprep.mubr.f32.mxu0 0.0
      %604 = vmatmul.mubr.f32.gmra.mxu0 %v375
      %v605 = vpop.f32.mrf.mxu0
      %v606 = vadd.f32 0.0, %v605
      %v607 = vpop.f32.mrf.mxu0
      %608 = vmatprep.mubr.f32.mxu0 0.0
      %609 = vmatmul.mubr.f32.gmra.mxu0 %v376
      %v610 = vpop.f32.mrf.mxu0
      %v611 = vadd.f32 0.0, %v610
      %v612 = vpop.f32.mrf.mxu0
      %613 = vmatprep.mubr.f32.mxu0 0.0
      %614 = vmatmul.mubr.f32.gmra.mxu0 %v377
      %v615 = vpop.f32.mrf.mxu0
      %v616 = vadd.f32 0.0, %v615
      %v617 = vpop.f32.mrf.mxu0
      %618 = vdwg.mxu0
      %619 = vst [vmem:[%s231] sm:$0xff] %v461
      %620 = vst [vmem:[%s231 + $0x8] sm:$0xff] %v466
      %621 = vst [vmem:[%s231 + $0x10] sm:$0xff] %v471
      %622 = vst [vmem:[%s231 + $0x18] sm:$0xff] %v476
      %623 = vst [vmem:[%s231 + $0x20] sm:$0xff] %v481
      %624 = vst [vmem:[%s231 + $0x28] sm:$0xff] %v486
      %625 = vst [vmem:[%s231 + $0x30] sm:$0xff] %v491
      %626 = vst [vmem:[%s231 + $0x38] sm:$0xff] %v496
      %627 = vst [vmem:[%s231 + $0x40] sm:$0xff] %v501
      %628 = vst [vmem:[%s231 + $0x48] sm:$0xff] %v506
      %629 = vst [vmem:[%s231 + $0x50] sm:$0xff] %v511
      %630 = vst [vmem:[%s231 + $0x58] sm:$0xff] %v516
      %631 = vst [vmem:[%s231 + $0x60] sm:$0xff] %v521
      %632 = vst [vmem:[%s231 + $0x68] sm:$0xff] %v526
      %633 = vst [vmem:[%s231 + $0x70] sm:$0xff] %v531
      %634 = vst [vmem:[%s231 + $0x78] sm:$0xff] %v536
      %635 = vst [vmem:[%s231 + $0x80] sm:$0xff] %v541
      %636 = vst [vmem:[%s231 + $0x88] sm:$0xff] %v546
      %637 = vst [vmem:[%s231 + $0x90] sm:$0xff] %v551
      %638 = vst [vmem:[%s231 + $0x98] sm:$0xff] %v556
      %639 = vst [vmem:[%s231 + $0xa0] sm:$0xff] %v561
      %640 = vst [vmem:[%s231 + $0xa8] sm:$0xff] %v566
      %641 = vst [vmem:[%s231 + $0xb0] sm:$0xff] %v571
      %642 = vst [vmem:[%s231 + $0xb8] sm:$0xff] %v576
      %643 = vst [vmem:[%s231 + $0xc0] sm:$0xff] %v581
      %644 = vst [vmem:[%s231 + $0xc8] sm:$0xff] %v586
      %645 = vst [vmem:[%s231 + $0xd0] sm:$0xff] %v591
      %646 = vst [vmem:[%s231 + $0xd8] sm:$0xff] %v596
      %647 = vst [vmem:[%s231 + $0xe0] sm:$0xff] %v601
      %648 = vst [vmem:[%s231 + $0xe8] sm:$0xff] %v606
      %649 = vst [vmem:[%s231 + $0xf0] sm:$0xff] %v611
      %650 = vst [vmem:[%s231 + $0xf8] sm:$0xff] %v616
      %v651 = vadd.f32 %v461, %v466
      %v652 = vadd.f32 %v651, %v471
      %v653 = vadd.f32 %v652, %v476
      %v654 = vadd.f32 %v653, %v481
      %v655 = vadd.f32 %v654, %v486
      %v656 = vadd.f32 %v655, %v491
      %v657 = vadd.f32 %v656, %v496
      %v658 = vadd.f32 %v657, %v501
      %v659 = vadd.f32 %v658, %v506
      %v660 = vadd.f32 %v659, %v511
      %v661 = vadd.f32 %v660, %v516
      %v662 = vadd.f32 %v661, %v521
      %v663 = vadd.f32 %v662, %v526
      %v664 = vadd.f32 %v663, %v531
      %v665 = vadd.f32 %v664, %v536
      %v666 = vadd.f32 %v665, %v541
      %v667 = vadd.f32 %v666, %v546
      %v668 = vadd.f32 %v667, %v551
      %v669 = vadd.f32 %v668, %v556
      %v670 = vadd.f32 %v669, %v561
      %v671 = vadd.f32 %v670, %v566
      %v672 = vadd.f32 %v671, %v571
      %v673 = vadd.f32 %v672, %v576
      %v674 = vadd.f32 %v673, %v581
      %v675 = vadd.f32 %v674, %v586
      %v676 = vadd.f32 %v675, %v591
      %v677 = vadd.f32 %v676, %v596
      %v678 = vadd.f32 %v677, %v601
      %v679 = vadd.f32 %v678, %v606
      %v680 = vadd.f32 %v679, %v611
      %v681 = vadd.f32 %v680, %v616
      %v682 = vrot.slane %v681, 4
      %v683 = vadd.f32 %v681, %v682
      %v684 = vrot.slane %v683, 2
      %v685 = vadd.f32 %v683, %v684
      %v686 = vrot.slane %v685, 1
      %v687 = vadd.f32 %v685, %v686
      %v688 = vmul.f32 %v461, %v461
      %v689 = vmul.f32 %v466, %v466
      %v690 = vmul.f32 %v471, %v471
      %v691 = vmul.f32 %v476, %v476
      %v692 = vmul.f32 %v481, %v481
      %v693 = vmul.f32 %v486, %v486
      %v694 = vmul.f32 %v491, %v491
      %v695 = vmul.f32 %v496, %v496
      %v696 = vmul.f32 %v501, %v501
      %v697 = vmul.f32 %v506, %v506
      %v698 = vmul.f32 %v511, %v511
      %v699 = vmul.f32 %v516, %v516
      %v700 = vmul.f32 %v521, %v521
      %v701 = vmul.f32 %v526, %v526
      %v702 = vmul.f32 %v531, %v531
      %v703 = vmul.f32 %v536, %v536
      %v704 = vmul.f32 %v541, %v541
      %v705 = vmul.f32 %v546, %v546
      %v706 = vmul.f32 %v551, %v551
      %v707 = vmul.f32 %v556, %v556
      %v708 = vmul.f32 %v561, %v561
      %v709 = vmul.f32 %v566, %v566
      %v710 = vmul.f32 %v571, %v571
      %v711 = vmul.f32 %v576, %v576
      %v712 = vmul.f32 %v581, %v581
      %v713 = vmul.f32 %v586, %v586
      %v714 = vmul.f32 %v591, %v591
      %v715 = vmul.f32 %v596, %v596
      %v716 = vmul.f32 %v601, %v601
      %v717 = vmul.f32 %v606, %v606
      %v718 = vmul.f32 %v611, %v611
      %v719 = vmul.f32 %v616, %v616
      %v720 = vadd.f32 %v688, %v689
      %v721 = vadd.f32 %v720, %v690
      %v722 = vadd.f32 %v721, %v691
      %v723 = vadd.f32 %v722, %v692
      %v724 = vadd.f32 %v723, %v693
      %v725 = vadd.f32 %v724, %v694
      %v726 = vadd.f32 %v725, %v695
      %v727 = vadd.f32 %v726, %v696
      %v728 = vadd.f32 %v727, %v697
      %v729 = vadd.f32 %v728, %v698
      %v730 = vadd.f32 %v729, %v699
      %v731 = vadd.f32 %v730, %v700
      %v732 = vadd.f32 %v731, %v701
      %v733 = vadd.f32 %v732, %v702
      %v734 = vadd.f32 %v733, %v703
      %v735 = vadd.f32 %v734, %v704
      %v736 = vadd.f32 %v735, %v705
      %v737 = vadd.f32 %v736, %v706
      %v738 = vadd.f32 %v737, %v707
      %v739 = vadd.f32 %v738, %v708
      %v740 = vadd.f32 %v739, %v709
      %v741 = vadd.f32 %v740, %v710
      %v742 = vadd.f32 %v741, %v711
      %v743 = vadd.f32 %v742, %v712
      %v744 = vadd.f32 %v743, %v713
      %v745 = vadd.f32 %v744, %v714
      %v746 = vadd.f32 %v745, %v715
      %v747 = vadd.f32 %v746, %v716
      %v748 = vadd.f32 %v747, %v717
      %v749 = vadd.f32 %v748, %v718
      %v750 = vadd.f32 %v749, %v719
      %v751 = vrot.slane %v750, 4
      %v752 = vadd.f32 %v750, %v751
      %v753 = vrot.slane %v752, 2
      %v754 = vadd.f32 %v752, %v753
      %v755 = vrot.slane %v754, 1
      %v756 = vadd.f32 %v754, %v755
      %vm757 = vcmask 1040384
      %v758 = vsel %vm757, %v687, %v756
      %759 = vst [vmem:[%s235] sm:$0x3] %v758
      %p760 = scmp.lt.s32.totalorder %s17, 1
      %s761 = scalar_select %p760, %s17, 1
      %s762 = smul.addr %s761, 32
      %s763 = smul.addr %s762, 8
      %s764 = scalar_lea.vmem %s4, %s763
      %p765 = scmp.lt.s32.totalorder %s17, 1
      %s766 = scalar_select %p765, %s17, 1
      %s767 = smul.addr %s766, 2
      %s768 = scalar_lea.vmem %s5, %s767
      // Predicated region
      $region37: #{bottleneck_forward.6} parent=35 // pred_check
        %p769 = pneg %p124
      $region38: #{bottleneck_forward.6} parent=35 // pred_check_branch
        %771 = sbr.rel (%p769) target = $region40
      $region39: #{bottleneck_forward.6} parent=35 // pred_region
        _
      $region40: #{bottleneck_forward.6} parent=35 // pred_fallthru
        _
      // Predicated region
      $region41: #{bottleneck_forward.6} parent=35 // pred_check
        %p772 = pneg %p150
      $region42: #{bottleneck_forward.6} parent=35 // pred_check_branch
        %774 = sbr.rel (%p772) target = $region44
      $region43: #{bottleneck_forward.6} parent=35 // pred_region
        _
      $region44: #{bottleneck_forward.6} parent=35 // pred_fallthru
        _
    $region36: #{bottleneck_forward.6} parent=5 // pred_fallthru
      _
    %p775 = scmp.le.s32.totalorder 2, %s12
    // Predicated region
    $region45: #{bottleneck_forward.6} parent=5 // pred_check
      %p776 = pneg %p775
    $region46: #{bottleneck_forward.6} parent=5 // pred_check_branch
      %778 = sbr.rel (%p776) target = $region48
    $region47: #{bottleneck_forward.6} parent=5 // pred_region
      %s779 = ssub.s32 %s12, 2
      // Predicated region
      $region49: #{bottleneck_forward.6} parent=47 // pred_check
        %p780 = pneg %p130
      $region50: #{bottleneck_forward.6} parent=47 // pred_check_branch
        %782 = sbr.rel (%p780) target = $region52
      $region51: #{bottleneck_forward.6} parent=47 // pred_region
        %p783 = scmp.lt.s32.totalorder %s18, 1
        %s784 = scalar_select %p783, %s18, 1
        %s785 = smul.addr %s784, 32
        %s786 = smul.addr %s785, 8
        %s787 = scalar_lea.vmem %s4, %s786
      $region52: #{bottleneck_forward.6} parent=47 // pred_fallthru
        _
      // Predicated region
      $region53: #{bottleneck_forward.6} parent=47 // pred_check
        %p788 = pneg %p156
      $region54: #{bottleneck_forward.6} parent=47 // pred_check_branch
        %790 = sbr.rel (%p788) target = $region56
      $region55: #{bottleneck_forward.6} parent=47 // pred_region
        %p791 = scmp.lt.s32.totalorder %s18, 1
        %s792 = scalar_select %p791, %s18, 1
        %s793 = smul.addr %s792, 2
        %s794 = scalar_lea.vmem %s5, %s793
      $region56: #{bottleneck_forward.6} parent=47 // pred_fallthru
        _
    $region48: #{bottleneck_forward.6} parent=5 // pred_fallthru
      _
  $region6: #{bottleneck_forward.6} parent=0 // loop_footer
    %s16 = sadd.s32 1, %s12
  $region7: #{bottleneck_forward.6} parent=0 // loop_footer_branch
    %11 = sbr.rel target = $region3
  $region8: #{bottleneck_forward.6} parent=0 // loop_exit
    _

// kernel: bottleneck_forward.7
$region0: #{bottleneck_forward.7}
  #allocation0 [shape = 'u32[]', space=smem, size = 0x4, offset = 0x4, fixed_abs, tag = 'smem constant byte address 0x4 - core index']
  #allocation1 [shape = 'u32[144,128]{1,0:T(1,128)}', space=vmem, size = 0x12000, scoped, tag = 'internal scratch']
  %s0 = inlined_call_operand.vmem [shape: f32[2,256,128], index: 0, kind: input, shape index: {}]
  %s1 = inlined_call_operand.vmem [shape: f32[2,256,128], index: 1, kind: input, shape index: {}]
  %s2 = inlined_call_operand.vmem [shape: f32[1,128], index: 2, kind: input, shape index: {}]
  %s3 = inlined_call_operand.vmem [shape: f32[1,128], index: 3, kind: input, shape index: {}]
  %s4 = inlined_call_operand.vmem [shape: f32[2,256,128], index: 4, kind: output, shape index: {}]
  %s5 = sld [smem:[#allocation0]]
  $region49: #{bottleneck_forward.7} parent=0
    _
  %s7 = ssub.s32 1, %s5
  %s8 = scalar_select 0, %s7, %s5
  loop: start=0, step=1, limit=4
  $region2: #{bottleneck_forward.7} parent=0 // loop_pre_header
    _
  $region3: #{bottleneck_forward.7} parent=0 // loop_header
    %s10 = sphi 0, %s14
    %p11 = scmp.ge.s32.totalorder %s10, 4
    %s20 = sphi 0, %s22
    %s23 = sphi 0, %s20
    %s24 = sphi 0, %s23
    %s40 = sphi 0, %s24
    %s46 = sphi 0, %s48
    %s49 = sphi 0, %s46
    %s50 = sphi 0, %s49
    %s66 = sphi 0, %s50
    %s70 = sphi 0, %s70
    %s72 = sphi 0, %s70
    %s73 = sphi 0, %s72
    %s87 = sphi 0, %s73
    %s91 = sphi 0, %s91
    %s93 = sphi 0, %s91
    %s94 = sphi 0, %s93
    %s108 = sphi 0, %s94
    %s114 = sphi 0, %s116
    %s117 = sphi 0, %s114
    %s118 = sphi 0, %s117
    %s134 = sphi 0, %s118
  $region4: #{bottleneck_forward.7} parent=0 // loop_header_branch
    %13 = sbr.rel (%p11) target = $region8
  $region5: #{bottleneck_forward.7} parent=0 // loop_body
    %s15 = ssub.s32 %s10, 1
    %s16 = ssub.s32 %s10, 2
    %s17 = sadd.s32 %s10, 1
    %s18 = ssub.s32 %s10, %s17
    %p19 = scmp.eq.s32.totalorder %s18, 0
    %s21 = sadd.s32 %s20, 1
    %s22 = scalar_select %p19, %s20, %s21
    %p25 = pneg %p19
    %p26 = scmp.eq.s32.totalorder %s10, 1
    %p27 = por %p25, %p26
    %p28 = scmp.ne.s32.totalorder %s20, %s23
    %p29 = scmp.eq.s32.totalorder %s10, 0
    %p30 = por %p28, %p29
    %p31 = scmp.ne.s32.totalorder %s20, %s23
    %p32 = scmp.eq.s32.totalorder %s15, 1
    %p33 = por %p31, %p32
    %p34 = scmp.ne.s32.totalorder %s23, %s24
    %p35 = scmp.eq.s32.totalorder %s15, 0
    %p36 = por %p34, %p35
    %p37 = scmp.ne.s32.totalorder %s23, %s24
    %p38 = scmp.eq.s32.totalorder %s16, 1
    %p39 = por %p37, %p38
    %p41 = scmp.ne.s32.totalorder %s24, %s40
    %p42 = scmp.eq.s32.totalorder %s16, 0
    %p43 = por %p41, %p42
    %s44 = ssub.s32 %s10, %s17
    %p45 = scmp.eq.s32.totalorder %s44, 0
    %s47 = sadd.s32 %s46, 1
    %s48 = scalar_select %p45, %s46, %s47
    %p51 = pneg %p45
    %p52 = scmp.eq.s32.totalorder %s10, 1
    %p53 = por %p51, %p52
    %p54 = scmp.ne.s32.totalorder %s46, %s49
    %p55 = scmp.eq.s32.totalorder %s10, 0
    %p56 = por %p54, %p55
    %p57 = scmp.ne.s32.totalorder %s46, %s49
    %p58 = scmp.eq.s32.totalorder %s15, 1
    %p59 = por %p57, %p58
    %p60 = scmp.ne.s32.totalorder %s49, %s50
    %p61 = scmp.eq.s32.totalorder %s15, 0
    %p62 = por %p60, %p61
    %p63 = scmp.ne.s32.totalorder %s49, %s50
    %p64 = scmp.eq.s32.totalorder %s16, 1
    %p65 = por %p63, %p64
    %p67 = scmp.ne.s32.totalorder %s50, %s66
    %p68 = scmp.eq.s32.totalorder %s16, 0
    %p69 = por %p67, %p68
    %s71 = sadd.s32 %s70, 1
    %p74 = scmp.eq.s32.totalorder %s10, 1
    %p75 = scmp.ne.s32.totalorder %s70, %s72
    %p76 = scmp.eq.s32.totalorder %s10, 0
    %p77 = por %p75, %p76
    %p78 = scmp.ne.s32.totalorder %s70, %s72
    %p79 = scmp.eq.s32.totalorder %s15, 1
    %p80 = por %p78, %p79
    %p81 = scmp.ne.s32.totalorder %s72, %s73
    %p82 = scmp.eq.s32.totalorder %s15, 0
    %p83 = por %p81, %p82
    %p84 = scmp.ne.s32.totalorder %s72, %s73
    %p85 = scmp.eq.s32.totalorder %s16, 1
    %p86 = por %p84, %p85
    %p88 = scmp.ne.s32.totalorder %s73, %s87
    %p89 = scmp.eq.s32.totalorder %s16, 0
    %p90 = por %p88, %p89
    %s92 = sadd.s32 %s91, 1
    %p95 = scmp.eq.s32.totalorder %s10, 1
    %p96 = scmp.ne.s32.totalorder %s91, %s93
    %p97 = scmp.eq.s32.totalorder %s10, 0
    %p98 = por %p96, %p97
    %p99 = scmp.ne.s32.totalorder %s91, %s93
    %p100 = scmp.eq.s32.totalorder %s15, 1
    %p101 = por %p99, %p100
    %p102 = scmp.ne.s32.totalorder %s93, %s94
    %p103 = scmp.eq.s32.totalorder %s15, 0
    %p104 = por %p102, %p103
    %p105 = scmp.ne.s32.totalorder %s93, %s94
    %p106 = scmp.eq.s32.totalorder %s16, 1
    %p107 = por %p105, %p106
    %p109 = scmp.ne.s32.totalorder %s94, %s108
    %p110 = scmp.eq.s32.totalorder %s16, 0
    %p111 = por %p109, %p110
    %s112 = ssub.s32 %s10, %s17
    %p113 = scmp.eq.s32.totalorder %s112, 0
    %s115 = sadd.s32 %s114, 1
    %s116 = scalar_select %p113, %s114, %s115
    %p119 = pneg %p113
    %p120 = scmp.eq.s32.totalorder %s10, 1
    %p121 = por %p119, %p120
    %p122 = scmp.ne.s32.totalorder %s114, %s117
    %p123 = scmp.eq.s32.totalorder %s10, 0
    %p124 = por %p122, %p123
    %p125 = scmp.ne.s32.totalorder %s114, %s117
    %p126 = scmp.eq.s32.totalorder %s15, 1
    %p127 = por %p125, %p126
    %p128 = scmp.ne.s32.totalorder %s117, %s118
    %p129 = scmp.eq.s32.totalorder %s15, 0
    %p130 = por %p128, %p129
    %p131 = scmp.ne.s32.totalorder %s117, %s118
    %p132 = scmp.eq.s32.totalorder %s16, 1
    %p133 = por %p131, %p132
    %p135 = scmp.ne.s32.totalorder %s118, %s134
    %p136 = scmp.eq.s32.totalorder %s16, 0
    %p137 = por %p135, %p136
    %p138 = scmp.le.s32.totalorder 1, %s10
    %p139 = scmp.lt.s32.totalorder %s10, 3
    %p140 = pnand %p138, %p139
    %p141 = pneg %p140
    // Predicated region
    $region9: #{bottleneck_forward.7} parent=5 // pred_check
      _
    $region10: #{bottleneck_forward.7} parent=5 // pred_check_branch
      %143 = sbr.rel (%p140) target = $region12
    $region11: #{bottleneck_forward.7} parent=5 // pred_region
      %s144 = ssub.s32 %s10, 1
      // Predicated region
      $region13: #{bottleneck_forward.7} parent=11 // pred_check
        %p145 = pneg %p83
      $region14: #{bottleneck_forward.7} parent=11 // pred_check_branch
        %147 = sbr.rel (%p145) target = $region16
      $region15: #{bottleneck_forward.7} parent=11 // pred_region
        _
      $region16: #{bottleneck_forward.7} parent=11 // pred_fallthru
        _
      // Predicated region
      $region17: #{bottleneck_forward.7} parent=11 // pred_check
        %p148 = pneg %p104
      $region18: #{bottleneck_forward.7} parent=11 // pred_check_branch
        %150 = sbr.rel (%p148) target = $region20
      $region19: #{bottleneck_forward.7} parent=11 // pred_region
        _
      $region20: #{bottleneck_forward.7} parent=11 // pred_fallthru
        _
    $region12: #{bottleneck_forward.7} parent=5 // pred_fallthru
      _
    %p151 = scmp.lt.s32.totalorder %s10, 2
    // Predicated region
    $region21: #{bottleneck_forward.7} parent=5 // pred_check
      %p152 = pneg %p151
    $region22: #{bottleneck_forward.7} parent=5 // pred_check_branch
      %154 = sbr.rel (%p152) target = $region24
    $region23: #{bottleneck_forward.7} parent=5 // pred_region
      // Predicated region
      $region25: #{bottleneck_forward.7} parent=23 // pred_check
        %p155 = pneg %p30
      $region26: #{bottleneck_forward.7} parent=23 // pred_check_branch
        %157 = sbr.rel (%p155) target = $region28
      $region27: #{bottleneck_forward.7} parent=23 // pred_region
        %p158 = scmp.lt.s32.totalorder %s10, 1
        %s159 = scalar_select %p158, %s10, 1
        %s160 = smul.addr %s159, 32
        %s161 = smul.addr %s160, 8
        %s162 = scalar_lea.vmem %s0, %s161
      $region28: #{bottleneck_forward.7} parent=23 // pred_fallthru
        _
      // Predicated region
      $region29: #{bottleneck_forward.7} parent=23 // pred_check
        %p163 = pneg %p56
      $region30: #{bottleneck_forward.7} parent=23 // pred_check_branch
        %165 = sbr.rel (%p163) target = $region32
      $region31: #{bottleneck_forward.7} parent=23 // pred_region
        %p166 = scmp.lt.s32.totalorder %s10, 1
        %s167 = scalar_select %p166, %s10, 1
        %s168 = smul.addr %s167, 32
        %s169 = smul.addr %s168, 8
        %s170 = scalar_lea.vmem %s1, %s169
      $region32: #{bottleneck_forward.7} parent=23 // pred_fallthru
        _
    $region24: #{bottleneck_forward.7} parent=5 // pred_fallthru
      _
    %p171 = scmp.le.s32.totalorder 1, %s10
    %p172 = scmp.lt.s32.totalorder %s10, 3
    %p173 = pnand %p171, %p172
    %p174 = pneg %p173
    // Predicated region
    $region33: #{bottleneck_forward.7} parent=5 // pred_check
      _
    $region34: #{bottleneck_forward.7} parent=5 // pred_check_branch
      %176 = sbr.rel (%p173) target = $region36
    $region35: #{bottleneck_forward.7} parent=5 // pred_region
      %s177 = ssub.s32 %s10, 1
      %p178 = scmp.lt.s32.totalorder %s15, 1
      %s179 = scalar_select %p178, %s15, 1
      %s180 = smul.addr %s179, 32
      %s181 = smul.addr %s180, 8
      %s182 = scalar_lea.vmem %s0, %s181
      %p183 = pneg %p36
      %p184 = pneg %p33
      %p185 = scmp.lt.s32.totalorder %s15, 1
      %s186 = scalar_select %p185, %s15, 1
      %s187 = smul.addr %s186, 32
      %s188 = smul.addr %s187, 8
      %s189 = scalar_lea.vmem %s1, %s188
      %p190 = pneg %p62
      %p191 = pneg %p59
      %p192 = pneg %p83
      %p193 = pneg %p80
      %p194 = pneg %p104
      %p195 = pneg %p101
      %p196 = pneg %p130
      %p197 = pneg %p127
      %p198 = scmp.lt.s32.totalorder %s15, 1
      %s199 = scalar_select %p198, %s15, 1
      %s200 = smul.addr %s199, 32
      %s201 = smul.addr %s200, 8
      %s202 = scalar_lea.vmem %s4, %s201
      %p203 = scmp.lt.s32.totalorder %s15, 1
      %s204 = scalar_select %p203, %s15, 1
      %s205 = smul.addr %s204, 32
      %s206 = smul.addr %s205, 8
      %s207 = scalar_lea.vmem %s0, %s206
      %p208 = scmp.lt.s32.totalorder %s15, 1
      %s209 = scalar_select %p208, %s15, 1
      %s210 = smul.addr %s209, 32
      %s211 = smul.addr %s210, 8
      %s212 = scalar_lea.vmem %s1, %s211
      %p213 = scmp.lt.s32.totalorder %s15, 1
      %s214 = scalar_select %p213, %s15, 1
      %s215 = smul.addr %s214, 32
      %s216 = smul.addr %s215, 8
      %s217 = scalar_lea.vmem %s4, %s216
      %v218 = vld [vmem:[%s207] sm:$0xff]
      %v219 = vld [vmem:[%s207 + $0x8] sm:$0xff]
      %v220 = vld [vmem:[%s207 + $0x10] sm:$0xff]
      %v221 = vld [vmem:[%s207 + $0x18] sm:$0xff]
      %v222 = vld [vmem:[%s207 + $0x20] sm:$0xff]
      %v223 = vld [vmem:[%s207 + $0x28] sm:$0xff]
      %v224 = vld [vmem:[%s207 + $0x30] sm:$0xff]
      %v225 = vld [vmem:[%s207 + $0x38] sm:$0xff]
      %v226 = vld [vmem:[%s207 + $0x40] sm:$0xff]
      %v227 = vld [vmem:[%s207 + $0x48] sm:$0xff]
      %v228 = vld [vmem:[%s207 + $0x50] sm:$0xff]
      %v229 = vld [vmem:[%s207 + $0x58] sm:$0xff]
      %v230 = vld [vmem:[%s207 + $0x60] sm:$0xff]
      %v231 = vld [vmem:[%s207 + $0x68] sm:$0xff]
      %v232 = vld [vmem:[%s207 + $0x70] sm:$0xff]
      %v233 = vld [vmem:[%s207 + $0x78] sm:$0xff]
      %v234 = vld [vmem:[%s207 + $0x80] sm:$0xff]
      %v235 = vld [vmem:[%s207 + $0x88] sm:$0xff]
      %v236 = vld [vmem:[%s207 + $0x90] sm:$0xff]
      %v237 = vld [vmem:[%s207 + $0x98] sm:$0xff]
      %v238 = vld [vmem:[%s207 + $0xa0] sm:$0xff]
      %v239 = vld [vmem:[%s207 + $0xa8] sm:$0xff]
      %v240 = vld [vmem:[%s207 + $0xb0] sm:$0xff]
      %v241 = vld [vmem:[%s207 + $0xb8] sm:$0xff]
      %v242 = vld [vmem:[%s207 + $0xc0] sm:$0xff]
      %v243 = vld [vmem:[%s207 + $0xc8] sm:$0xff]
      %v244 = vld [vmem:[%s207 + $0xd0] sm:$0xff]
      %v245 = vld [vmem:[%s207 + $0xd8] sm:$0xff]
      %v246 = vld [vmem:[%s207 + $0xe0] sm:$0xff]
      %v247 = vld [vmem:[%s207 + $0xe8] sm:$0xff]
      %v248 = vld [vmem:[%s207 + $0xf0] sm:$0xff]
      %v249 = vld [vmem:[%s207 + $0xf8] sm:$0xff]
      %v250 = vld [vmem:[%s2] sm:$0x1]
      %v252 = vlaneseq
      %v253 = vshrl.u32 %v252, 7
      %v254 = vsub.s32 0, %v253
      %v255 = vrot.slane %v250, %v254
      %v257 = vmul.f32 %v218, %v255
      %v258 = vmul.f32 %v219, %v255
      %v259 = vmul.f32 %v220, %v255
      %v260 = vmul.f32 %v221, %v255
      %v261 = vmul.f32 %v222, %v255
      %v262 = vmul.f32 %v223, %v255
      %v263 = vmul.f32 %v224, %v255
      %v264 = vmul.f32 %v225, %v255
      %v265 = vmul.f32 %v226, %v255
      %v266 = vmul.f32 %v227, %v255
      %v267 = vmul.f32 %v228, %v255
      %v268 = vmul.f32 %v229, %v255
      %v269 = vmul.f32 %v230, %v255
      %v270 = vmul.f32 %v231, %v255
      %v271 = vmul.f32 %v232, %v255
      %v272 = vmul.f32 %v233, %v255
      %v273 = vmul.f32 %v234, %v255
      %v274 = vmul.f32 %v235, %v255
      %v275 = vmul.f32 %v236, %v255
      %v276 = vmul.f32 %v237, %v255
      %v277 = vmul.f32 %v238, %v255
      %v278 = vmul.f32 %v239, %v255
      %v279 = vmul.f32 %v240, %v255
      %v280 = vmul.f32 %v241, %v255
      %v281 = vmul.f32 %v242, %v255
      %v282 = vmul.f32 %v243, %v255
      %v283 = vmul.f32 %v244, %v255
      %v284 = vmul.f32 %v245, %v255
      %v285 = vmul.f32 %v246, %v255
      %v286 = vmul.f32 %v247, %v255
      %v287 = vmul.f32 %v248, %v255
      %v288 = vmul.f32 %v249, %v255
      %v289 = vld [vmem:[%s3] sm:$0x1]
      %v291 = vlaneseq
      %v292 = vshrl.u32 %v291, 7
      %v293 = vsub.s32 0, %v292
      %v294 = vrot.slane %v289, %v293
      %v296 = vadd.f32 %v257, %v294
      %v297 = vadd.f32 %v258, %v294
      %v298 = vadd.f32 %v259, %v294
      %v299 = vadd.f32 %v260, %v294
      %v300 = vadd.f32 %v261, %v294
      %v301 = vadd.f32 %v262, %v294
      %v302 = vadd.f32 %v263, %v294
      %v303 = vadd.f32 %v264, %v294
      %v304 = vadd.f32 %v265, %v294
      %v305 = vadd.f32 %v266, %v294
      %v306 = vadd.f32 %v267, %v294
      %v307 = vadd.f32 %v268, %v294
      %v308 = vadd.f32 %v269, %v294
      %v309 = vadd.f32 %v270, %v294
      %v310 = vadd.f32 %v271, %v294
      %v311 = vadd.f32 %v272, %v294
      %v312 = vadd.f32 %v273, %v294
      %v313 = vadd.f32 %v274, %v294
      %v314 = vadd.f32 %v275, %v294
      %v315 = vadd.f32 %v276, %v294
      %v316 = vadd.f32 %v277, %v294
      %v317 = vadd.f32 %v278, %v294
      %v318 = vadd.f32 %v279, %v294
      %v319 = vadd.f32 %v280, %v294
      %v320 = vadd.f32 %v281, %v294
      %v321 = vadd.f32 %v282, %v294
      %v322 = vadd.f32 %v283, %v294
      %v323 = vadd.f32 %v284, %v294
      %v324 = vadd.f32 %v285, %v294
      %v325 = vadd.f32 %v286, %v294
      %v326 = vadd.f32 %v287, %v294
      %v327 = vadd.f32 %v288, %v294
      %v328 = vld [vmem:[%s212] sm:$0xff]
      %v329 = vld [vmem:[%s212 + $0x8] sm:$0xff]
      %v330 = vld [vmem:[%s212 + $0x10] sm:$0xff]
      %v331 = vld [vmem:[%s212 + $0x18] sm:$0xff]
      %v332 = vld [vmem:[%s212 + $0x20] sm:$0xff]
      %v333 = vld [vmem:[%s212 + $0x28] sm:$0xff]
      %v334 = vld [vmem:[%s212 + $0x30] sm:$0xff]
      %v335 = vld [vmem:[%s212 + $0x38] sm:$0xff]
      %v336 = vld [vmem:[%s212 + $0x40] sm:$0xff]
      %v337 = vld [vmem:[%s212 + $0x48] sm:$0xff]
      %v338 = vld [vmem:[%s212 + $0x50] sm:$0xff]
      %v339 = vld [vmem:[%s212 + $0x58] sm:$0xff]
      %v340 = vld [vmem:[%s212 + $0x60] sm:$0xff]
      %v341 = vld [vmem:[%s212 + $0x68] sm:$0xff]
      %v342 = vld [vmem:[%s212 + $0x70] sm:$0xff]
      %v343 = vld [vmem:[%s212 + $0x78] sm:$0xff]
      %v344 = vld [vmem:[%s212 + $0x80] sm:$0xff]
      %v345 = vld [vmem:[%s212 + $0x88] sm:$0xff]
      %v346 = vld [vmem:[%s212 + $0x90] sm:$0xff]
      %v347 = vld [vmem:[%s212 + $0x98] sm:$0xff]
      %v348 = vld [vmem:[%s212 + $0xa0] sm:$0xff]
      %v349 = vld [vmem:[%s212 + $0xa8] sm:$0xff]
      %v350 = vld [vmem:[%s212 + $0xb0] sm:$0xff]
      %v351 = vld [vmem:[%s212 + $0xb8] sm:$0xff]
      %v352 = vld [vmem:[%s212 + $0xc0] sm:$0xff]
      %v353 = vld [vmem:[%s212 + $0xc8] sm:$0xff]
      %v354 = vld [vmem:[%s212 + $0xd0] sm:$0xff]
      %v355 = vld [vmem:[%s212 + $0xd8] sm:$0xff]
      %v356 = vld [vmem:[%s212 + $0xe0] sm:$0xff]
      %v357 = vld [vmem:[%s212 + $0xe8] sm:$0xff]
      %v358 = vld [vmem:[%s212 + $0xf0] sm:$0xff]
      %v359 = vld [vmem:[%s212 + $0xf8] sm:$0xff]
      %v360 = vadd.f32 %v296, %v328
      %v361 = vadd.f32 %v297, %v329
      %v362 = vadd.f32 %v298, %v330
      %v363 = vadd.f32 %v299, %v331
      %v364 = vadd.f32 %v300, %v332
      %v365 = vadd.f32 %v301, %v333
      %v366 = vadd.f32 %v302, %v334
      %v367 = vadd.f32 %v303, %v335
      %v368 = vadd.f32 %v304, %v336
      %v369 = vadd.f32 %v305, %v337
      %v370 = vadd.f32 %v306, %v338
      %v371 = vadd.f32 %v307, %v339
      %v372 = vadd.f32 %v308, %v340
      %v373 = vadd.f32 %v309, %v341
      %v374 = vadd.f32 %v310, %v342
      %v375 = vadd.f32 %v311, %v343
      %v376 = vadd.f32 %v312, %v344
      %v377 = vadd.f32 %v313, %v345
      %v378 = vadd.f32 %v314, %v346
      %v379 = vadd.f32 %v315, %v347
      %v380 = vadd.f32 %v316, %v348
      %v381 = vadd.f32 %v317, %v349
      %v382 = vadd.f32 %v318, %v350
      %v383 = vadd.f32 %v319, %v351
      %v384 = vadd.f32 %v320, %v352
      %v385 = vadd.f32 %v321, %v353
      %v386 = vadd.f32 %v322, %v354
      %v387 = vadd.f32 %v323, %v355
      %v388 = vadd.f32 %v324, %v356
      %v389 = vadd.f32 %v325, %v357
      %v390 = vadd.f32 %v326, %v358
      %v391 = vadd.f32 %v327, %v359
      %v392 = vmax.f32 %v360, 0.0
      %v393 = vmax.f32 %v361, 0.0
      %v394 = vmax.f32 %v362, 0.0
      %v395 = vmax.f32 %v363, 0.0
      %v396 = vmax.f32 %v364, 0.0
      %v397 = vmax.f32 %v365, 0.0
      %v398 = vmax.f32 %v366, 0.0
      %v399 = vmax.f32 %v367, 0.0
      %v400 = vmax.f32 %v368, 0.0
      %v401 = vmax.f32 %v369, 0.0
      %v402 = vmax.f32 %v370, 0.0
      %v403 = vmax.f32 %v371, 0.0
      %v404 = vmax.f32 %v372, 0.0
      %v405 = vmax.f32 %v373, 0.0
      %v406 = vmax.f32 %v374, 0.0
      %v407 = vmax.f32 %v375, 0.0
      %v408 = vmax.f32 %v376, 0.0
      %v409 = vmax.f32 %v377, 0.0
      %v410 = vmax.f32 %v378, 0.0
      %v411 = vmax.f32 %v379, 0.0
      %v412 = vmax.f32 %v380, 0.0
      %v413 = vmax.f32 %v381, 0.0
      %v414 = vmax.f32 %v382, 0.0
      %v415 = vmax.f32 %v383, 0.0
      %v416 = vmax.f32 %v384, 0.0
      %v417 = vmax.f32 %v385, 0.0
      %v418 = vmax.f32 %v386, 0.0
      %v419 = vmax.f32 %v387, 0.0
      %v420 = vmax.f32 %v388, 0.0
      %v421 = vmax.f32 %v389, 0.0
      %v422 = vmax.f32 %v390, 0.0
      %v423 = vmax.f32 %v391, 0.0
      %424 = vst [vmem:[%s217] sm:$0xff] %v392
      %425 = vst [vmem:[%s217 + $0x8] sm:$0xff] %v393
      %426 = vst [vmem:[%s217 + $0x10] sm:$0xff] %v394
      %427 = vst [vmem:[%s217 + $0x18] sm:$0xff] %v395
      %428 = vst [vmem:[%s217 + $0x20] sm:$0xff] %v396
      %429 = vst [vmem:[%s217 + $0x28] sm:$0xff] %v397
      %430 = vst [vmem:[%s217 + $0x30] sm:$0xff] %v398
      %431 = vst [vmem:[%s217 + $0x38] sm:$0xff] %v399
      %432 = vst [vmem:[%s217 + $0x40] sm:$0xff] %v400
      %433 = vst [vmem:[%s217 + $0x48] sm:$0xff] %v401
      %434 = vst [vmem:[%s217 + $0x50] sm:$0xff] %v402
      %435 = vst [vmem:[%s217 + $0x58] sm:$0xff] %v403
      %436 = vst [vmem:[%s217 + $0x60] sm:$0xff] %v404
      %437 = vst [vmem:[%s217 + $0x68] sm:$0xff] %v405
      %438 = vst [vmem:[%s217 + $0x70] sm:$0xff] %v406
      %439 = vst [vmem:[%s217 + $0x78] sm:$0xff] %v407
      %440 = vst [vmem:[%s217 + $0x80] sm:$0xff] %v408
      %441 = vst [vmem:[%s217 + $0x88] sm:$0xff] %v409
      %442 = vst [vmem:[%s217 + $0x90] sm:$0xff] %v410
      %443 = vst [vmem:[%s217 + $0x98] sm:$0xff] %v411
      %444 = vst [vmem:[%s217 + $0xa0] sm:$0xff] %v412
      %445 = vst [vmem:[%s217 + $0xa8] sm:$0xff] %v413
      %446 = vst [vmem:[%s217 + $0xb0] sm:$0xff] %v414
      %447 = vst [vmem:[%s217 + $0xb8] sm:$0xff] %v415
      %448 = vst [vmem:[%s217 + $0xc0] sm:$0xff] %v416
      %449 = vst [vmem:[%s217 + $0xc8] sm:$0xff] %v417
      %450 = vst [vmem:[%s217 + $0xd0] sm:$0xff] %v418
      %451 = vst [vmem:[%s217 + $0xd8] sm:$0xff] %v419
      %452 = vst [vmem:[%s217 + $0xe0] sm:$0xff] %v420
      %453 = vst [vmem:[%s217 + $0xe8] sm:$0xff] %v421
      %454 = vst [vmem:[%s217 + $0xf0] sm:$0xff] %v422
      %455 = vst [vmem:[%s217 + $0xf8] sm:$0xff] %v423
      %p456 = scmp.lt.s32.totalorder %s15, 1
      %s457 = scalar_select %p456, %s15, 1
      %s458 = smul.addr %s457, 32
      %s459 = smul.addr %s458, 8
      %s460 = scalar_lea.vmem %s4, %s459
      // Predicated region
      $region37: #{bottleneck_forward.7} parent=35 // pred_check
        %p461 = pneg %p127
      $region38: #{bottleneck_forward.7} parent=35 // pred_check_branch
        %463 = sbr.rel (%p461) target = $region40
      $region39: #{bottleneck_forward.7} parent=35 // pred_region
        _
      $region40: #{bottleneck_forward.7} parent=35 // pred_fallthru
        _
    $region36: #{bottleneck_forward.7} parent=5 // pred_fallthru
      _
    %p464 = scmp.le.s32.totalorder 2, %s10
    // Predicated region
    $region41: #{bottleneck_forward.7} parent=5 // pred_check
      %p465 = pneg %p464
    $region42: #{bottleneck_forward.7} parent=5 // pred_check_branch
      %467 = sbr.rel (%p465) target = $region44
    $region43: #{bottleneck_forward.7} parent=5 // pred_region
      %s468 = ssub.s32 %s10, 2
      // Predicated region
      $region45: #{bottleneck_forward.7} parent=43 // pred_check
        %p469 = pneg %p133
      $region46: #{bottleneck_forward.7} parent=43 // pred_check_branch
        %471 = sbr.rel (%p469) target = $region48
      $region47: #{bottleneck_forward.7} parent=43 // pred_region
        %p472 = scmp.lt.s32.totalorder %s16, 1
        %s473 = scalar_select %p472, %s16, 1
        %s474 = smul.addr %s473, 32
        %s475 = smul.addr %s474, 8
        %s476 = scalar_lea.vmem %s4, %s475
      $region48: #{bottleneck_forward.7} parent=43 // pred_fallthru
        _
    $region44: #{bottleneck_forward.7} parent=5 // pred_fallthru
      _
  $region6: #{bottleneck_forward.7} parent=0 // loop_footer
    %s14 = sadd.s32 1, %s10
  $region7: #{bottleneck_forward.7} parent=0 // loop_footer_branch
    %9 = sbr.rel target = $region3
  $region8: #{bottleneck_forward.7} parent=0 // loop_exit
    _

// kernel: bottleneck_forward.5
$region0: #{bottleneck_forward.5}
  #allocation0 [shape = 'u32[]', space=smem, size = 0x4, offset = 0x4, fixed_abs, tag = 'smem constant byte address 0x4 - core index']
  #allocation1 [shape = 'u32[144,128]{1,0:T(1,128)}', space=vmem, size = 0x12000, scoped, tag = 'internal scratch']
  #allocation2 [shape = 'f32[18,18,128]{2,1,0:T(8,128)}', space=vmem, size = 0x36000, scoped, tag = 'scratch operand']
  %s0 = inlined_call_operand.vmem [shape: f32[2,16,16,128], index: 0, kind: input, shape index: {}]
  %s1 = inlined_call_operand.vmem [shape: f32[1,128], index: 1, kind: input, shape index: {}]
  %s2 = inlined_call_operand.vmem [shape: f32[1,128], index: 2, kind: input, shape index: {}]
  %s3 = inlined_call_operand.vmem [shape: f32[1152,128], index: 3, kind: input, shape index: {}]
  %s4 = inlined_call_operand.vmem [shape: f32[2,16,16,128], index: 4, kind: output, shape index: {0}]
  %s5 = inlined_call_operand.vmem [shape: f32[2,2,128], index: 5, kind: output, shape index: {1}]
  %6 = xla_tuple %s4, %s5
  %s7 = sld [smem:[#allocation0]]
  $region57: #{bottleneck_forward.5} parent=0
    _
  %s9 = ssub.s32 1, %s7
  %s10 = scalar_select 0, %s9, %s7
  loop: start=0, step=1, limit=4
  $region2: #{bottleneck_forward.5} parent=0 // loop_pre_header
    _
  $region3: #{bottleneck_forward.5} parent=0 // loop_header
    %s12 = sphi 0, %s16
    %p13 = scmp.ge.s32.totalorder %s12, 4
    %s22 = sphi 0, %s24
    %s25 = sphi 0, %s22
    %s26 = sphi 0, %s25
    %s42 = sphi 0, %s26
    %s46 = sphi 0, %s46
    %s48 = sphi 0, %s46
    %s49 = sphi 0, %s48
    %s63 = sphi 0, %s49
    %s67 = sphi 0, %s67
    %s69 = sphi 0, %s67
    %s70 = sphi 0, %s69
    %s84 = sphi 0, %s70
    %s88 = sphi 0, %s88
    %s90 = sphi 0, %s88
    %s91 = sphi 0, %s90
    %s105 = sphi 0, %s91
    %s111 = sphi 0, %s113
    %s114 = sphi 0, %s111
    %s115 = sphi 0, %s114
    %s131 = sphi 0, %s115
    %s137 = sphi 0, %s139
    %s140 = sphi 0, %s137
    %s141 = sphi 0, %s140
    %s157 = sphi 0, %s141
  $region4: #{bottleneck_forward.5} parent=0 // loop_header_branch
    %15 = sbr.rel (%p13) target = $region8
  $region5: #{bottleneck_forward.5} parent=0 // loop_body
    %s17 = ssub.s32 %s12, 1
    %s18 = ssub.s32 %s12, 2
    %s19 = sadd.s32 %s12, 1
    %s20 = ssub.s32 %s12, %s19
    %p21 = scmp.eq.s32.totalorder %s20, 0
    %s23 = sadd.s32 %s22, 1
    %s24 = scalar_select %p21, %s22, %s23
    %p27 = pneg %p21
    %p28 = scmp.eq.s32.totalorder %s12, 1
    %p29 = por %p27, %p28
    %p30 = scmp.ne.s32.totalorder %s22, %s25
    %p31 = scmp.eq.s32.totalorder %s12, 0
    %p32 = por %p30, %p31
    %p33 = scmp.ne.s32.totalorder %s22, %s25
    %p34 = scmp.eq.s32.totalorder %s17, 1
    %p35 = por %p33, %p34
    %p36 = scmp.ne.s32.totalorder %s25, %s26
    %p37 = scmp.eq.s32.totalorder %s17, 0
    %p38 = por %p36, %p37
    %p39 = scmp.ne.s32.totalorder %s25, %s26
    %p40 = scmp.eq.s32.totalorder %s18, 1
    %p41 = por %p39, %p40
    %p43 = scmp.ne.s32.totalorder %s26, %s42
    %p44 = scmp.eq.s32.totalorder %s18, 0
    %p45 = por %p43, %p44
    %s47 = sadd.s32 %s46, 1
    %p50 = scmp.eq.s32.totalorder %s12, 1
    %p51 = scmp.ne.s32.totalorder %s46, %s48
    %p52 = scmp.eq.s32.totalorder %s12, 0
    %p53 = por %p51, %p52
    %p54 = scmp.ne.s32.totalorder %s46, %s48
    %p55 = scmp.eq.s32.totalorder %s17, 1
    %p56 = por %p54, %p55
    %p57 = scmp.ne.s32.totalorder %s48, %s49
    %p58 = scmp.eq.s32.totalorder %s17, 0
    %p59 = por %p57, %p58
    %p60 = scmp.ne.s32.totalorder %s48, %s49
    %p61 = scmp.eq.s32.totalorder %s18, 1
    %p62 = por %p60, %p61
    %p64 = scmp.ne.s32.totalorder %s49, %s63
    %p65 = scmp.eq.s32.totalorder %s18, 0
    %p66 = por %p64, %p65
    %s68 = sadd.s32 %s67, 1
    %p71 = scmp.eq.s32.totalorder %s12, 1
    %p72 = scmp.ne.s32.totalorder %s67, %s69
    %p73 = scmp.eq.s32.totalorder %s12, 0
    %p74 = por %p72, %p73
    %p75 = scmp.ne.s32.totalorder %s67, %s69
    %p76 = scmp.eq.s32.totalorder %s17, 1
    %p77 = por %p75, %p76
    %p78 = scmp.ne.s32.totalorder %s69, %s70
    %p79 = scmp.eq.s32.totalorder %s17, 0
    %p80 = por %p78, %p79
    %p81 = scmp.ne.s32.totalorder %s69, %s70
    %p82 = scmp.eq.s32.totalorder %s18, 1
    %p83 = por %p81, %p82
    %p85 = scmp.ne.s32.totalorder %s70, %s84
    %p86 = scmp.eq.s32.totalorder %s18, 0
    %p87 = por %p85, %p86
    %s89 = sadd.s32 %s88, 1
    %p92 = scmp.eq.s32.totalorder %s12, 1
    %p93 = scmp.ne.s32.totalorder %s88, %s90
    %p94 = scmp.eq.s32.totalorder %s12, 0
    %p95 = por %p93, %p94
    %p96 = scmp.ne.s32.totalorder %s88, %s90
    %p97 = scmp.eq.s32.totalorder %s17, 1
    %p98 = por %p96, %p97
    %p99 = scmp.ne.s32.totalorder %s90, %s91
    %p100 = scmp.eq.s32.totalorder %s17, 0
    %p101 = por %p99, %p100
    %p102 = scmp.ne.s32.totalorder %s90, %s91
    %p103 = scmp.eq.s32.totalorder %s18, 1
    %p104 = por %p102, %p103
    %p106 = scmp.ne.s32.totalorder %s91, %s105
    %p107 = scmp.eq.s32.totalorder %s18, 0
    %p108 = por %p106, %p107
    %s109 = ssub.s32 %s12, %s19
    %p110 = scmp.eq.s32.totalorder %s109, 0
    %s112 = sadd.s32 %s111, 1
    %s113 = scalar_select %p110, %s111, %s112
    %p116 = pneg %p110
    %p117 = scmp.eq.s32.totalorder %s12, 1
    %p118 = por %p116, %p117
    %p119 = scmp.ne.s32.totalorder %s111, %s114
    %p120 = scmp.eq.s32.totalorder %s12, 0
    %p121 = por %p119, %p120
    %p122 = scmp.ne.s32.totalorder %s111, %s114
    %p123 = scmp.eq.s32.totalorder %s17, 1
    %p124 = por %p122, %p123
    %p125 = scmp.ne.s32.totalorder %s114, %s115
    %p126 = scmp.eq.s32.totalorder %s17, 0
    %p127 = por %p125, %p126
    %p128 = scmp.ne.s32.totalorder %s114, %s115
    %p129 = scmp.eq.s32.totalorder %s18, 1
    %p130 = por %p128, %p129
    %p132 = scmp.ne.s32.totalorder %s115, %s131
    %p133 = scmp.eq.s32.totalorder %s18, 0
    %p134 = por %p132, %p133
    %s135 = ssub.s32 %s12, %s19
    %p136 = scmp.eq.s32.totalorder %s135, 0
    %s138 = sadd.s32 %s137, 1
    %s139 = scalar_select %p136, %s137, %s138
    %p142 = pneg %p136
    %p143 = scmp.eq.s32.totalorder %s12, 1
    %p144 = por %p142, %p143
    %p145 = scmp.ne.s32.totalorder %s137, %s140
    %p146 = scmp.eq.s32.totalorder %s12, 0
    %p147 = por %p145, %p146
    %p148 = scmp.ne.s32.totalorder %s137, %s140
    %p149 = scmp.eq.s32.totalorder %s17, 1
    %p150 = por %p148, %p149
    %p151 = scmp.ne.s32.totalorder %s140, %s141
    %p152 = scmp.eq.s32.totalorder %s17, 0
    %p153 = por %p151, %p152
    %p154 = scmp.ne.s32.totalorder %s140, %s141
    %p155 = scmp.eq.s32.totalorder %s18, 1
    %p156 = por %p154, %p155
    %p158 = scmp.ne.s32.totalorder %s141, %s157
    %p159 = scmp.eq.s32.totalorder %s18, 0
    %p160 = por %p158, %p159
    %p161 = scmp.le.s32.totalorder 1, %s12
    %p162 = scmp.lt.s32.totalorder %s12, 3
    %p163 = pnand %p161, %p162
    %p164 = pneg %p163
    // Predicated region
    $region9: #{bottleneck_forward.5} parent=5 // pred_check
      _
    $region10: #{bottleneck_forward.5} parent=5 // pred_check_branch
      %166 = sbr.rel (%p163) target = $region12
    $region11: #{bottleneck_forward.5} parent=5 // pred_region
      %s167 = ssub.s32 %s12, 1
      // Predicated region
      $region13: #{bottleneck_forward.5} parent=11 // pred_check
        %p168 = pneg %p59
      $region14: #{bottleneck_forward.5} parent=11 // pred_check_branch
        %170 = sbr.rel (%p168) target = $region16
      $region15: #{bottleneck_forward.5} parent=11 // pred_region
        _
      $region16: #{bottleneck_forward.5} parent=11 // pred_fallthru
        _
      // Predicated region
      $region17: #{bottleneck_forward.5} parent=11 // pred_check
        %p171 = pneg %p80
      $region18: #{bottleneck_forward.5} parent=11 // pred_check_branch
        %173 = sbr.rel (%p171) target = $region20
      $region19: #{bottleneck_forward.5} parent=11 // pred_region
        _
      $region20: #{bottleneck_forward.5} parent=11 // pred_fallthru
        _
      // Predicated region
      $region21: #{bottleneck_forward.5} parent=11 // pred_check
        %p174 = pneg %p101
      $region22: #{bottleneck_forward.5} parent=11 // pred_check_branch
        %176 = sbr.rel (%p174) target = $region24
      $region23: #{bottleneck_forward.5} parent=11 // pred_region
        _
      $region24: #{bottleneck_forward.5} parent=11 // pred_fallthru
        _
    $region12: #{bottleneck_forward.5} parent=5 // pred_fallthru
      _
    %p177 = scmp.lt.s32.totalorder %s12, 2
    // Predicated region
    $region25: #{bottleneck_forward.5} parent=5 // pred_check
      %p178 = pneg %p177
    $region26: #{bottleneck_forward.5} parent=5 // pred_check_branch
      %180 = sbr.rel (%p178) target = $region28
    $region27: #{bottleneck_forward.5} parent=5 // pred_region
      // Predicated region
      $region29: #{bottleneck_forward.5} parent=27 // pred_check
        %p181 = pneg %p32
      $region30: #{bottleneck_forward.5} parent=27 // pred_check_branch
        %183 = sbr.rel (%p181) target = $region32
      $region31: #{bottleneck_forward.5} parent=27 // pred_region
        %p184 = scmp.lt.s32.totalorder %s12, 1
        %s185 = scalar_select %p184, %s12, 1
        %s186 = smul.addr %s185, 32
        %s187 = smul.addr %s186, 8
        %s188 = scalar_lea.vmem %s0, %s187
      $region32: #{bottleneck_forward.5} parent=27 // pred_fallthru
        _
    $region28: #{bottleneck_forward.5} parent=5 // pred_fallthru
      _
    %p189 = scmp.le.s32.totalorder 1, %s12
    %p190 = scmp.lt.s32.totalorder %s12, 3
    %p191 = pnand %p189, %p190
    %p192 = pneg %p191
    // Predicated region
    $region33: #{bottleneck_forward.5} parent=5 // pred_check
      _
    $region34: #{bottleneck_forward.5} parent=5 // pred_check_branch
      %194 = sbr.rel (%p191) target = $region36
    $region35: #{bottleneck_forward.5} parent=5 // pred_region
      %s195 = ssub.s32 %s12, 1
      %p196 = scmp.lt.s32.totalorder %s17, 1
      %s197 = scalar_select %p196, %s17, 1
      %s198 = smul.addr %s197, 32
      %s199 = smul.addr %s198, 8
      %s200 = scalar_lea.vmem %s0, %s199
      %p201 = pneg %p38
      %p202 = pneg %p35
      %p203 = pneg %p59
      %p204 = pneg %p56
      %p205 = pneg %p80
      %p206 = pneg %p77
      %p207 = pneg %p101
      %p208 = pneg %p98
      %p209 = pneg %p127
      %p210 = pneg %p124
      %p211 = scmp.lt.s32.totalorder %s17, 1
      %s212 = scalar_select %p211, %s17, 1
      %s213 = smul.addr %s212, 32
      %s214 = smul.addr %s213, 8
      %s215 = scalar_lea.vmem %s4, %s214
      %p216 = pneg %p153
      %p217 = pneg %p150
      %p218 = scmp.lt.s32.totalorder %s17, 1
      %s219 = scalar_select %p218, %s17, 1
      %s220 = smul.addr %s219, 2
      %s221 = scalar_lea.vmem %s5, %s220
      %p222 = scmp.lt.s32.totalorder %s17, 1
      %s223 = scalar_select %p222, %s17, 1
      %s224 = smul.addr %s223, 32
      %s225 = smul.addr %s224, 8
      %s226 = scalar_lea.vmem %s0, %s225
      %p227 = scmp.lt.s32.totalorder %s17, 1
      %s228 = scalar_select %p227, %s17, 1
      %s229 = smul.addr %s228, 32
      %s230 = smul.addr %s229, 8
      %s231 = scalar_lea.vmem %s4, %s230
      %p232 = scmp.lt.s32.totalorder %s17, 1
      %s233 = scalar_select %p232, %s17, 1
      %s234 = smul.addr %s233, 2
      %s235 = scalar_lea.vmem %s5, %s234
      %v236 = vld [vmem:[%s226] sm:$0xff]
      %v237 = vld [vmem:[%s226 + $0x8] sm:$0xff]
      %v238 = vld [vmem:[%s226 + $0x10] sm:$0xff]
      %v239 = vld [vmem:[%s226 + $0x18] sm:$0xff]
      %v240 = vld [vmem:[%s226 + $0x20] sm:$0xff]
      %v241 = vld [vmem:[%s226 + $0x28] sm:$0xff]
      %v242 = vld [vmem:[%s226 + $0x30] sm:$0xff]
      %v243 = vld [vmem:[%s226 + $0x38] sm:$0xff]
      %v244 = vld [vmem:[%s226 + $0x40] sm:$0xff]
      %v245 = vld [vmem:[%s226 + $0x48] sm:$0xff]
      %v246 = vld [vmem:[%s226 + $0x50] sm:$0xff]
      %v247 = vld [vmem:[%s226 + $0x58] sm:$0xff]
      %v248 = vld [vmem:[%s226 + $0x60] sm:$0xff]
      %v249 = vld [vmem:[%s226 + $0x68] sm:$0xff]
      %v250 = vld [vmem:[%s226 + $0x70] sm:$0xff]
      %v251 = vld [vmem:[%s226 + $0x78] sm:$0xff]
      %v252 = vld [vmem:[%s226 + $0x80] sm:$0xff]
      %v253 = vld [vmem:[%s226 + $0x88] sm:$0xff]
      %v254 = vld [vmem:[%s226 + $0x90] sm:$0xff]
      %v255 = vld [vmem:[%s226 + $0x98] sm:$0xff]
      %v256 = vld [vmem:[%s226 + $0xa0] sm:$0xff]
      %v257 = vld [vmem:[%s226 + $0xa8] sm:$0xff]
      %v258 = vld [vmem:[%s226 + $0xb0] sm:$0xff]
      %v259 = vld [vmem:[%s226 + $0xb8] sm:$0xff]
      %v260 = vld [vmem:[%s226 + $0xc0] sm:$0xff]
      %v261 = vld [vmem:[%s226 + $0xc8] sm:$0xff]
      %v262 = vld [vmem:[%s226 + $0xd0] sm:$0xff]
      %v263 = vld [vmem:[%s226 + $0xd8] sm:$0xff]
      %v264 = vld [vmem:[%s226 + $0xe0] sm:$0xff]
      %v265 = vld [vmem:[%s226 + $0xe8] sm:$0xff]
      %v266 = vld [vmem:[%s226 + $0xf0] sm:$0xff]
      %v267 = vld [vmem:[%s226 + $0xf8] sm:$0xff]
      %v268 = vld [vmem:[%s1] sm:$0x1]
      %v270 = vlaneseq
      %v271 = vshrl.u32 %v270, 7
      %v272 = vsub.s32 0, %v271
      %v273 = vrot.slane %v268, %v272
      %v275 = vmul.f32 %v236, %v273
      %v276 = vmul.f32 %v237, %v273
      %v277 = vmul.f32 %v238, %v273
      %v278 = vmul.f32 %v239, %v273
      %v279 = vmul.f32 %v240, %v273
      %v280 = vmul.f32 %v241, %v273
      %v281 = vmul.f32 %v242, %v273
      %v282 = vmul.f32 %v243, %v273
      %v283 = vmul.f32 %v244, %v273
      %v284 = vmul.f32 %v245, %v273
      %v285 = vmul.f32 %v246, %v273
      %v286 = vmul.f32 %v247, %v273
      %v287 = vmul.f32 %v248, %v273
      %v288 = vmul.f32 %v249, %v273
      %v289 = vmul.f32 %v250, %v273
      %v290 = vmul.f32 %v251, %v273
      %v291 = vmul.f32 %v252, %v273
      %v292 = vmul.f32 %v253, %v273
      %v293 = vmul.f32 %v254, %v273
      %v294 = vmul.f32 %v255, %v273
      %v295 = vmul.f32 %v256, %v273
      %v296 = vmul.f32 %v257, %v273
      %v297 = vmul.f32 %v258, %v273
      %v298 = vmul.f32 %v259, %v273
      %v299 = vmul.f32 %v260, %v273
      %v300 = vmul.f32 %v261, %v273
      %v301 = vmul.f32 %v262, %v273
      %v302 = vmul.f32 %v263, %v273
      %v303 = vmul.f32 %v264, %v273
      %v304 = vmul.f32 %v265, %v273
      %v305 = vmul.f32 %v266, %v273
      %v306 = vmul.f32 %v267, %v273
      %v307 = vld [vmem:[%s2] sm:$0x1]
      %v309 = vlaneseq
      %v310 = vshrl.u32 %v309, 7
      %v311 = vsub.s32 0, %v310
      %v312 = vrot.slane %v307, %v311
      %v314 = vadd.f32 %v275, %v312
      %v315 = vadd.f32 %v276, %v312
      %v316 = vadd.f32 %v277, %v312
      %v317 = vadd.f32 %v278, %v312
      %v318 = vadd.f32 %v279, %v312
      %v319 = vadd.f32 %v280, %v312
      %v320 = vadd.f32 %v281, %v312
      %v321 = vadd.f32 %v282, %v312
      %v322 = vadd.f32 %v283, %v312
      %v323 = vadd.f32 %v284, %v312
      %v324 = vadd.f32 %v285, %v312
      %v325 = vadd.f32 %v286, %v312
      %v326 = vadd.f32 %v287, %v312
      %v327 = vadd.f32 %v288, %v312
      %v328 = vadd.f32 %v289, %v312
      %v329 = vadd.f32 %v290, %v312
      %v330 = vadd.f32 %v291, %v312
      %v331 = vadd.f32 %v292, %v312
      %v332 = vadd.f32 %v293, %v312
      %v333 = vadd.f32 %v294, %v312
      %v334 = vadd.f32 %v295, %v312
      %v335 = vadd.f32 %v296, %v312
      %v336 = vadd.f32 %v297, %v312
      %v337 = vadd.f32 %v298, %v312
      %v338 = vadd.f32 %v299, %v312
      %v339 = vadd.f32 %v300, %v312
      %v340 = vadd.f32 %v301, %v312
      %v341 = vadd.f32 %v302, %v312
      %v342 = vadd.f32 %v303, %v312
      %v343 = vadd.f32 %v304, %v312
      %v344 = vadd.f32 %v305, %v312
      %v345 = vadd.f32 %v306, %v312
      %v346 = vmax.f32 %v314, 0.0
      %v347 = vmax.f32 %v315, 0.0
      %v348 = vmax.f32 %v316, 0.0
      %v349 = vmax.f32 %v317, 0.0
      %v350 = vmax.f32 %v318, 0.0
      %v351 = vmax.f32 %v319, 0.0
      %v352 = vmax.f32 %v320, 0.0
      %v353 = vmax.f32 %v321, 0.0
      %v354 = vmax.f32 %v322, 0.0
      %v355 = vmax.f32 %v323, 0.0
      %v356 = vmax.f32 %v324, 0.0
      %v357 = vmax.f32 %v325, 0.0
      %v358 = vmax.f32 %v326, 0.0
      %v359 = vmax.f32 %v327, 0.0
      %v360 = vmax.f32 %v328, 0.0
      %v361 = vmax.f32 %v329, 0.0
      %v362 = vmax.f32 %v330, 0.0
      %v363 = vmax.f32 %v331, 0.0
      %v364 = vmax.f32 %v332, 0.0
      %v365 = vmax.f32 %v333, 0.0
      %v366 = vmax.f32 %v334, 0.0
      %v367 = vmax.f32 %v335, 0.0
      %v368 = vmax.f32 %v336, 0.0
      %v369 = vmax.f32 %v337, 0.0
      %v370 = vmax.f32 %v338, 0.0
      %v371 = vmax.f32 %v339, 0.0
      %v372 = vmax.f32 %v340, 0.0
      %v373 = vmax.f32 %v341, 0.0
      %v374 = vmax.f32 %v342, 0.0
      %v375 = vmax.f32 %v343, 0.0
      %v376 = vmax.f32 %v344, 0.0
      %v377 = vmax.f32 %v345, 0.0
      %378 = vst [vmem:[#allocation2] sm:$0xff] 0.0
      %379 = vst [vmem:[#allocation2 + $0x8] sm:$0xff] 0.0
      %380 = vst [vmem:[#allocation2 + $0x10] sm:$0x3] 0.0
      %s381 = scalar_lea.vmem [#allocation2], 408
      %382 = vst [vmem:[%s381] sm:$0xff] 0.0
      %383 = vst [vmem:[%s381 + $0x8] sm:$0xff] 0.0
      %384 = vst [vmem:[%s381 + $0x10] sm:$0x3] 0.0
      %385 = vst [vmem:[#allocation2] sm:$0x1] 0.0
      %386 = vst [vmem:[#allocation2 + $0x18] sm:$0x1] 0.0
      %387 = vst [vmem:[#allocation2 + $0x30] sm:$0x1] 0.0
      %388 = vst [vmem:[#allocation2 + $0x48] sm:$0x1] 0.0
      %389 = vst [vmem:[#allocation2 + $0x60] sm:$0x1] 0.0
      %390 = vst [vmem:[#allocation2 + $0x78] sm:$0x1] 0.0
      %391 = vst [vmem:[#allocation2 + $0x90] sm:$0x1] 0.0
      %392 = vst [vmem:[#allocation2 + $0xa8] sm:$0x1] 0.0
      %393 = vst [vmem:[#allocation2 + $0xc0] sm:$0x1] 0.0
      %394 = vst [vmem:[#allocation2 + $0xd8] sm:$0x1] 0.0
      %395 = vst [vmem:[#allocation2 + $0xf0] sm:$0x1] 0.0
      %396 = vst [vmem:[#allocation2 + $0x108] sm:$0x1] 0.0
      %397 = vst [vmem:[#allocation2 + $0x120] sm:$0x1] 0.0
      %398 = vst [vmem:[#allocation2 + $0x138] sm:$0x1] 0.0
      %399 = vst [vmem:[#allocation2 + $0x150] sm:$0x1] 0.0
      %400 = vst [vmem:[#allocation2 + $0x168] sm:$0x1] 0.0
      %401 = vst [vmem:[#allocation2 + $0x180] sm:$0x1] 0.0
      %402 = vst [vmem:[#allocation2 + $0x198] sm:$0x1] 0.0
      %403 = vst [vmem:[#allocation2 + $0x11] sm:$0x1] 0.0
      %404 = vst [vmem:[#allocation2 + $0x29] sm:$0x1] 0.0
      %405 = vst [vmem:[#allocation2 + $0x41] sm:$0x1] 0.0
      %406 = vst [vmem:[#allocation2 + $0x59] sm:$0x1] 0.0
      %407 = vst [vmem:[#allocation2 + $0x71] sm:$0x1] 0.0
      %408 = vst [vmem:[#allocation2 + $0x89] sm:$0x1] 0.0
      %409 = vst [vmem:[#allocation2 + $0xa1] sm:$0x1] 0.0
      %410 = vst [vmem:[#allocation2 + $0xb9] sm:$0x1] 0.0
      %411 = vst [vmem:[#allocation2 + $0xd1] sm:$0x1] 0.0
      %412 = vst [vmem:[#allocation2 + $0xe9] sm:$0x1] 0.0
      %413 = vst [vmem:[#allocation2 + $0x101] sm:$0x1] 0.0
      %414 = vst [vmem:[#allocation2 + $0x119] sm:$0x1] 0.0
      %415 = vst [vmem:[#allocation2 + $0x131] sm:$0x1] 0.0
      %416 = vst [vmem:[#allocation2 + $0x149] sm:$0x1] 0.0
      %417 = vst [vmem:[#allocation2 + $0x161] sm:$0x1] 0.0
      %418 = vst [vmem:[#allocation2 + $0x179] sm:$0x1] 0.0
      %419 = vst [vmem:[#allocation2 + $0x191] sm:$0x1] 0.0
      %420 = vst [vmem:[#allocation2 + $0x1a9] sm:$0x1] 0.0
      %s421 = scalar_lea.vmem [#allocation2], 24
      %422 = vst [vmem:[%s421 + $0x1] sm:$0xff] %v346
      %423 = vst [vmem:[%s421 + $0x9] sm:$0xff] %v347
      %424 = vst [vmem:[%s421 + $0x19] sm:$0xff] %v348
      %425 = vst [vmem:[%s421 + $0x21] sm:$0xff] %v349
      %426 = vst [vmem:[%s421 + $0x31] sm:$0xff] %v350
      %427 = vst [vmem:[%s421 + $0x39] sm:$0xff] %v351
      %428 = vst [vmem:[%s421 + $0x49] sm:$0xff] %v352
      %429 = vst [vmem:[%s421 + $0x51] sm:$0xff] %v353
      %430 = vst [vmem:[%s421 + $0x61] sm:$0xff] %v354
      %431 = vst [vmem:[%s421 + $0x69] sm:$0xff] %v355
      %432 = vst [vmem:[%s421 + $0x79] sm:$0xff] %v356
      %433 = vst [vmem:[%s421 + $0x81] sm:$0xff] %v357
      %434 = vst [vmem:[%s421 + $0x91] sm:$0xff] %v358
      %435 = vst [vmem:[%s421 + $0x99] sm:$0xff] %v359
      %436 = vst [vmem:[%s421 + $0xa9] sm:$0xff] %v360
      %437 = vst [vmem:[%s421 + $0xb1] sm:$0xff] %v361
      %438 = vst [vmem:[%s421 + $0xc1] sm:$0xff] %v362
      %439 = vst [vmem:[%s421 + $0xc9] sm:$0xff] %v363
      %440 = vst [vmem:[%s421 + $0xd9] sm:$0xff] %v364
      %441 = vst [vmem:[%s421 + $0xe1] sm:$0xff] %v365
      %442 = vst [vmem:[%s421 + $0xf1] sm:$0xff] %v366
      %443 = vst [vmem:[%s421 + $0xf9] sm:$0xff] %v367
      %444 = vst [vmem:[%s421 + $0x109] sm:$0xff] %v368
      %445 = vst [vmem:[%s421 + $0x111] sm:$0xff] %v369
      %446 = vst [vmem:[%s421 + $0x121] sm:$0xff] %v370
      %447 = vst [vmem:[%s421 + $0x129] sm:$0xff] %v371
      %448 = vst [vmem:[%s421 + $0x139] sm:$0xff] %v372
      %449 = vst [vmem:[%s421 + $0x141] sm:$0xff] %v373
      %450 = vst [vmem:[%s421 + $0x151] sm:$0xff] %v374
      %451 = vst [vmem:[%s421 + $0x159] sm:$0xff] %v375
      %452 = vst [vmem:[%s421 + $0x169] sm:$0xff] %v376
      %453 = vst [vmem:[%s421 + $0x171] sm:$0xff] %v377
      %v454 = vld [vmem:[#allocation2] sm:$0xff]
      %v455 = vld [vmem:[#allocation2 + $0x8] sm:$0xff]
      %v456 = vld [vmem:[#allocation2 + $0x18] sm:$0xff]
      %v457 = vld [vmem:[#allocation2 + $0x20] sm:$0xff]
      %v458 = vld [vmem:[#allocation2 + $0x30] sm:$0xff]
      %v459 = vld [vmem:[#allocation2 + $0x38] sm:$0xff]
      %v460 = vld [vmem:[#allocation2 + $0x48] sm:$0xff]
      %v461 = vld [vmem:[#allocation2 + $0x50] sm:$0xff]
      %v462 = vld [vmem:[#allocation2 + $0x60] sm:$0xff]
      %v463 = vld [vmem:[#allocation2 + $0x68] sm:$0xff]
      %v464 = vld [vmem:[#allocation2 + $0x78] sm:$0xff]
      %v465 = vld [vmem:[#allocation2 + $0x80] sm:$0xff]
      %v466 = vld [vmem:[#allocation2 + $0x90] sm:$0xff]
      %v467 = vld [vmem:[#allocation2 + $0x98] sm:$0xff]
      %v468 = vld [vmem:[#allocation2 + $0xa8] sm:$0xff]
      %v469 = vld [vmem:[#allocation2 + $0xb0] sm:$0xff]
      %v470 = vld [vmem:[#allocation2 + $0xc0] sm:$0xff]
      %v471 = vld [vmem:[#allocation2 + $0xc8] sm:$0xff]
      %v472 = vld [vmem:[#allocation2 + $0xd8] sm:$0xff]
      %v473 = vld [vmem:[#allocation2 + $0xe0] sm:$0xff]
      %v474 = vld [vmem:[#allocation2 + $0xf0] sm:$0xff]
      %v475 = vld [vmem:[#allocation2 + $0xf8] sm:$0xff]
      %v476 = vld [vmem:[#allocation2 + $0x108] sm:$0xff]
      %v477 = vld [vmem:[#allocation2 + $0x110] sm:$0xff]
      %v478 = vld [vmem:[#allocation2 + $0x120] sm:$0xff]
      %v479 = vld [vmem:[#allocation2 + $0x128] sm:$0xff]
      %v480 = vld [vmem:[#allocation2 + $0x138] sm:$0xff]
      %v481 = vld [vmem:[#allocation2 + $0x140] sm:$0xff]
      %v482 = vld [vmem:[#allocation2 + $0x150] sm:$0xff]
      %v483 = vld [vmem:[#allocation2 + $0x158] sm:$0xff]
      %v484 = vld [vmem:[#allocation2 + $0x168] sm:$0xff]
      %v485 = vld [vmem:[#allocation2 + $0x170] sm:$0xff]
      %v486 = vld [vmem:[#allocation2 + $0x1] sm:$0xff]
      %v487 = vld [vmem:[#allocation2 + $0x9] sm:$0xff]
      %v488 = vld [vmem:[#allocation2 + $0x19] sm:$0xff]
      %v489 = vld [vmem:[#allocation2 + $0x21] sm:$0xff]
      %v490 = vld [vmem:[#allocation2 + $0x31] sm:$0xff]
      %v491 = vld [vmem:[#allocation2 + $0x39] sm:$0xff]
      %v492 = vld [vmem:[#allocation2 + $0x49] sm:$0xff]
      %v493 = vld [vmem:[#allocation2 + $0x51] sm:$0xff]
      %v494 = vld [vmem:[#allocation2 + $0x61] sm:$0xff]
      %v495 = vld [vmem:[#allocation2 + $0x69] sm:$0xff]
      %v496 = vld [vmem:[#allocation2 + $0x79] sm:$0xff]
      %v497 = vld [vmem:[#allocation2 + $0x81] sm:$0xff]
      %v498 = vld [vmem:[#allocation2 + $0x91] sm:$0xff]
      %v499 = vld [vmem:[#allocation2 + $0x99] sm:$0xff]
      %v500 = vld [vmem:[#allocation2 + $0xa9] sm:$0xff]
      %v501 = vld [vmem:[#allocation2 + $0xb1] sm:$0xff]
      %v502 = vld [vmem:[#allocation2 + $0xc1] sm:$0xff]
      %v503 = vld [vmem:[#allocation2 + $0xc9] sm:$0xff]
      %v504 = vld [vmem:[#allocation2 + $0xd9] sm:$0xff]
      %v505 = vld [vmem:[#allocation2 + $0xe1] sm:$0xff]
      %v506 = vld [vmem:[#allocation2 + $0xf1] sm:$0xff]
      %v507 = vld [vmem:[#allocation2 + $0xf9] sm:$0xff]
      %v508 = vld [vmem:[#allocation2 + $0x109] sm:$0xff]
      %v509 = vld [vmem:[#allocation2 + $0x111] sm:$0xff]
      %v510 = vld [vmem:[#allocation2 + $0x121] sm:$0xff]
      %v511 = vld [vmem:[#allocation2 + $0x129] sm:$0xff]
      %v512 = vld [vmem:[#allocation2 + $0x139] sm:$0xff]
      %v513 = vld [vmem:[#allocation2 + $0x141] sm:$0xff]
      %v514 = vld [vmem:[#allocation2 + $0x151] sm:$0xff]
      %v515 = vld [vmem:[#allocation2 + $0x159] sm:$0xff]
      %v516 = vld [vmem:[#allocation2 + $0x169] sm:$0xff]
      %v517 = vld [vmem:[#allocation2 + $0x171] sm:$0xff]
      %v518 = vld [vmem:[#allocation2 + $0x2] sm:$0xff]
      %v519 = vld [vmem:[#allocation2 + $0xa] sm:$0xff]
      %v520 = vld [vmem:[#allocation2 + $0x1a] sm:$0xff]
      %v521 = vld [vmem:[#allocation2 + $0x22] sm:$0xff]
      %v522 = vld [vmem:[#allocation2 + $0x32] sm:$0xff]
      %v523 = vld [vmem:[#allocation2 + $0x3a] sm:$0xff]
      %v524 = vld [vmem:[#allocation2 + $0x4a] sm:$0xff]
      %v525 = vld [vmem:[#allocation2 + $0x52] sm:$0xff]
      %v526 = vld [vmem:[#allocation2 + $0x62] sm:$0xff]
      %v527 = vld [vmem:[#allocation2 + $0x6a] sm:$0xff]
      %v528 = vld [vmem:[#allocation2 + $0x7a] sm:$0xff]
      %v529 = vld [vmem:[#allocation2 + $0x82] sm:$0xff]
      %v530 = vld [vmem:[#allocation2 + $0x92] sm:$0xff]
      %v531 = vld [vmem:[#allocation2 + $0x9a] sm:$0xff]
      %v532 = vld [vmem:[#allocation2 + $0xaa] sm:$0xff]
      %v533 = vld [vmem:[#allocation2 + $0xb2] sm:$0xff]
      %v534 = vld [vmem:[#allocation2 + $0xc2] sm:$0xff]
      %v535 = vld [vmem:[#allocation2 + $0xca] sm:$0xff]
      %v536 = vld [vmem:[#allocation2 + $0xda] sm:$0xff]
      %v537 = vld [vmem:[#allocation2 + $0xe2] sm:$0xff]
      %v538 = vld [vmem:[#allocation2 + $0xf2] sm:$0xff]
      %v539 = vld [vmem:[#allocation2 + $0xfa] sm:$0xff]
      %v540 = vld [vmem:[#allocation2 + $0x10a] sm:$0xff]
      %v541 = vld [vmem:[#allocation2 + $0x112] sm:$0xff]
      %v542 = vld [vmem:[#allocation2 + $0x122] sm:$0xff]
      %v543 = vld [vmem:[#allocation2 + $0x12a] sm:$0xff]
      %v544 = vld [vmem:[#allocation2 + $0x13a] sm:$0xff]
      %v545 = vld [vmem:[#allocation2 + $0x142] sm:$0xff]
      %v546 = vld [vmem:[#allocation2 + $0x152] sm:$0xff]
      %v547 = vld [vmem:[#allocation2 + $0x15a] sm:$0xff]
      %v548 = vld [vmem:[#allocation2 + $0x16a] sm:$0xff]
      %v549 = vld [vmem:[#allocation2 + $0x172] sm:$0xff]
      %v550 = vld [vmem:[%s421] sm:$0xff]
      %v551 = vld [vmem:[%s421 + $0x8] sm:$0xff]
      %v552 = vld [vmem:[%s421 + $0x18] sm:$0xff]
      %v553 = vld [vmem:[%s421 + $0x20] sm:$0xff]
      %v554 = vld [vmem:[%s421 + $0x30] sm:$0xff]
      %v555 = vld [vmem:[%s421 + $0x38] sm:$0xff]
      %v556 = vld [vmem:[%s421 + $0x48] sm:$0xff]
      %v557 = vld [vmem:[%s421 + $0x50] sm:$0xff]
      %v558 = vld [vmem:[%s421 + $0x60] sm:$0xff]
      %v559 = vld [vmem:[%s421 + $0x68] sm:$0xff]
      %v560 = vld [vmem:[%s421 + $0x78] sm:$0xff]
      %v561 = vld [vmem:[%s421 + $0x80] sm:$0xff]
      %v562 = vld [vmem:[%s421 + $0x90] sm:$0xff]
      %v563 = vld [vmem:[%s421 + $0x98] sm:$0xff]
      %v564 = vld [vmem:[%s421 + $0xa8] sm:$0xff]
      %v565 = vld [vmem:[%s421 + $0xb0] sm:$0xff]
      %v566 = vld [vmem:[%s421 + $0xc0] sm:$0xff]
      %v567 = vld [vmem:[%s421 + $0xc8] sm:$0xff]
      %v568 = vld [vmem:[%s421 + $0xd8] sm:$0xff]
      %v569 = vld [vmem:[%s421 + $0xe0] sm:$0xff]
      %v570 = vld [vmem:[%s421 + $0xf0] sm:$0xff]
      %v571 = vld [vmem:[%s421 + $0xf8] sm:$0xff]
      %v572 = vld [vmem:[%s421 + $0x108] sm:$0xff]
      %v573 = vld [vmem:[%s421 + $0x110] sm:$0xff]
      %v574 = vld [vmem:[%s421 + $0x120] sm:$0xff]
      %v575 = vld [vmem:[%s421 + $0x128] sm:$0xff]
      %v576 = vld [vmem:[%s421 + $0x138] sm:$0xff]
      %v577 = vld [vmem:[%s421 + $0x140] sm:$0xff]
      %v578 = vld [vmem:[%s421 + $0x150] sm:$0xff]
      %v579 = vld [vmem:[%s421 + $0x158] sm:$0xff]
      %v580 = vld [vmem:[%s421 + $0x168] sm:$0xff]
      %v581 = vld [vmem:[%s421 + $0x170] sm:$0xff]
      %v582 = vld [vmem:[%s421 + $0x1] sm:$0xff]
      %v583 = vld [vmem:[%s421 + $0x9] sm:$0xff]
      %v584 = vld [vmem:[%s421 + $0x19] sm:$0xff]
      %v585 = vld [vmem:[%s421 + $0x21] sm:$0xff]
      %v586 = vld [vmem:[%s421 + $0x31] sm:$0xff]
      %v587 = vld [vmem:[%s421 + $0x39] sm:$0xff]
      %v588 = vld [vmem:[%s421 + $0x49] sm:$0xff]
      %v589 = vld [vmem:[%s421 + $0x51] sm:$0xff]
      %v590 = vld [vmem:[%s421 + $0x61] sm:$0xff]
      %v591 = vld [vmem:[%s421 + $0x69] sm:$0xff]
      %v592 = vld [vmem:[%s421 + $0x79] sm:$0xff]
      %v593 = vld [vmem:[%s421 + $0x81] sm:$0xff]
      %v594 = vld [vmem:[%s421 + $0x91] sm:$0xff]
      %v595 = vld [vmem:[%s421 + $0x99] sm:$0xff]
      %v596 = vld [vmem:[%s421 + $0xa9] sm:$0xff]
      %v597 = vld [vmem:[%s421 + $0xb1] sm:$0xff]
      %v598 = vld [vmem:[%s421 + $0xc1] sm:$0xff]
      %v599 = vld [vmem:[%s421 + $0xc9] sm:$0xff]
      %v600 = vld [vmem:[%s421 + $0xd9] sm:$0xff]
      %v601 = vld [vmem:[%s421 + $0xe1] sm:$0xff]
      %v602 = vld [vmem:[%s421 + $0xf1] sm:$0xff]
      %v603 = vld [vmem:[%s421 + $0xf9] sm:$0xff]
      %v604 = vld [vmem:[%s421 + $0x109] sm:$0xff]
      %v605 = vld [vmem:[%s421 + $0x111] sm:$0xff]
      %v606 = vld [vmem:[%s421 + $0x121] sm:$0xff]
      %v607 = vld [vmem:[%s421 + $0x129] sm:$0xff]
      %v608 = vld [vmem:[%s421 + $0x139] sm:$0xff]
      %v609 = vld [vmem:[%s421 + $0x141] sm:$0xff]
      %v610 = vld [vmem:[%s421 + $0x151] sm:$0xff]
      %v611 = vld [vmem:[%s421 + $0x159] sm:$0xff]
      %v612 = vld [vmem:[%s421 + $0x169] sm:$0xff]
      %v613 = vld [vmem:[%s421 + $0x171] sm:$0xff]
      %v614 = vld [vmem:[%s421 + $0x2] sm:$0xff]
      %v615 = vld [vmem:[%s421 + $0xa] sm:$0xff]
      %v616 = vld [vmem:[%s421 + $0x1a] sm:$0xff]
      %v617 = vld [vmem:[%s421 + $0x22] sm:$0xff]
      %v618 = vld [vmem:[%s421 + $0x32] sm:$0xff]
      %v619 = vld [vmem:[%s421 + $0x3a] sm:$0xff]
      %v620 = vld [vmem:[%s421 + $0x4a] sm:$0xff]
      %v621 = vld [vmem:[%s421 + $0x52] sm:$0xff]
      %v622 = vld [vmem:[%s421 + $0x62] sm:$0xff]
      %v623 = vld [vmem:[%s421 + $0x6a] sm:$0xff]
      %v624 = vld [vmem:[%s421 + $0x7a] sm:$0xff]
      %v625 = vld [vmem:[%s421 + $0x82] sm:$0xff]
      %v626 = vld [vmem:[%s421 + $0x92] sm:$0xff]
      %v627 = vld [vmem:[%s421 + $0x9a] sm:$0xff]
      %v628 = vld [vmem:[%s421 + $0xaa] sm:$0xff]
      %v629 = vld [vmem:[%s421 + $0xb2] sm:$0xff]
      %v630 = vld [vmem:[%s421 + $0xc2] sm:$0xff]
      %v631 = vld [vmem:[%s421 + $0xca] sm:$0xff]
      %v632 = vld [vmem:[%s421 + $0xda] sm:$0xff]
      %v633 = vld [vmem:[%s421 + $0xe2] sm:$0xff]
      %v634 = vld [vmem:[%s421 + $0xf2] sm:$0xff]
      %v635 = vld [vmem:[%s421 + $0xfa] sm:$0xff]
      %v636 = vld [vmem:[%s421 + $0x10a] sm:$0xff]
      %v637 = vld [vmem:[%s421 + $0x112] sm:$0xff]
      %v638 = vld [vmem:[%s421 + $0x122] sm:$0xff]
      %v639 = vld [vmem:[%s421 + $0x12a] sm:$0xff]
      %v640 = vld [vmem:[%s421 + $0x13a] sm:$0xff]
      %v641 = vld [vmem:[%s421 + $0x142] sm:$0xff]
      %v642 = vld [vmem:[%s421 + $0x152] sm:$0xff]
      %v643 = vld [vmem:[%s421 + $0x15a] sm:$0xff]
      %v644 = vld [vmem:[%s421 + $0x16a] sm:$0xff]
      %v645 = vld [vmem:[%s421 + $0x172] sm:$0xff]
      %s646 = scalar_lea.vmem [#allocation2], 48
      %v647 = vld [vmem:[%s646] sm:$0xff]
      %v648 = vld [vmem:[%s646 + $0x8] sm:$0xff]
      %v649 = vld [vmem:[%s646 + $0x18] sm:$0xff]
      %v650 = vld [vmem:[%s646 + $0x20] sm:$0xff]
      %v651 = vld [vmem:[%s646 + $0x30] sm:$0xff]
      %v652 = vld [vmem:[%s646 + $0x38] sm:$0xff]
      %v653 = vld [vmem:[%s646 + $0x48] sm:$0xff]
      %v654 = vld [vmem:[%s646 + $0x50] sm:$0xff]
      %v655 = vld [vmem:[%s646 + $0x60] sm:$0xff]
      %v656 = vld [vmem:[%s646 + $0x68] sm:$0xff]
      %v657 = vld [vmem:[%s646 + $0x78] sm:$0xff]
      %v658 = vld [vmem:[%s646 + $0x80] sm:$0xff]
      %v659 = vld [vmem:[%s646 + $0x90] sm:$0xff]
      %v660 = vld [vmem:[%s646 + $0x98] sm:$0xff]
      %v661 = vld [vmem:[%s646 + $0xa8] sm:$0xff]
      %v662 = vld [vmem:[%s646 + $0xb0] sm:$0xff]
      %v663 = vld [vmem:[%s646 + $0xc0] sm:$0xff]
      %v664 = vld [vmem:[%s646 + $0xc8] sm:$0xff]
      %v665 = vld [vmem:[%s646 + $0xd8] sm:$0xff]
      %v666 = vld [vmem:[%s646 + $0xe0] sm:$0xff]
      %v667 = vld [vmem:[%s646 + $0xf0] sm:$0xff]
      %v668 = vld [vmem:[%s646 + $0xf8] sm:$0xff]
      %v669 = vld [vmem:[%s646 + $0x108] sm:$0xff]
      %v670 = vld [vmem:[%s646 + $0x110] sm:$0xff]
      %v671 = vld [vmem:[%s646 + $0x120] sm:$0xff]
      %v672 = vld [vmem:[%s646 + $0x128] sm:$0xff]
      %v673 = vld [vmem:[%s646 + $0x138] sm:$0xff]
      %v674 = vld [vmem:[%s646 + $0x140] sm:$0xff]
      %v675 = vld [vmem:[%s646 + $0x150] sm:$0xff]
      %v676 = vld [vmem:[%s646 + $0x158] sm:$0xff]
      %v677 = vld [vmem:[%s646 + $0x168] sm:$0xff]
      %v678 = vld [vmem:[%s646 + $0x170] sm:$0xff]
      %v679 = vld [vmem:[%s646 + $0x1] sm:$0xff]
      %v680 = vld [vmem:[%s646 + $0x9] sm:$0xff]
      %v681 = vld [vmem:[%s646 + $0x19] sm:$0xff]
      %v682 = vld [vmem:[%s646 + $0x21] sm:$0xff]
      %v683 = vld [vmem:[%s646 + $0x31] sm:$0xff]
      %v684 = vld [vmem:[%s646 + $0x39] sm:$0xff]
      %v685 = vld [vmem:[%s646 + $0x49] sm:$0xff]
      %v686 = vld [vmem:[%s646 + $0x51] sm:$0xff]
      %v687 = vld [vmem:[%s646 + $0x61] sm:$0xff]
      %v688 = vld [vmem:[%s646 + $0x69] sm:$0xff]
      %v689 = vld [vmem:[%s646 + $0x79] sm:$0xff]
      %v690 = vld [vmem:[%s646 + $0x81] sm:$0xff]
      %v691 = vld [vmem:[%s646 + $0x91] sm:$0xff]
      %v692 = vld [vmem:[%s646 + $0x99] sm:$0xff]
      %v693 = vld [vmem:[%s646 + $0xa9] sm:$0xff]
      %v694 = vld [vmem:[%s646 + $0xb1] sm:$0xff]
      %v695 = vld [vmem:[%s646 + $0xc1] sm:$0xff]
      %v696 = vld [vmem:[%s646 + $0xc9] sm:$0xff]
      %v697 = vld [vmem:[%s646 + $0xd9] sm:$0xff]
      %v698 = vld [vmem:[%s646 + $0xe1] sm:$0xff]
      %v699 = vld [vmem:[%s646 + $0xf1] sm:$0xff]
      %v700 = vld [vmem:[%s646 + $0xf9] sm:$0xff]
      %v701 = vld [vmem:[%s646 + $0x109] sm:$0xff]
      %v702 = vld [vmem:[%s646 + $0x111] sm:$0xff]
      %v703 = vld [vmem:[%s646 + $0x121] sm:$0xff]
      %v704 = vld [vmem:[%s646 + $0x129] sm:$0xff]
      %v705 = vld [vmem:[%s646 + $0x139] sm:$0xff]
      %v706 = vld [vmem:[%s646 + $0x141] sm:$0xff]
      %v707 = vld [vmem:[%s646 + $0x151] sm:$0xff]
      %v708 = vld [vmem:[%s646 + $0x159] sm:$0xff]
      %v709 = vld [vmem:[%s646 + $0x169] sm:$0xff]
      %v710 = vld [vmem:[%s646 + $0x171] sm:$0xff]
      %v711 = vld [vmem:[%s646 + $0x2] sm:$0xff]
      %v712 = vld [vmem:[%s646 + $0xa] sm:$0xff]
      %v713 = vld [vmem:[%s646 + $0x1a] sm:$0xff]
      %v714 = vld [vmem:[%s646 + $0x22] sm:$0xff]
      %v715 = vld [vmem:[%s646 + $0x32] sm:$0xff]
      %v716 = vld [vmem:[%s646 + $0x3a] sm:$0xff]
      %v717 = vld [vmem:[%s646 + $0x4a] sm:$0xff]
      %v718 = vld [vmem:[%s646 + $0x52] sm:$0xff]
      %v719 = vld [vmem:[%s646 + $0x62] sm:$0xff]
      %v720 = vld [vmem:[%s646 + $0x6a] sm:$0xff]
      %v721 = vld [vmem:[%s646 + $0x7a] sm:$0xff]
      %v722 = vld [vmem:[%s646 + $0x82] sm:$0xff]
      %v723 = vld [vmem:[%s646 + $0x92] sm:$0xff]
      %v724 = vld [vmem:[%s646 + $0x9a] sm:$0xff]
      %v725 = vld [vmem:[%s646 + $0xaa] sm:$0xff]
      %v726 = vld [vmem:[%s646 + $0xb2] sm:$0xff]
      %v727 = vld [vmem:[%s646 + $0xc2] sm:$0xff]
      %v728 = vld [vmem:[%s646 + $0xca] sm:$0xff]
      %v729 = vld [vmem:[%s646 + $0xda] sm:$0xff]
      %v730 = vld [vmem:[%s646 + $0xe2] sm:$0xff]
      %v731 = vld [vmem:[%s646 + $0xf2] sm:$0xff]
      %v732 = vld [vmem:[%s646 + $0xfa] sm:$0xff]
      %v733 = vld [vmem:[%s646 + $0x10a] sm:$0xff]
      %v734 = vld [vmem:[%s646 + $0x112] sm:$0xff]
      %v735 = vld [vmem:[%s646 + $0x122] sm:$0xff]
      %v736 = vld [vmem:[%s646 + $0x12a] sm:$0xff]
      %v737 = vld [vmem:[%s646 + $0x13a] sm:$0xff]
      %v738 = vld [vmem:[%s646 + $0x142] sm:$0xff]
      %v739 = vld [vmem:[%s646 + $0x152] sm:$0xff]
      %v740 = vld [vmem:[%s646 + $0x15a] sm:$0xff]
      %v741 = vld [vmem:[%s646 + $0x16a] sm:$0xff]
      %v742 = vld [vmem:[%s646 + $0x172] sm:$0xff]
      %v743 = vld [vmem:[%s3] sm:$0xff]
      %v744 = vld [vmem:[%s3 + $0x8] sm:$0xff]
      %v745 = vld [vmem:[%s3 + $0x10] sm:$0xff]
      %v746 = vld [vmem:[%s3 + $0x18] sm:$0xff]
      %v747 = vld [vmem:[%s3 + $0x20] sm:$0xff]
      %v748 = vld [vmem:[%s3 + $0x28] sm:$0xff]
      %v749 = vld [vmem:[%s3 + $0x30] sm:$0xff]
      %v750 = vld [vmem:[%s3 + $0x38] sm:$0xff]
      %v751 = vld [vmem:[%s3 + $0x40] sm:$0xff]
      %v752 = vld [vmem:[%s3 + $0x48] sm:$0xff]
      %v753 = vld [vmem:[%s3 + $0x50] sm:$0xff]
      %v754 = vld [vmem:[%s3 + $0x58] sm:$0xff]
      %v755 = vld [vmem:[%s3 + $0x60] sm:$0xff]
      %v756 = vld [vmem:[%s3 + $0x68] sm:$0xff]
      %v757 = vld [vmem:[%s3 + $0x70] sm:$0xff]
      %v758 = vld [vmem:[%s3 + $0x78] sm:$0xff]
      %v759 = vld [vmem:[%s3 + $0x80] sm:$0xff]
      %v760 = vld [vmem:[%s3 + $0x88] sm:$0xff]
      %v761 = vld [vmem:[%s3 + $0x90] sm:$0xff]
      %v762 = vld [vmem:[%s3 + $0x98] sm:$0xff]
      %v763 = vld [vmem:[%s3 + $0xa0] sm:$0xff]
      %v764 = vld [vmem:[%s3 + $0xa8] sm:$0xff]
      %v765 = vld [vmem:[%s3 + $0xb0] sm:$0xff]
      %v766 = vld [vmem:[%s3 + $0xb8] sm:$0xff]
      %v767 = vld [vmem:[%s3 + $0xc0] sm:$0xff]
      %v768 = vld [vmem:[%s3 + $0xc8] sm:$0xff]
      %v769 = vld [vmem:[%s3 + $0xd0] sm:$0xff]
      %v770 = vld [vmem:[%s3 + $0xd8] sm:$0xff]
      %v771 = vld [vmem:[%s3 + $0xe0] sm:$0xff]
      %v772 = vld [vmem:[%s3 + $0xe8] sm:$0xff]
      %v773 = vld [vmem:[%s3 + $0xf0] sm:$0xff]
      %v774 = vld [vmem:[%s3 + $0xf8] sm:$0xff]
      %v775 = vld [vmem:[%s3 + $0x100] sm:$0xff]
      %v776 = vld [vmem:[%s3 + $0x108] sm:$0xff]
      %v777 = vld [vmem:[%s3 + $0x110] sm:$0xff]
      %v778 = vld [vmem:[%s3 + $0x118] sm:$0xff]
      %v779 = vld [vmem:[%s3 + $0x120] sm:$0xff]
      %v780 = vld [vmem:[%s3 + $0x128] sm:$0xff]
      %v781 = vld [vmem:[%s3 + $0x130] sm:$0xff]
      %v782 = vld [vmem:[%s3 + $0x138] sm:$0xff]
      %v783 = vld [vmem:[%s3 + $0x140] sm:$0xff]
      %v784 = vld [vmem:[%s3 + $0x148] sm:$0xff]
      %v785 = vld [vmem:[%s3 + $0x150] sm:$0xff]
      %v786 = vld [vmem:[%s3 + $0x158] sm:$0xff]
      %v787 = vld [vmem:[%s3 + $0x160] sm:$0xff]
      %v788 = vld [vmem:[%s3 + $0x168] sm:$0xff]
      %v789 = vld [vmem:[%s3 + $0x170] sm:$0xff]
      %v790 = vld [vmem:[%s3 + $0x178] sm:$0xff]
      %v791 = vld [vmem:[%s3 + $0x180] sm:$0xff]
      %v792 = vld [vmem:[%s3 + $0x188] sm:$0xff]
      %v793 = vld [vmem:[%s3 + $0x190] sm:$0xff]
      %v794 = vld [vmem:[%s3 + $0x198] sm:$0xff]
      %v795 = vld [vmem:[%s3 + $0x1a0] sm:$0xff]
      %v796 = vld [vmem:[%s3 + $0x1a8] sm:$0xff]
      %v797 = vld [vmem:[%s3 + $0x1b0] sm:$0xff]
      %v798 = vld [vmem:[%s3 + $0x1b8] sm:$0xff]
      %v799 = vld [vmem:[%s3 + $0x1c0] sm:$0xff]
      %v800 = vld [vmem:[%s3 + $0x1c8] sm:$0xff]
      %v801 = vld [vmem:[%s3 + $0x1d0] sm:$0xff]
      %v802 = vld [vmem:[%s3 + $0x1d8] sm:$0xff]
      %v803 = vld [vmem:[%s3 + $0x1e0] sm:$0xff]
      %v804 = vld [vmem:[%s3 + $0x1e8] sm:$0xff]
      %v805 = vld [vmem:[%s3 + $0x1f0] sm:$0xff]
      %v806 = vld [vmem:[%s3 + $0x1f8] sm:$0xff]
      %v807 = vld [vmem:[%s3 + $0x200] sm:$0xff]
      %v808 = vld [vmem:[%s3 + $0x208] sm:$0xff]
      %v809 = vld [vmem:[%s3 + $0x210] sm:$0xff]
      %v810 = vld [vmem:[%s3 + $0x218] sm:$0xff]
      %v811 = vld [vmem:[%s3 + $0x220] sm:$0xff]
      %v812 = vld [vmem:[%s3 + $0x228] sm:$0xff]
      %v813 = vld [vmem:[%s3 + $0x230] sm:$0xff]
      %v814 = vld [vmem:[%s3 + $0x238] sm:$0xff]
      %v815 = vld [vmem:[%s3 + $0x240] sm:$0xff]
      %v816 = vld [vmem:[%s3 + $0x248] sm:$0xff]
      %v817 = vld [vmem:[%s3 + $0x250] sm:$0xff]
      %v818 = vld [vmem:[%s3 + $0x258] sm:$0xff]
      %v819 = vld [vmem:[%s3 + $0x260] sm:$0xff]
      %v820 = vld [vmem:[%s3 + $0x268] sm:$0xff]
      %v821 = vld [vmem:[%s3 + $0x270] sm:$0xff]
      %v822 = vld [vmem:[%s3 + $0x278] sm:$0xff]
      %v823 = vld [vmem:[%s3 + $0x280] sm:$0xff]
      %v824 = vld [vmem:[%s3 + $0x288] sm:$0xff]
      %v825 = vld [vmem:[%s3 + $0x290] sm:$0xff]
      %v826 = vld [vmem:[%s3 + $0x298] sm:$0xff]
      %v827 = vld [vmem:[%s3 + $0x2a0] sm:$0xff]
      %v828 = vld [vmem:[%s3 + $0x2a8] sm:$0xff]
      %v829 = vld [vmem:[%s3 + $0x2b0] sm:$0xff]
      %v830 = vld [vmem:[%s3 + $0x2b8] sm:$0xff]
      %v831 = vld [vmem:[%s3 + $0x2c0] sm:$0xff]
      %v832 = vld [vmem:[%s3 + $0x2c8] sm:$0xff]
      %v833 = vld [vmem:[%s3 + $0x2d0] sm:$0xff]
      %v834 = vld [vmem:[%s3 + $0x2d8] sm:$0xff]
      %v835 = vld [vmem:[%s3 + $0x2e0] sm:$0xff]
      %v836 = vld [vmem:[%s3 + $0x2e8] sm:$0xff]
      %v837 = vld [vmem:[%s3 + $0x2f0] sm:$0xff]
      %v838 = vld [vmem:[%s3 + $0x2f8] sm:$0xff]
      %v839 = vld [vmem:[%s3 + $0x300] sm:$0xff]
      %v840 = vld [vmem:[%s3 + $0x308] sm:$0xff]
      %v841 = vld [vmem:[%s3 + $0x310] sm:$0xff]
      %v842 = vld [vmem:[%s3 + $0x318] sm:$0xff]
      %v843 = vld [vmem:[%s3 + $0x320] sm:$0xff]
      %v844 = vld [vmem:[%s3 + $0x328] sm:$0xff]
      %v845 = vld [vmem:[%s3 + $0x330] sm:$0xff]
      %v846 = vld [vmem:[%s3 + $0x338] sm:$0xff]
      %v847 = vld [vmem:[%s3 + $0x340] sm:$0xff]
      %v848 = vld [vmem:[%s3 + $0x348] sm:$0xff]
      %v849 = vld [vmem:[%s3 + $0x350] sm:$0xff]
      %v850 = vld [vmem:[%s3 + $0x358] sm:$0xff]
      %v851 = vld [vmem:[%s3 + $0x360] sm:$0xff]
      %v852 = vld [vmem:[%s3 + $0x368] sm:$0xff]
      %v853 = vld [vmem:[%s3 + $0x370] sm:$0xff]
      %v854 = vld [vmem:[%s3 + $0x378] sm:$0xff]
      %v855 = vld [vmem:[%s3 + $0x380] sm:$0xff]
      %v856 = vld [vmem:[%s3 + $0x388] sm:$0xff]
      %v857 = vld [vmem:[%s3 + $0x390] sm:$0xff]
      %v858 = vld [vmem:[%s3 + $0x398] sm:$0xff]
      %v859 = vld [vmem:[%s3 + $0x3a0] sm:$0xff]
      %v860 = vld [vmem:[%s3 + $0x3a8] sm:$0xff]
      %v861 = vld [vmem:[%s3 + $0x3b0] sm:$0xff]
      %v862 = vld [vmem:[%s3 + $0x3b8] sm:$0xff]
      %v863 = vld [vmem:[%s3 + $0x3c0] sm:$0xff]
      %v864 = vld [vmem:[%s3 + $0x3c8] sm:$0xff]
      %v865 = vld [vmem:[%s3 + $0x3d0] sm:$0xff]
      %v866 = vld [vmem:[%s3 + $0x3d8] sm:$0xff]
      %v867 = vld [vmem:[%s3 + $0x3e0] sm:$0xff]
      %v868 = vld [vmem:[%s3 + $0x3e8] sm:$0xff]
      %v869 = vld [vmem:[%s3 + $0x3f0] sm:$0xff]
      %v870 = vld [vmem:[%s3 + $0x3f8] sm:$0xff]
      %v871 = vld [vmem:[%s3 + $0x400] sm:$0xff]
      %v872 = vld [vmem:[%s3 + $0x408] sm:$0xff]
      %v873 = vld [vmem:[%s3 + $0x410] sm:$0xff]
      %v874 = vld [vmem:[%s3 + $0x418] sm:$0xff]
      %v875 = vld [vmem:[%s3 + $0x420] sm:$0xff]
      %v876 = vld [vmem:[%s3 + $0x428] sm:$0xff]
      %v877 = vld [vmem:[%s3 + $0x430] sm:$0xff]
      %v878 = vld [vmem:[%s3 + $0x438] sm:$0xff]
      %v879 = vld [vmem:[%s3 + $0x440] sm:$0xff]
      %v880 = vld [vmem:[%s3 + $0x448] sm:$0xff]
      %v881 = vld [vmem:[%s3 + $0x450] sm:$0xff]
      %v882 = vld [vmem:[%s3 + $0x458] sm:$0xff]
      %v883 = vld [vmem:[%s3 + $0x460] sm:$0xff]
      %v884 = vld [vmem:[%s3 + $0x468] sm:$0xff]
      %v885 = vld [vmem:[%s3 + $0x470] sm:$0xff]
      %v886 = vld [vmem:[%s3 + $0x478] sm:$0xff]
      %887 = vmatprep.subr.mxu0 0.0
      %888 = vmatpush1.msra.mxu0 %v758
      %889 = vmatprep.subr.mxu0 0.0
      %890 = vmatpush1.msra.mxu0 %v757
      %891 = vmatprep.subr.mxu0 0.0
      %892 = vmatpush1.msra.mxu0 %v756
      %893 = vmatprep.subr.mxu0 0.0
      %894 = vmatpush1.msra.mxu0 %v755
      %895 = vmatprep.subr.mxu0 0.0
      %896 = vmatpush1.msra.mxu0 %v754
      %897 = vmatprep.subr.mxu0 0.0
      %898 = vmatpush1.msra.mxu0 %v753
      %899 = vmatprep.subr.mxu0 0.0
      %900 = vmatpush1.msra.mxu0 %v752
      %901 = vmatprep.subr.mxu0 0.0
      %902 = vmatpush1.msra.mxu0 %v751
      %903 = vmatprep.subr.mxu0 0.0
      %904 = vmatpush1.msra.mxu0 %v750
      %905 = vmatprep.subr.mxu0 0.0
      %906 = vmatpush1.msra.mxu0 %v749
      %907 = vmatprep.subr.mxu0 0.0
      %908 = vmatpush1.msra.mxu0 %v748
      %909 = vmatprep.subr.mxu0 0.0
      %910 = vmatpush1.msra.mxu0 %v747
      %911 = vmatprep.subr.mxu0 0.0
      %912 = vmatpush1.msra.mxu0 %v746
      %913 = vmatprep.subr.mxu0 0.0
      %914 = vmatpush1.msra.mxu0 %v745
      %915 = vmatprep.subr.mxu0 0.0
      %916 = vmatpush1.msra.mxu0 %v744
      %917 = vmatprep.subr.mxu0 0.0
      %918 = vmatpush1.msra.mxu0 %v743
      %919 = vmatprep.subr.mxu0 0.0
      %920 = vmatpush2.msra.mxu0 %v774
      %921 = vmatprep.subr.mxu0 0.0
      %922 = vmatpush2.msra.mxu0 %v773
      %923 = vmatprep.subr.mxu0 0.0
      %924 = vmatpush2.msra.mxu0 %v772
      %925 = vmatprep.subr.mxu0 0.0
      %926 = vmatpush2.msra.mxu0 %v771
      %927 = vmatprep.subr.mxu0 0.0
      %928 = vmatpush2.msra.mxu0 %v770
      %929 = vmatprep.subr.mxu0 0.0
      %930 = vmatpush2.msra.mxu0 %v769
      %931 = vmatprep.subr.mxu0 0.0
      %932 = vmatpush2.msra.mxu0 %v768
      %933 = vmatprep.subr.mxu0 0.0
      %934 = vmatpush2.msra.mxu0 %v767
      %935 = vmatprep.subr.mxu0 0.0
      %936 = vmatpush2.msra.mxu0 %v766
      %937 = vmatprep.subr.mxu0 0.0
      %938 = vmatpush2.msra.mxu0 %v765
      %939 = vmatprep.subr.mxu0 0.0
      %940 = vmatpush2.msra.mxu0 %v764
      %941 = vmatprep.subr.mxu0 0.0
      %942 = vmatpush2.msra.mxu0 %v763
      %943 = vmatprep.subr.mxu0 0.0
      %944 = vmatpush2.msra.mxu0 %v762
      %945 = vmatprep.subr.mxu0 0.0
      %946 = vmatpush2.msra.mxu0 %v761
      %947 = vmatprep.subr.mxu0 0.0
      %948 = vmatpush2.msra.mxu0 %v760
      %949 = vmatprep.subr.mxu0 0.0
      %950 = vmatpush2.msra.mxu0 %v759
      %951 = vmatprep.mubr.f32.mxu0 %v486
      %952 = vmatmul.mubr.f32.gmra.mxu0 %v454
      %v953 = vpop.f32.mrf.mxu0
      %v954 = vadd.f32 0.0, %v953
      %v955 = vpop.f32.mrf.mxu0
      %956 = vmatprep.mubr.f32.mxu0 %v487
      %957 = vmatmul.mubr.f32.gmra.mxu0 %v455
      %v958 = vpop.f32.mrf.mxu0
      %v959 = vadd.f32 0.0, %v958
      %v960 = vpop.f32.mrf.mxu0
      %961 = vmatprep.mubr.f32.mxu0 %v488
      %962 = vmatmul.mubr.f32.gmra.mxu0 %v456
      %v963 = vpop.f32.mrf.mxu0
      %v964 = vadd.f32 0.0, %v963
      %v965 = vpop.f32.mrf.mxu0
      %966 = vmatprep.mubr.f32.mxu0 %v489
      %967 = vmatmul.mubr.f32.gmra.mxu0 %v457
      %v968 = vpop.f32.mrf.mxu0
      %v969 = vadd.f32 0.0, %v968
      %v970 = vpop.f32.mrf.mxu0
      %971 = vmatprep.mubr.f32.mxu0 %v490
      %972 = vmatmul.mubr.f32.gmra.mxu0 %v458
      %v973 = vpop.f32.mrf.mxu0
      %v974 = vadd.f32 0.0, %v973
      %v975 = vpop.f32.mrf.mxu0
      %976 = vmatprep.mubr.f32.mxu0 %v491
      %977 = vmatmul.mubr.f32.gmra.mxu0 %v459
      %v978 = vpop.f32.mrf.mxu0
      %v979 = vadd.f32 0.0, %v978
      %v980 = vpop.f32.mrf.mxu0
      %981 = vmatprep.mubr.f32.mxu0 %v492
      %982 = vmatmul.mubr.f32.gmra.mxu0 %v460
      %v983 = vpop.f32.mrf.mxu0
      %v984 = vadd.f32 0.0, %v983
      %v985 = vpop.f32.mrf.mxu0
      %986 = vmatprep.mubr.f32.mxu0 %v493
      %987 = vmatmul.mubr.f32.gmra.mxu0 %v461
      %v988 = vpop.f32.mrf.mxu0
      %v989 = vadd.f32 0.0, %v988
      %v990 = vpop.f32.mrf.mxu0
      %991 = vmatprep.mubr.f32.mxu0 %v494
      %992 = vmatmul.mubr.f32.gmra.mxu0 %v462
      %v993 = vpop.f32.mrf.mxu0
      %v994 = vadd.f32 0.0, %v993
      %v995 = vpop.f32.mrf.mxu0
      %996 = vmatprep.mubr.f32.mxu0 %v495
      %997 = vmatmul.mubr.f32.gmra.mxu0 %v463
      %v998 = vpop.f32.mrf.mxu0
      %v999 = vadd.f32 0.0, %v998
      %v1000 = vpop.f32.mrf.mxu0
      %1001 = vmatprep.mubr.f32.mxu0 %v496
      %1002 = vmatmul.mubr.f32.gmra.mxu0 %v464
      %v1003 = vpop.f32.mrf.mxu0
      %v1004 = vadd.f32 0.0, %v1003
      %v1005 = vpop.f32.mrf.mxu0
      %1006 = vmatprep.mubr.f32.mxu0 %v497
      %1007 = vmatmul.mubr.f32.gmra.mxu0 %v465
      %v1008 = vpop.f32.mrf.mxu0
      %v1009 = vadd.f32 0.0, %v1008
      %v1010 = vpop.f32.mrf.mxu0
      %1011 = vmatprep.mubr.f32.mxu0 %v498
      %1012 = vmatmul.mubr.f32.gmra.mxu0 %v466
      %v1013 = vpop.f32.mrf.mxu0
      %v1014 = vadd.f32 0.0, %v1013
      %v1015 = vpop.f32.mrf.mxu0
      %1016 = vmatprep.mubr.f32.mxu0 %v499
      %1017 = vmatmul.mubr.f32.gmra.mxu0 %v467
      %v1018 = vpop.f32.mrf.mxu0
      %v1019 = vadd.f32 0.0, %v1018
      %v1020 = vpop.f32.mrf.mxu0
      %1021 = vmatprep.mubr.f32.mxu0 %v500
      %1022 = vmatmul.mubr.f32.gmra.mxu0 %v468
      %v1023 = vpop.f32.mrf.mxu0
      %v1024 = vadd.f32 0.0, %v1023
      %v1025 = vpop.f32.mrf.mxu0
      %1026 = vmatprep.mubr.f32.mxu0 %v501
      %1027 = vmatmul.mubr.f32.gmra.mxu0 %v469
      %v1028 = vpop.f32.mrf.mxu0
      %v1029 = vadd.f32 0.0, %v1028
      %v1030 = vpop.f32.mrf.mxu0
      %1031 = vmatprep.mubr.f32.mxu0 %v502
      %1032 = vmatmul.mubr.f32.gmra.mxu0 %v470
      %v1033 = vpop.f32.mrf.mxu0
      %v1034 = vadd.f32 0.0, %v1033
      %v1035 = vpop.f32.mrf.mxu0
      %1036 = vmatprep.mubr.f32.mxu0 %v503
      %1037 = vmatmul.mubr.f32.gmra.mxu0 %v471
      %v1038 = vpop.f32.mrf.mxu0
      %v1039 = vadd.f32 0.0, %v1038
      %v1040 = vpop.f32.mrf.mxu0
      %1041 = vmatprep.mubr.f32.mxu0 %v504
      %1042 = vmatmul.mubr.f32.gmra.mxu0 %v472
      %v1043 = vpop.f32.mrf.mxu0
      %v1044 = vadd.f32 0.0, %v1043
      %v1045 = vpop.f32.mrf.mxu0
      %1046 = vmatprep.mubr.f32.mxu0 %v505
      %1047 = vmatmul.mubr.f32.gmra.mxu0 %v473
      %v1048 = vpop.f32.mrf.mxu0
      %v1049 = vadd.f32 0.0, %v1048
      %v1050 = vpop.f32.mrf.mxu0
      %1051 = vmatprep.mubr.f32.mxu0 %v506
      %1052 = vmatmul.mubr.f32.gmra.mxu0 %v474
      %v1053 = vpop.f32.mrf.mxu0
      %v1054 = vadd.f32 0.0, %v1053
      %v1055 = vpop.f32.mrf.mxu0
      %1056 = vmatprep.mubr.f32.mxu0 %v507
      %1057 = vmatmul.mubr.f32.gmra.mxu0 %v475
      %v1058 = vpop.f32.mrf.mxu0
      %v1059 = vadd.f32 0.0, %v1058
      %v1060 = vpop.f32.mrf.mxu0
      %1061 = vmatprep.mubr.f32.mxu0 %v508
      %1062 = vmatmul.mubr.f32.gmra.mxu0 %v476
      %v1063 = vpop.f32.mrf.mxu0
      %v1064 = vadd.f32 0.0, %v1063
      %v1065 = vpop.f32.mrf.mxu0
      %1066 = vmatprep.mubr.f32.mxu0 %v509
      %1067 = vmatmul.mubr.f32.gmra.mxu0 %v477
      %v1068 = vpop.f32.mrf.mxu0
      %v1069 = vadd.f32 0.0, %v1068
      %v1070 = vpop.f32.mrf.mxu0
      %1071 = vmatprep.mubr.f32.mxu0 %v510
      %1072 = vmatmul.mubr.f32.gmra.mxu0 %v478
      %v1073 = vpop.f32.mrf.mxu0
      %v1074 = vadd.f32 0.0, %v1073
      %v1075 = vpop.f32.mrf.mxu0
      %1076 = vmatprep.mubr.f32.mxu0 %v511
      %1077 = vmatmul.mubr.f32.gmra.mxu0 %v479
      %v1078 = vpop.f32.mrf.mxu0
      %v1079 = vadd.f32 0.0, %v1078
      %v1080 = vpop.f32.mrf.mxu0
      %1081 = vmatprep.mubr.f32.mxu0 %v512
      %1082 = vmatmul.mubr.f32.gmra.mxu0 %v480
      %v1083 = vpop.f32.mrf.mxu0
      %v1084 = vadd.f32 0.0, %v1083
      %v1085 = vpop.f32.mrf.mxu0
      %1086 = vmatprep.mubr.f32.mxu0 %v513
      %1087 = vmatmul.mubr.f32.gmra.mxu0 %v481
      %v1088 = vpop.f32.mrf.mxu0
      %v1089 = vadd.f32 0.0, %v1088
      %v1090 = vpop.f32.mrf.mxu0
      %1091 = vmatprep.mubr.f32.mxu0 %v514
      %1092 = vmatmul.mubr.f32.gmra.mxu0 %v482
      %v1093 = vpop.f32.mrf.mxu0
      %v1094 = vadd.f32 0.0, %v1093
      %v1095 = vpop.f32.mrf.mxu0
      %1096 = vmatprep.mubr.f32.mxu0 %v515
      %1097 = vmatmul.mubr.f32.gmra.mxu0 %v483
      %v1098 = vpop.f32.mrf.mxu0
      %v1099 = vadd.f32 0.0, %v1098
      %v1100 = vpop.f32.mrf.mxu0
      %1101 = vmatprep.mubr.f32.mxu0 %v516
      %1102 = vmatmul.mubr.f32.gmra.mxu0 %v484
      %v1103 = vpop.f32.mrf.mxu0
      %v1104 = vadd.f32 0.0, %v1103
      %v1105 = vpop.f32.mrf.mxu0
      %1106 = vmatprep.mubr.f32.mxu0 %v517
      %1107 = vmatmul.mubr.f32.gmra.mxu0 %v485
      %v1108 = vpop.f32.mrf.mxu0
      %v1109 = vadd.f32 0.0, %v1108
      %v1110 = vpop.f32.mrf.mxu0
      %1111 = vdwg.mxu0
      %1112 = vmatprep.subr.mxu0 0.0
      %1113 = vmatpush1.msra.mxu0 %v790
      %1114 = vmatprep.subr.mxu0 0.0
      %1115 = vmatpush1.msra.mxu0 %v789
      %1116 = vmatprep.subr.mxu0 0.0
      %1117 = vmatpush1.msra.mxu0 %v788
      %1118 = vmatprep.subr.mxu0 0.0
      %1119 = vmatpush1.msra.mxu0 %v787
      %1120 = vmatprep.subr.mxu0 0.0
      %1121 = vmatpush1.msra.mxu0 %v786
      %1122 = vmatprep.subr.mxu0 0.0
      %1123 = vmatpush1.msra.mxu0 %v785
      %1124 = vmatprep.subr.mxu0 0.0
      %1125 = vmatpush1.msra.mxu0 %v784
      %1126 = vmatprep.subr.mxu0 0.0
      %1127 = vmatpush1.msra.mxu0 %v783
      %1128 = vmatprep.subr.mxu0 0.0
      %1129 = vmatpush1.msra.mxu0 %v782
      %1130 = vmatprep.subr.mxu0 0.0
      %1131 = vmatpush1.msra.mxu0 %v781
      %1132 = vmatprep.subr.mxu0 0.0
      %1133 = vmatpush1.msra.mxu0 %v780
      %1134 = vmatprep.subr.mxu0 0.0
      %1135 = vmatpush1.msra.mxu0 %v779
      %1136 = vmatprep.subr.mxu0 0.0
      %1137 = vmatpush1.msra.mxu0 %v778
      %1138 = vmatprep.subr.mxu0 0.0
      %1139 = vmatpush1.msra.mxu0 %v777
      %1140 = vmatprep.subr.mxu0 0.0
      %1141 = vmatpush1.msra.mxu0 %v776
      %1142 = vmatprep.subr.mxu0 0.0
      %1143 = vmatpush1.msra.mxu0 %v775
      %1144 = vmatprep.subr.mxu0 0.0
      %1145 = vmatpush2.msra.mxu0 %v806
      %1146 = vmatprep.subr.mxu0 0.0
      %1147 = vmatpush2.msra.mxu0 %v805
      %1148 = vmatprep.subr.mxu0 0.0
      %1149 = vmatpush2.msra.mxu0 %v804
      %1150 = vmatprep.subr.mxu0 0.0
      %1151 = vmatpush2.msra.mxu0 %v803
      %1152 = vmatprep.subr.mxu0 0.0
      %1153 = vmatpush2.msra.mxu0 %v802
      %1154 = vmatprep.subr.mxu0 0.0
      %1155 = vmatpush2.msra.mxu0 %v801
      %1156 = vmatprep.subr.mxu0 0.0
      %1157 = vmatpush2.msra.mxu0 %v800
      %1158 = vmatprep.subr.mxu0 0.0
      %1159 = vmatpush2.msra.mxu0 %v799
      %1160 = vmatprep.subr.mxu0 0.0
      %1161 = vmatpush2.msra.mxu0 %v798
      %1162 = vmatprep.subr.mxu0 0.0
      %1163 = vmatpush2.msra.mxu0 %v797
      %1164 = vmatprep.subr.mxu0 0.0
      %1165 = vmatpush2.msra.mxu0 %v796
      %1166 = vmatprep.subr.mxu0 0.0
      %1167 = vmatpush2.msra.mxu0 %v795
      %1168 = vmatprep.subr.mxu0 0.0
      %1169 = vmatpush2.msra.mxu0 %v794
      %1170 = vmatprep.subr.mxu0 0.0
      %1171 = vmatpush2.msra.mxu0 %v793
      %1172 = vmatprep.subr.mxu0 0.0
      %1173 = vmatpush2.msra.mxu0 %v792
      %1174 = vmatprep.subr.mxu0 0.0
      %1175 = vmatpush2.msra.mxu0 %v791
      %1176 = vmatprep.mubr.f32.mxu0 %v550
      %1177 = vmatmul.mubr.f32.gmra.mxu0 %v518
      %v1178 = vpop.f32.mrf.mxu0
      %v1179 = vadd.f32 %v954, %v1178
      %v1180 = vpop.f32.mrf.mxu0
      %1181 = vmatprep.mubr.f32.mxu0 %v551
      %1182 = vmatmul.mubr.f32.gmra.mxu0 %v519
      %v1183 = vpop.f32.mrf.mxu0
      %v1184 = vadd.f32 %v959, %v1183
      %v1185 = vpop.f32.mrf.mxu0
      %1186 = vmatprep.mubr.f32.mxu0 %v552
      %1187 = vmatmul.mubr.f32.gmra.mxu0 %v520
      %v1188 = vpop.f32.mrf.mxu0
      %v1189 = vadd.f32 %v964, %v1188
      %v1190 = vpop.f32.mrf.mxu0
      %1191 = vmatprep.mubr.f32.mxu0 %v553
      %1192 = vmatmul.mubr.f32.gmra.mxu0 %v521
      %v1193 = vpop.f32.mrf.mxu0
      %v1194 = vadd.f32 %v969, %v1193
      %v1195 = vpop.f32.mrf.mxu0
      %1196 = vmatprep.mubr.f32.mxu0 %v554
      %1197 = vmatmul.mubr.f32.gmra.mxu0 %v522
      %v1198 = vpop.f32.mrf.mxu0
      %v1199 = vadd.f32 %v974, %v1198
      %v1200 = vpop.f32.mrf.mxu0
      %1201 = vmatprep.mubr.f32.mxu0 %v555
      %1202 = vmatmul.mubr.f32.gmra.mxu0 %v523
      %v1203 = vpop.f32.mrf.mxu0
      %v1204 = vadd.f32 %v979, %v1203
      %v1205 = vpop.f32.mrf.mxu0
      %1206 = vmatprep.mubr.f32.mxu0 %v556
      %1207 = vmatmul.mubr.f32.gmra.mxu0 %v524
      %v1208 = vpop.f32.mrf.mxu0
      %v1209 = vadd.f32 %v984, %v1208
      %v1210 = vpop.f32.mrf.mxu0
      %1211 = vmatprep.mubr.f32.mxu0 %v557
      %1212 = vmatmul.mubr.f32.gmra.mxu0 %v525
      %v1213 = vpop.f32.mrf.mxu0
      %v1214 = vadd.f32 %v989, %v1213
      %v1215 = vpop.f32.mrf.mxu0
      %1216 = vmatprep.mubr.f32.mxu0 %v558
      %1217 = vmatmul.mubr.f32.gmra.mxu0 %v526
      %v1218 = vpop.f32.mrf.mxu0
      %v1219 = vadd.f32 %v994, %v1218
      %v1220 = vpop.f32.mrf.mxu0
      %1221 = vmatprep.mubr.f32.mxu0 %v559
      %1222 = vmatmul.mubr.f32.gmra.mxu0 %v527
      %v1223 = vpop.f32.mrf.mxu0
      %v1224 = vadd.f32 %v999, %v1223
      %v1225 = vpop.f32.mrf.mxu0
      %1226 = vmatprep.mubr.f32.mxu0 %v560
      %1227 = vmatmul.mubr.f32.gmra.mxu0 %v528
      %v1228 = vpop.f32.mrf.mxu0
      %v1229 = vadd.f32 %v1004, %v1228
      %v1230 = vpop.f32.mrf.mxu0
      %1231 = vmatprep.mubr.f32.mxu0 %v561
      %1232 = vmatmul.mubr.f32.gmra.mxu0 %v529
      %v1233 = vpop.f32.mrf.mxu0
      %v1234 = vadd.f32 %v1009, %v1233
      %v1235 = vpop.f32.mrf.mxu0
      %1236 = vmatprep.mubr.f32.mxu0 %v562
      %1237 = vmatmul.mubr.f32.gmra.mxu0 %v530
      %v1238 = vpop.f32.mrf.mxu0
      %v1239 = vadd.f32 %v1014, %v1238
      %v1240 = vpop.f32.mrf.mxu0
      %1241 = vmatprep.mubr.f32.mxu0 %v563
      %1242 = vmatmul.mubr.f32.gmra.mxu0 %v531
      %v1243 = vpop.f32.mrf.mxu0
      %v1244 = vadd.f32 %v1019, %v1243
      %v1245 = vpop.f32.mrf.mxu0
      %1246 = vmatprep.mubr.f32.mxu0 %v564
      %1247 = vmatmul.mubr.f32.gmra.mxu0 %v532
      %v1248 = vpop.f32.mrf.mxu0
      %v1249 = vadd.f32 %v1024, %v1248
      %v1250 = vpop.f32.mrf.mxu0
      %1251 = vmatprep.mubr.f32.mxu0 %v565
      %1252 = vmatmul.mubr.f32.gmra.mxu0 %v533
      %v1253 = vpop.f32.mrf.mxu0
      %v1254 = vadd.f32 %v1029, %v1253
      %v1255 = vpop.f32.mrf.mxu0
      %1256 = vmatprep.mubr.f32.mxu0 %v566
      %1257 = vmatmul.mubr.f32.gmra.mxu0 %v534
      %v1258 = vpop.f32.mrf.mxu0
      %v1259 = vadd.f32 %v1034, %v1258
      %v1260 = vpop.f32.mrf.mxu0
      %1261 = vmatprep.mubr.f32.mxu0 %v567
      %1262 = vmatmul.mubr.f32.gmra.mxu0 %v535
      %v1263 = vpop.f32.mrf.mxu0
      %v1264 = vadd.f32 %v1039, %v1263
      %v1265 = vpop.f32.mrf.mxu0
      %1266 = vmatprep.mubr.f32.mxu0 %v568
      %1267 = vmatmul.mubr.f32.gmra.mxu0 %v536
      %v1268 = vpop.f32.mrf.mxu0
      %v1269 = vadd.f32 %v1044, %v1268
      %v1270 = vpop.f32.mrf.mxu0
      %1271 = vmatprep.mubr.f32.mxu0 %v569
      %1272 = vmatmul.mubr.f32.gmra.mxu0 %v537
      %v1273 = vpop.f32.mrf.mxu0
      %v1274 = vadd.f32 %v1049, %v1273
      %v1275 = vpop.f32.mrf.mxu0
      %1276 = vmatprep.mubr.f32.mxu0 %v570
      %1277 = vmatmul.mubr.f32.gmra.mxu0 %v538
      %v1278 = vpop.f32.mrf.mxu0
      %v1279 = vadd.f32 %v1054, %v1278
      %v1280 = vpop.f32.mrf.mxu0
      %1281 = vmatprep.mubr.f32.mxu0 %v571
      %1282 = vmatmul.mubr.f32.gmra.mxu0 %v539
      %v1283 = vpop.f32.mrf.mxu0
      %v1284 = vadd.f32 %v1059, %v1283
      %v1285 = vpop.f32.mrf.mxu0
      %1286 = vmatprep.mubr.f32.mxu0 %v572
      %1287 = vmatmul.mubr.f32.gmra.mxu0 %v540
      %v1288 = vpop.f32.mrf.mxu0
      %v1289 = vadd.f32 %v1064, %v1288
      %v1290 = vpop.f32.mrf.mxu0
      %1291 = vmatprep.mubr.f32.mxu0 %v573
      %1292 = vmatmul.mubr.f32.gmra.mxu0 %v541
      %v1293 = vpop.f32.mrf.mxu0
      %v1294 = vadd.f32 %v1069, %v1293
      %v1295 = vpop.f32.mrf.mxu0
      %1296 = vmatprep.mubr.f32.mxu0 %v574
      %1297 = vmatmul.mubr.f32.gmra.mxu0 %v542
      %v1298 = vpop.f32.mrf.mxu0
      %v1299 = vadd.f32 %v1074, %v1298
      %v1300 = vpop.f32.mrf.mxu0
      %1301 = vmatprep.mubr.f32.mxu0 %v575
      %1302 = vmatmul.mubr.f32.gmra.mxu0 %v543
      %v1303 = vpop.f32.mrf.mxu0
      %v1304 = vadd.f32 %v1079, %v1303
      %v1305 = vpop.f32.mrf.mxu0
      %1306 = vmatprep.mubr.f32.mxu0 %v576
      %1307 = vmatmul.mubr.f32.gmra.mxu0 %v544
      %v1308 = vpop.f32.mrf.mxu0
      %v1309 = vadd.f32 %v1084, %v1308
      %v1310 = vpop.f32.mrf.mxu0
      %1311 = vmatprep.mubr.f32.mxu0 %v577
      %1312 = vmatmul.mubr.f32.gmra.mxu0 %v545
      %v1313 = vpop.f32.mrf.mxu0
      %v1314 = vadd.f32 %v1089, %v1313
      %v1315 = vpop.f32.mrf.mxu0
      %1316 = vmatprep.mubr.f32.mxu0 %v578
      %1317 = vmatmul.mubr.f32.gmra.mxu0 %v546
      %v1318 = vpop.f32.mrf.mxu0
      %v1319 = vadd.f32 %v1094, %v1318
      %v1320 = vpop.f32.mrf.mxu0
      %1321 = vmatprep.mubr.f32.mxu0 %v579
      %1322 = vmatmul.mubr.f32.gmra.mxu0 %v547
      %v1323 = vpop.f32.mrf.mxu0
      %v1324 = vadd.f32 %v1099, %v1323
      %v1325 = vpop.f32.mrf.mxu0
      %1326 = vmatprep.mubr.f32.mxu0 %v580
      %1327 = vmatmul.mubr.f32.gmra.mxu0 %v548
      %v1328 = vpop.f32.mrf.mxu0
      %v1329 = vadd.f32 %v1104, %v1328
      %v1330 = vpop.f32.mrf.mxu0
      %1331 = vmatprep.mubr.f32.mxu0 %v581
      %1332 = vmatmul.mubr.f32.gmra.mxu0 %v549
      %v1333 = vpop.f32.mrf.mxu0
      %v1334 = vadd.f32 %v1109, %v1333
      %v1335 = vpop.f32.mrf.mxu0
      %1336 = vdwg.mxu0
      %1337 = vmatprep.subr.mxu0 0.0
      %1338 = vmatpush1.msra.mxu0 %v822
      %1339 = vmatprep.subr.mxu0 0.0
      %1340 = vmatpush1.msra.mxu0 %v821
      %1341 = vmatprep.subr.mxu0 0.0
      %1342 = vmatpush1.msra.mxu0 %v820
      %1343 = vmatprep.subr.mxu0 0.0
      %1344 = vmatpush1.msra.mxu0 %v819
      %1345 = vmatprep.subr.mxu0 0.0
      %1346 = vmatpush1.msra.mxu0 %v818
      %1347 = vmatprep.subr.mxu0 0.0
      %1348 = vmatpush1.msra.mxu0 %v817
      %1349 = vmatprep.subr.mxu0 0.0
      %1350 = vmatpush1.msra.mxu0 %v816
      %1351 = vmatprep.subr.mxu0 0.0
      %1352 = vmatpush1.msra.mxu0 %v815
      %1353 = vmatprep.subr.mxu0 0.0
      %1354 = vmatpush1.msra.mxu0 %v814
      %1355 = vmatprep.subr.mxu0 0.0
      %1356 = vmatpush1.msra.mxu0 %v813
      %1357 = vmatprep.subr.mxu0 0.0
      %1358 = vmatpush1.msra.mxu0 %v812
      %1359 = vmatprep.subr.mxu0 0.0
      %1360 = vmatpush1.msra.mxu0 %v811
      %1361 = vmatprep.subr.mxu0 0.0
      %1362 = vmatpush1.msra.mxu0 %v810
      %1363 = vmatprep.subr.mxu0 0.0
      %1364 = vmatpush1.msra.mxu0 %v809
      %1365 = vmatprep.subr.mxu0 0.0
      %1366 = vmatpush1.msra.mxu0 %v808
      %1367 = vmatprep.subr.mxu0 0.0
      %1368 = vmatpush1.msra.mxu0 %v807
      %1369 = vmatprep.subr.mxu0 0.0
      %1370 = vmatpush2.msra.mxu0 %v838
      %1371 = vmatprep.subr.mxu0 0.0
      %1372 = vmatpush2.msra.mxu0 %v837
      %1373 = vmatprep.subr.mxu0 0.0
      %1374 = vmatpush2.msra.mxu0 %v836
      %1375 = vmatprep.subr.mxu0 0.0
      %1376 = vmatpush2.msra.mxu0 %v835
      %1377 = vmatprep.subr.mxu0 0.0
      %1378 = vmatpush2.msra.mxu0 %v834
      %1379 = vmatprep.subr.mxu0 0.0
      %1380 = vmatpush2.msra.mxu0 %v833
      %1381 = vmatprep.subr.mxu0 0.0
      %1382 = vmatpush2.msra.mxu0 %v832
      %1383 = vmatprep.subr.mxu0 0.0
      %1384 = vmatpush2.msra.mxu0 %v831
      %1385 = vmatprep.subr.mxu0 0.0
      %1386 = vmatpush2.msra.mxu0 %v830
      %1387 = vmatprep.subr.mxu0 0.0
      %1388 = vmatpush2.msra.mxu0 %v829
      %1389 = vmatprep.subr.mxu0 0.0
      %1390 = vmatpush2.msra.mxu0 %v828
      %1391 = vmatprep.subr.mxu0 0.0
      %1392 = vmatpush2.msra.mxu0 %v827
      %1393 = vmatprep.subr.mxu0 0.0
      %1394 = vmatpush2.msra.mxu0 %v826
      %1395 = vmatprep.subr.mxu0 0.0
      %1396 = vmatpush2.msra.mxu0 %v825
      %1397 = vmatprep.subr.mxu0 0.0
      %1398 = vmatpush2.msra.mxu0 %v824
      %1399 = vmatprep.subr.mxu0 0.0
      %1400 = vmatpush2.msra.mxu0 %v823
      %1401 = vmatprep.mubr.f32.mxu0 %v614
      %1402 = vmatmul.mubr.f32.gmra.mxu0 %v582
      %v1403 = vpop.f32.mrf.mxu0
      %v1404 = vadd.f32 %v1179, %v1403
      %v1405 = vpop.f32.mrf.mxu0
      %1406 = vmatprep.mubr.f32.mxu0 %v615
      %1407 = vmatmul.mubr.f32.gmra.mxu0 %v583
      %v1408 = vpop.f32.mrf.mxu0
      %v1409 = vadd.f32 %v1184, %v1408
      %v1410 = vpop.f32.mrf.mxu0
      %1411 = vmatprep.mubr.f32.mxu0 %v616
      %1412 = vmatmul.mubr.f32.gmra.mxu0 %v584
      %v1413 = vpop.f32.mrf.mxu0
      %v1414 = vadd.f32 %v1189, %v1413
      %v1415 = vpop.f32.mrf.mxu0
      %1416 = vmatprep.mubr.f32.mxu0 %v617
      %1417 = vmatmul.mubr.f32.gmra.mxu0 %v585
      %v1418 = vpop.f32.mrf.mxu0
      %v1419 = vadd.f32 %v1194, %v1418
      %v1420 = vpop.f32.mrf.mxu0
      %1421 = vmatprep.mubr.f32.mxu0 %v618
      %1422 = vmatmul.mubr.f32.gmra.mxu0 %v586
      %v1423 = vpop.f32.mrf.mxu0
      %v1424 = vadd.f32 %v1199, %v1423
      %v1425 = vpop.f32.mrf.mxu0
      %1426 = vmatprep.mubr.f32.mxu0 %v619
      %1427 = vmatmul.mubr.f32.gmra.mxu0 %v587
      %v1428 = vpop.f32.mrf.mxu0
      %v1429 = vadd.f32 %v1204, %v1428
      %v1430 = vpop.f32.mrf.mxu0
      %1431 = vmatprep.mubr.f32.mxu0 %v620
      %1432 = vmatmul.mubr.f32.gmra.mxu0 %v588
      %v1433 = vpop.f32.mrf.mxu0
      %v1434 = vadd.f32 %v1209, %v1433
      %v1435 = vpop.f32.mrf.mxu0
      %1436 = vmatprep.mubr.f32.mxu0 %v621
      %1437 = vmatmul.mubr.f32.gmra.mxu0 %v589
      %v1438 = vpop.f32.mrf.mxu0
      %v1439 = vadd.f32 %v1214, %v1438
      %v1440 = vpop.f32.mrf.mxu0
      %1441 = vmatprep.mubr.f32.mxu0 %v622
      %1442 = vmatmul.mubr.f32.gmra.mxu0 %v590
      %v1443 = vpop.f32.mrf.mxu0
      %v1444 = vadd.f32 %v1219, %v1443
      %v1445 = vpop.f32.mrf.mxu0
      %1446 = vmatprep.mubr.f32.mxu0 %v623
      %1447 = vmatmul.mubr.f32.gmra.mxu0 %v591
      %v1448 = vpop.f32.mrf.mxu0
      %v1449 = vadd.f32 %v1224, %v1448
      %v1450 = vpop.f32.mrf.mxu0
      %1451 = vmatprep.mubr.f32.mxu0 %v624
      %1452 = vmatmul.mubr.f32.gmra.mxu0 %v592
      %v1453 = vpop.f32.mrf.mxu0
      %v1454 = vadd.f32 %v1229, %v1453
      %v1455 = vpop.f32.mrf.mxu0
      %1456 = vmatprep.mubr.f32.mxu0 %v625
      %1457 = vmatmul.mubr.f32.gmra.mxu0 %v593
      %v1458 = vpop.f32.mrf.mxu0
      %v1459 = vadd.f32 %v1234, %v1458
      %v1460 = vpop.f32.mrf.mxu0
      %1461 = vmatprep.mubr.f32.mxu0 %v626
      %1462 = vmatmul.mubr.f32.gmra.mxu0 %v594
      %v1463 = vpop.f32.mrf.mxu0
      %v1464 = vadd.f32 %v1239, %v1463
      %v1465 = vpop.f32.mrf.mxu0
      %1466 = vmatprep.mubr.f32.mxu0 %v627
      %1467 = vmatmul.mubr.f32.gmra.mxu0 %v595
      %v1468 = vpop.f32.mrf.mxu0
      %v1469 = vadd.f32 %v1244, %v1468
      %v1470 = vpop.f32.mrf.mxu0
      %1471 = vmatprep.mubr.f32.mxu0 %v628
      %1472 = vmatmul.mubr.f32.gmra.mxu0 %v596
      %v1473 = vpop.f32.mrf.mxu0
      %v1474 = vadd.f32 %v1249, %v1473
      %v1475 = vpop.f32.mrf.mxu0
      %1476 = vmatprep.mubr.f32.mxu0 %v629
      %1477 = vmatmul.mubr.f32.gmra.mxu0 %v597
      %v1478 = vpop.f32.mrf.mxu0
      %v1479 = vadd.f32 %v1254, %v1478
      %v1480 = vpop.f32.mrf.mxu0
      %1481 = vmatprep.mubr.f32.mxu0 %v630
      %1482 = vmatmul.mubr.f32.gmra.mxu0 %v598
      %v1483 = vpop.f32.mrf.mxu0
      %v1484 = vadd.f32 %v1259, %v1483
      %v1485 = vpop.f32.mrf.mxu0
      %1486 = vmatprep.mubr.f32.mxu0 %v631
      %1487 = vmatmul.mubr.f32.gmra.mxu0 %v599
      %v1488 = vpop.f32.mrf.mxu0
      %v1489 = vadd.f32 %v1264, %v1488
      %v1490 = vpop.f32.mrf.mxu0
      %1491 = vmatprep.mubr.f32.mxu0 %v632
      %1492 = vmatmul.mubr.f32.gmra.mxu0 %v600
      %v1493 = vpop.f32.mrf.mxu0
      %v1494 = vadd.f32 %v1269, %v1493
      %v1495 = vpop.f32.mrf.mxu0
      %1496 = vmatprep.mubr.f32.mxu0 %v633
      %1497 = vmatmul.mubr.f32.gmra.mxu0 %v601
      %v1498 = vpop.f32.mrf.mxu0
      %v1499 = vadd.f32 %v1274, %v1498
      %v1500 = vpop.f32.mrf.mxu0
      %1501 = vmatprep.mubr.f32.mxu0 %v634
      %1502 = vmatmul.mubr.f32.gmra.mxu0 %v602
      %v1503 = vpop.f32.mrf.mxu0
      %v1504 = vadd.f32 %v1279, %v1503
      %v1505 = vpop.f32.mrf.mxu0
      %1506 = vmatprep.mubr.f32.mxu0 %v635
      %1507 = vmatmul.mubr.f32.gmra.mxu0 %v603
      %v1508 = vpop.f32.mrf.mxu0
      %v1509 = vadd.f32 %v1284, %v1508
      %v1510 = vpop.f32.mrf.mxu0
      %1511 = vmatprep.mubr.f32.mxu0 %v636
      %1512 = vmatmul.mubr.f32.gmra.mxu0 %v604
      %v1513 = vpop.f32.mrf.mxu0
      %v1514 = vadd.f32 %v1289, %v1513
      %v1515 = vpop.f32.mrf.mxu0
      %1516 = vmatprep.mubr.f32.mxu0 %v637
      %1517 = vmatmul.mubr.f32.gmra.mxu0 %v605
      %v1518 = vpop.f32.mrf.mxu0
      %v1519 = vadd.f32 %v1294, %v1518
      %v1520 = vpop.f32.mrf.mxu0
      %1521 = vmatprep.mubr.f32.mxu0 %v638
      %1522 = vmatmul.mubr.f32.gmra.mxu0 %v606
      %v1523 = vpop.f32.mrf.mxu0
      %v1524 = vadd.f32 %v1299, %v1523
      %v1525 = vpop.f32.mrf.mxu0
      %1526 = vmatprep.mubr.f32.mxu0 %v639
      %1527 = vmatmul.mubr.f32.gmra.mxu0 %v607
      %v1528 = vpop.f32.mrf.mxu0
      %v1529 = vadd.f32 %v1304, %v1528
      %v1530 = vpop.f32.mrf.mxu0
      %1531 = vmatprep.mubr.f32.mxu0 %v640
      %1532 = vmatmul.mubr.f32.gmra.mxu0 %v608
      %v1533 = vpop.f32.mrf.mxu0
      %v1534 = vadd.f32 %v1309, %v1533
      %v1535 = vpop.f32.mrf.mxu0
      %1536 = vmatprep.mubr.f32.mxu0 %v641
      %1537 = vmatmul.mubr.f32.gmra.mxu0 %v609
      %v1538 = vpop.f32.mrf.mxu0
      %v1539 = vadd.f32 %v1314, %v1538
      %v1540 = vpop.f32.mrf.mxu0
      %1541 = vmatprep.mubr.f32.mxu0 %v642
      %1542 = vmatmul.mubr.f32.gmra.mxu0 %v610
      %v1543 = vpop.f32.mrf.mxu0
      %v1544 = vadd.f32 %v1319, %v1543
      %v1545 = vpop.f32.mrf.mxu0
      %1546 = vmatprep.mubr.f32.mxu0 %v643
      %1547 = vmatmul.mubr.f32.gmra.mxu0 %v611
      %v1548 = vpop.f32.mrf.mxu0
      %v1549 = vadd.f32 %v1324, %v1548
      %v1550 = vpop.f32.mrf.mxu0
      %1551 = vmatprep.mubr.f32.mxu0 %v644
      %1552 = vmatmul.mubr.f32.gmra.mxu0 %v612
      %v1553 = vpop.f32.mrf.mxu0
      %v1554 = vadd.f32 %v1329, %v1553
      %v1555 = vpop.f32.mrf.mxu0
      %1556 = vmatprep.mubr.f32.mxu0 %v645
      %1557 = vmatmul.mubr.f32.gmra.mxu0 %v613
      %v1558 = vpop.f32.mrf.mxu0
      %v1559 = vadd.f32 %v1334, %v1558
      %v1560 = vpop.f32.mrf.mxu0
      %1561 = vdwg.mxu0
      %1562 = vmatprep.subr.mxu0 0.0
      %1563 = vmatpush1.msra.mxu0 %v854
      %1564 = vmatprep.subr.mxu0 0.0
      %1565 = vmatpush1.msra.mxu0 %v853
      %1566 = vmatprep.subr.mxu0 0.0
      %1567 = vmatpush1.msra.mxu0 %v852
      %1568 = vmatprep.subr.mxu0 0.0
      %1569 = vmatpush1.msra.mxu0 %v851
      %1570 = vmatprep.subr.mxu0 0.0
      %1571 = vmatpush1.msra.mxu0 %v850
      %1572 = vmatprep.subr.mxu0 0.0
      %1573 = vmatpush1.msra.mxu0 %v849
      %1574 = vmatprep.subr.mxu0 0.0
      %1575 = vmatpush1.msra.mxu0 %v848
      %1576 = vmatprep.subr.mxu0 0.0
      %1577 = vmatpush1.msra.mxu0 %v847
      %1578 = vmatprep.subr.mxu0 0.0
      %1579 = vmatpush1.msra.mxu0 %v846
      %1580 = vmatprep.subr.mxu0 0.0
      %1581 = vmatpush1.msra.mxu0 %v845
      %1582 = vmatprep.subr.mxu0 0.0
      %1583 = vmatpush1.msra.mxu0 %v844
      %1584 = vmatprep.subr.mxu0 0.0
      %1585 = vmatpush1.msra.mxu0 %v843
      %1586 = vmatprep.subr.mxu0 0.0
      %1587 = vmatpush1.msra.mxu0 %v842
      %1588 = vmatprep.subr.mxu0 0.0
      %1589 = vmatpush1.msra.mxu0 %v841
      %1590 = vmatprep.subr.mxu0 0.0
      %1591 = vmatpush1.msra.mxu0 %v840
      %1592 = vmatprep.subr.mxu0 0.0
      %1593 = vmatpush1.msra.mxu0 %v839
      %1594 = vmatprep.subr.mxu0 0.0
      %1595 = vmatpush2.msra.mxu0 %v870
      %1596 = vmatprep.subr.mxu0 0.0
      %1597 = vmatpush2.msra.mxu0 %v869
      %1598 = vmatprep.subr.mxu0 0.0
      %1599 = vmatpush2.msra.mxu0 %v868
      %1600 = vmatprep.subr.mxu0 0.0
      %1601 = vmatpush2.msra.mxu0 %v867
      %1602 = vmatprep.subr.mxu0 0.0
      %1603 = vmatpush2.msra.mxu0 %v866
      %1604 = vmatprep.subr.mxu0 0.0
      %1605 = vmatpush2.msra.mxu0 %v865
      %1606 = vmatprep.subr.mxu0 0.0
      %1607 = vmatpush2.msra.mxu0 %v864
      %1608 = vmatprep.subr.mxu0 0.0
      %1609 = vmatpush2.msra.mxu0 %v863
      %1610 = vmatprep.subr.mxu0 0.0
      %1611 = vmatpush2.msra.mxu0 %v862
      %1612 = vmatprep.subr.mxu0 0.0
      %1613 = vmatpush2.msra.mxu0 %v861
      %1614 = vmatprep.subr.mxu0 0.0
      %1615 = vmatpush2.msra.mxu0 %v860
      %1616 = vmatprep.subr.mxu0 0.0
      %1617 = vmatpush2.msra.mxu0 %v859
      %1618 = vmatprep.subr.mxu0 0.0
      %1619 = vmatpush2.msra.mxu0 %v858
      %1620 = vmatprep.subr.mxu0 0.0
      %1621 = vmatpush2.msra.mxu0 %v857
      %1622 = vmatprep.subr.mxu0 0.0
      %1623 = vmatpush2.msra.mxu0 %v856
      %1624 = vmatprep.subr.mxu0 0.0
      %1625 = vmatpush2.msra.mxu0 %v855
      %1626 = vmatprep.mubr.f32.mxu0 %v679
      %1627 = vmatmul.mubr.f32.gmra.mxu0 %v647
      %v1628 = vpop.f32.mrf.mxu0
      %v1629 = vadd.f32 %v1404, %v1628
      %v1630 = vpop.f32.mrf.mxu0
      %1631 = vmatprep.mubr.f32.mxu0 %v680
      %1632 = vmatmul.mubr.f32.gmra.mxu0 %v648
      %v1633 = vpop.f32.mrf.mxu0
      %v1634 = vadd.f32 %v1409, %v1633
      %v1635 = vpop.f32.mrf.mxu0
      %1636 = vmatprep.mubr.f32.mxu0 %v681
      %1637 = vmatmul.mubr.f32.gmra.mxu0 %v649
      %v1638 = vpop.f32.mrf.mxu0
      %v1639 = vadd.f32 %v1414, %v1638
      %v1640 = vpop.f32.mrf.mxu0
      %1641 = vmatprep.mubr.f32.mxu0 %v682
      %1642 = vmatmul.mubr.f32.gmra.mxu0 %v650
      %v1643 = vpop.f32.mrf.mxu0
      %v1644 = vadd.f32 %v1419, %v1643
      %v1645 = vpop.f32.mrf.mxu0
      %1646 = vmatprep.mubr.f32.mxu0 %v683
      %1647 = vmatmul.mubr.f32.gmra.mxu0 %v651
      %v1648 = vpop.f32.mrf.mxu0
      %v1649 = vadd.f32 %v1424, %v1648
      %v1650 = vpop.f32.mrf.mxu0
      %1651 = vmatprep.mubr.f32.mxu0 %v684
      %1652 = vmatmul.mubr.f32.gmra.mxu0 %v652
      %v1653 = vpop.f32.mrf.mxu0
      %v1654 = vadd.f32 %v1429, %v1653
      %v1655 = vpop.f32.mrf.mxu0
      %1656 = vmatprep.mubr.f32.mxu0 %v685
      %1657 = vmatmul.mubr.f32.gmra.mxu0 %v653
      %v1658 = vpop.f32.mrf.mxu0
      %v1659 = vadd.f32 %v1434, %v1658
      %v1660 = vpop.f32.mrf.mxu0
      %1661 = vmatprep.mubr.f32.mxu0 %v686
      %1662 = vmatmul.mubr.f32.gmra.mxu0 %v654
      %v1663 = vpop.f32.mrf.mxu0
      %v1664 = vadd.f32 %v1439, %v1663
      %v1665 = vpop.f32.mrf.mxu0
      %1666 = vmatprep.mubr.f32.mxu0 %v687
      %1667 = vmatmul.mubr.f32.gmra.mxu0 %v655
      %v1668 = vpop.f32.mrf.mxu0
      %v1669 = vadd.f32 %v1444, %v1668
      %v1670 = vpop.f32.mrf.mxu0
      %1671 = vmatprep.mubr.f32.mxu0 %v688
      %1672 = vmatmul.mubr.f32.gmra.mxu0 %v656
      %v1673 = vpop.f32.mrf.mxu0
      %v1674 = vadd.f32 %v1449, %v1673
      %v1675 = vpop.f32.mrf.mxu0
      %1676 = vmatprep.mubr.f32.mxu0 %v689
      %1677 = vmatmul.mubr.f32.gmra.mxu0 %v657
      %v1678 = vpop.f32.mrf.mxu0
      %v1679 = vadd.f32 %v1454, %v1678
      %v1680 = vpop.f32.mrf.mxu0
      %1681 = vmatprep.mubr.f32.mxu0 %v690
      %1682 = vmatmul.mubr.f32.gmra.mxu0 %v658
      %v1683 = vpop.f32.mrf.mxu0
      %v1684 = vadd.f32 %v1459, %v1683
      %v1685 = vpop.f32.mrf.mxu0
      %1686 = vmatprep.mubr.f32.mxu0 %v691
      %1687 = vmatmul.mubr.f32.gmra.mxu0 %v659
      %v1688 = vpop.f32.mrf.mxu0
      %v1689 = vadd.f32 %v1464, %v1688
      %v1690 = vpop.f32.mrf.mxu0
      %1691 = vmatprep.mubr.f32.mxu0 %v692
      %1692 = vmatmul.mubr.f32.gmra.mxu0 %v660
      %v1693 = vpop.f32.mrf.mxu0
      %v1694 = vadd.f32 %v1469, %v1693
      %v1695 = vpop.f32.mrf.mxu0
      %1696 = vmatprep.mubr.f32.mxu0 %v693
      %1697 = vmatmul.mubr.f32.gmra.mxu0 %v661
      %v1698 = vpop.f32.mrf.mxu0
      %v1699 = vadd.f32 %v1474, %v1698
      %v1700 = vpop.f32.mrf.mxu0
      %1701 = vmatprep.mubr.f32.mxu0 %v694
      %1702 = vmatmul.mubr.f32.gmra.mxu0 %v662
      %v1703 = vpop.f32.mrf.mxu0
      %v1704 = vadd.f32 %v1479, %v1703
      %v1705 = vpop.f32.mrf.mxu0
      %1706 = vmatprep.mubr.f32.mxu0 %v695
      %1707 = vmatmul.mubr.f32.gmra.mxu0 %v663
      %v1708 = vpop.f32.mrf.mxu0
      %v1709 = vadd.f32 %v1484, %v1708
      %v1710 = vpop.f32.mrf.mxu0
      %1711 = vmatprep.mubr.f32.mxu0 %v696
      %1712 = vmatmul.mubr.f32.gmra.mxu0 %v664
      %v1713 = vpop.f32.mrf.mxu0
      %v1714 = vadd.f32 %v1489, %v1713
      %v1715 = vpop.f32.mrf.mxu0
      %1716 = vmatprep.mubr.f32.mxu0 %v697
      %1717 = vmatmul.mubr.f32.gmra.mxu0 %v665
      %v1718 = vpop.f32.mrf.mxu0
      %v1719 = vadd.f32 %v1494, %v1718
      %v1720 = vpop.f32.mrf.mxu0
      %1721 = vmatprep.mubr.f32.mxu0 %v698
      %1722 = vmatmul.mubr.f32.gmra.mxu0 %v666
      %v1723 = vpop.f32.mrf.mxu0
      %v1724 = vadd.f32 %v1499, %v1723
      %v1725 = vpop.f32.mrf.mxu0
      %1726 = vmatprep.mubr.f32.mxu0 %v699
      %1727 = vmatmul.mubr.f32.gmra.mxu0 %v667
      %v1728 = vpop.f32.mrf.mxu0
      %v1729 = vadd.f32 %v1504, %v1728
      %v1730 = vpop.f32.mrf.mxu0
      %1731 = vmatprep.mubr.f32.mxu0 %v700
      %1732 = vmatmul.mubr.f32.gmra.mxu0 %v668
      %v1733 = vpop.f32.mrf.mxu0
      %v1734 = vadd.f32 %v1509, %v1733
      %v1735 = vpop.f32.mrf.mxu0
      %1736 = vmatprep.mubr.f32.mxu0 %v701
      %1737 = vmatmul.mubr.f32.gmra.mxu0 %v669
      %v1738 = vpop.f32.mrf.mxu0
      %v1739 = vadd.f32 %v1514, %v1738
      %v1740 = vpop.f32.mrf.mxu0
      %1741 = vmatprep.mubr.f32.mxu0 %v702
      %1742 = vmatmul.mubr.f32.gmra.mxu0 %v670
      %v1743 = vpop.f32.mrf.mxu0
      %v1744 = vadd.f32 %v1519, %v1743
      %v1745 = vpop.f32.mrf.mxu0
      %1746 = vmatprep.mubr.f32.mxu0 %v703
      %1747 = vmatmul.mubr.f32.gmra.mxu0 %v671
      %v1748 = vpop.f32.mrf.mxu0
      %v1749 = vadd.f32 %v1524, %v1748
      %v1750 = vpop.f32.mrf.mxu0
      %1751 = vmatprep.mubr.f32.mxu0 %v704
      %1752 = vmatmul.mubr.f32.gmra.mxu0 %v672
      %v1753 = vpop.f32.mrf.mxu0
      %v1754 = vadd.f32 %v1529, %v1753
      %v1755 = vpop.f32.mrf.mxu0
      %1756 = vmatprep.mubr.f32.mxu0 %v705
      %1757 = vmatmul.mubr.f32.gmra.mxu0 %v673
      %v1758 = vpop.f32.mrf.mxu0
      %v1759 = vadd.f32 %v1534, %v1758
      %v1760 = vpop.f32.mrf.mxu0
      %1761 = vmatprep.mubr.f32.mxu0 %v706
      %1762 = vmatmul.mubr.f32.gmra.mxu0 %v674
      %v1763 = vpop.f32.mrf.mxu0
      %v1764 = vadd.f32 %v1539, %v1763
      %v1765 = vpop.f32.mrf.mxu0
      %1766 = vmatprep.mubr.f32.mxu0 %v707
      %1767 = vmatmul.mubr.f32.gmra.mxu0 %v675
      %v1768 = vpop.f32.mrf.mxu0
      %v1769 = vadd.f32 %v1544, %v1768
      %v1770 = vpop.f32.mrf.mxu0
      %1771 = vmatprep.mubr.f32.mxu0 %v708
      %1772 = vmatmul.mubr.f32.gmra.mxu0 %v676
      %v1773 = vpop.f32.mrf.mxu0
      %v1774 = vadd.f32 %v1549, %v1773
      %v1775 = vpop.f32.mrf.mxu0
      %1776 = vmatprep.mubr.f32.mxu0 %v709
      %1777 = vmatmul.mubr.f32.gmra.mxu0 %v677
      %v1778 = vpop.f32.mrf.mxu0
      %v1779 = vadd.f32 %v1554, %v1778
      %v1780 = vpop.f32.mrf.mxu0
      %1781 = vmatprep.mubr.f32.mxu0 %v710
      %1782 = vmatmul.mubr.f32.gmra.mxu0 %v678
      %v1783 = vpop.f32.mrf.mxu0
      %v1784 = vadd.f32 %v1559, %v1783
      %v1785 = vpop.f32.mrf.mxu0
      %1786 = vdwg.mxu0
      %1787 = vmatprep.subr.mxu0 0.0
      %1788 = vmatpush1.msra.mxu0 %v886
      %1789 = vmatprep.subr.mxu0 0.0
      %1790 = vmatpush1.msra.mxu0 %v885
      %1791 = vmatprep.subr.mxu0 0.0
      %1792 = vmatpush1.msra.mxu0 %v884
      %1793 = vmatprep.subr.mxu0 0.0
      %1794 = vmatpush1.msra.mxu0 %v883
      %1795 = vmatprep.subr.mxu0 0.0
      %1796 = vmatpush1.msra.mxu0 %v882
      %1797 = vmatprep.subr.mxu0 0.0
      %1798 = vmatpush1.msra.mxu0 %v881
      %1799 = vmatprep.subr.mxu0 0.0
      %1800 = vmatpush1.msra.mxu0 %v880
      %1801 = vmatprep.subr.mxu0 0.0
      %1802 = vmatpush1.msra.mxu0 %v879
      %1803 = vmatprep.subr.mxu0 0.0
      %1804 = vmatpush1.msra.mxu0 %v878
      %1805 = vmatprep.subr.mxu0 0.0
      %1806 = vmatpush1.msra.mxu0 %v877
      %1807 = vmatprep.subr.mxu0 0.0
      %1808 = vmatpush1.msra.mxu0 %v876
      %1809 = vmatprep.subr.mxu0 0.0
      %1810 = vmatpush1.msra.mxu0 %v875
      %1811 = vmatprep.subr.mxu0 0.0
      %1812 = vmatpush1.msra.mxu0 %v874
      %1813 = vmatprep.subr.mxu0 0.0
      %1814 = vmatpush1.msra.mxu0 %v873
      %1815 = vmatprep.subr.mxu0 0.0
      %1816 = vmatpush1.msra.mxu0 %v872
      %1817 = vmatprep.subr.mxu0 0.0
      %1818 = vmatpush1.msra.mxu0 %v871
      %1819 = vmatprep.subr.mxu0 0.0
      %1820 = vmatpush2.msra.mxu0 0.0
      %1821 = vmatprep.subr.mxu0 0.0
      %1822 = vmatpush2.msra.mxu0 0.0
      %1823 = vmatprep.subr.mxu0 0.0
      %1824 = vmatpush2.msra.mxu0 0.0
      %1825 = vmatprep.subr.mxu0 0.0
      %1826 = vmatpush2.msra.mxu0 0.0
      %1827 = vmatprep.subr.mxu0 0.0
      %1828 = vmatpush2.msra.mxu0 0.0
      %1829 = vmatprep.subr.mxu0 0.0
      %1830 = vmatpush2.msra.mxu0 0.0
      %1831 = vmatprep.subr.mxu0 0.0
      %1832 = vmatpush2.msra.mxu0 0.0
      %1833 = vmatprep.subr.mxu0 0.0
      %1834 = vmatpush2.msra.mxu0 0.0
      %1835 = vmatprep.subr.mxu0 0.0
      %1836 = vmatpush2.msra.mxu0 0.0
      %1837 = vmatprep.subr.mxu0 0.0
      %1838 = vmatpush2.msra.mxu0 0.0
      %1839 = vmatprep.subr.mxu0 0.0
      %1840 = vmatpush2.msra.mxu0 0.0
      %1841 = vmatprep.subr.mxu0 0.0
      %1842 = vmatpush2.msra.mxu0 0.0
      %1843 = vmatprep.subr.mxu0 0.0
      %1844 = vmatpush2.msra.mxu0 0.0
      %1845 = vmatprep.subr.mxu0 0.0
      %1846 = vmatpush2.msra.mxu0 0.0
      %1847 = vmatprep.subr.mxu0 0.0
      %1848 = vmatpush2.msra.mxu0 0.0
      %1849 = vmatprep.subr.mxu0 0.0
      %1850 = vmatpush2.msra.mxu0 0.0
      %1851 = vmatprep.mubr.f32.mxu0 0.0
      %1852 = vmatmul.mubr.f32.gmra.mxu0 %v711
      %v1853 = vpop.f32.mrf.mxu0
      %v1854 = vadd.f32 %v1629, %v1853
      %v1855 = vpop.f32.mrf.mxu0
      %1856 = vmatprep.mubr.f32.mxu0 0.0
      %1857 = vmatmul.mubr.f32.gmra.mxu0 %v712
      %v1858 = vpop.f32.mrf.mxu0
      %v1859 = vadd.f32 %v1634, %v1858
      %v1860 = vpop.f32.mrf.mxu0
      %1861 = vmatprep.mubr.f32.mxu0 0.0
      %1862 = vmatmul.mubr.f32.gmra.mxu0 %v713
      %v1863 = vpop.f32.mrf.mxu0
      %v1864 = vadd.f32 %v1639, %v1863
      %v1865 = vpop.f32.mrf.mxu0
      %1866 = vmatprep.mubr.f32.mxu0 0.0
      %1867 = vmatmul.mubr.f32.gmra.mxu0 %v714
      %v1868 = vpop.f32.mrf.mxu0
      %v1869 = vadd.f32 %v1644, %v1868
      %v1870 = vpop.f32.mrf.mxu0
      %1871 = vmatprep.mubr.f32.mxu0 0.0
      %1872 = vmatmul.mubr.f32.gmra.mxu0 %v715
      %v1873 = vpop.f32.mrf.mxu0
      %v1874 = vadd.f32 %v1649, %v1873
      %v1875 = vpop.f32.mrf.mxu0
      %1876 = vmatprep.mubr.f32.mxu0 0.0
      %1877 = vmatmul.mubr.f32.gmra.mxu0 %v716
      %v1878 = vpop.f32.mrf.mxu0
      %v1879 = vadd.f32 %v1654, %v1878
      %v1880 = vpop.f32.mrf.mxu0
      %1881 = vmatprep.mubr.f32.mxu0 0.0
      %1882 = vmatmul.mubr.f32.gmra.mxu0 %v717
      %v1883 = vpop.f32.mrf.mxu0
      %v1884 = vadd.f32 %v1659, %v1883
      %v1885 = vpop.f32.mrf.mxu0
      %1886 = vmatprep.mubr.f32.mxu0 0.0
      %1887 = vmatmul.mubr.f32.gmra.mxu0 %v718
      %v1888 = vpop.f32.mrf.mxu0
      %v1889 = vadd.f32 %v1664, %v1888
      %v1890 = vpop.f32.mrf.mxu0
      %1891 = vmatprep.mubr.f32.mxu0 0.0
      %1892 = vmatmul.mubr.f32.gmra.mxu0 %v719
      %v1893 = vpop.f32.mrf.mxu0
      %v1894 = vadd.f32 %v1669, %v1893
      %v1895 = vpop.f32.mrf.mxu0
      %1896 = vmatprep.mubr.f32.mxu0 0.0
      %1897 = vmatmul.mubr.f32.gmra.mxu0 %v720
      %v1898 = vpop.f32.mrf.mxu0
      %v1899 = vadd.f32 %v1674, %v1898
      %v1900 = vpop.f32.mrf.mxu0
      %1901 = vmatprep.mubr.f32.mxu0 0.0
      %1902 = vmatmul.mubr.f32.gmra.mxu0 %v721
      %v1903 = vpop.f32.mrf.mxu0
      %v1904 = vadd.f32 %v1679, %v1903
      %v1905 = vpop.f32.mrf.mxu0
      %1906 = vmatprep.mubr.f32.mxu0 0.0
      %1907 = vmatmul.mubr.f32.gmra.mxu0 %v722
      %v1908 = vpop.f32.mrf.mxu0
      %v1909 = vadd.f32 %v1684, %v1908
      %v1910 = vpop.f32.mrf.mxu0
      %1911 = vmatprep.mubr.f32.mxu0 0.0
      %1912 = vmatmul.mubr.f32.gmra.mxu0 %v723
      %v1913 = vpop.f32.mrf.mxu0
      %v1914 = vadd.f32 %v1689, %v1913
      %v1915 = vpop.f32.mrf.mxu0
      %1916 = vmatprep.mubr.f32.mxu0 0.0
      %1917 = vmatmul.mubr.f32.gmra.mxu0 %v724
      %v1918 = vpop.f32.mrf.mxu0
      %v1919 = vadd.f32 %v1694, %v1918
      %v1920 = vpop.f32.mrf.mxu0
      %1921 = vmatprep.mubr.f32.mxu0 0.0
      %1922 = vmatmul.mubr.f32.gmra.mxu0 %v725
      %v1923 = vpop.f32.mrf.mxu0
      %v1924 = vadd.f32 %v1699, %v1923
      %v1925 = vpop.f32.mrf.mxu0
      %1926 = vmatprep.mubr.f32.mxu0 0.0
      %1927 = vmatmul.mubr.f32.gmra.mxu0 %v726
      %v1928 = vpop.f32.mrf.mxu0
      %v1929 = vadd.f32 %v1704, %v1928
      %v1930 = vpop.f32.mrf.mxu0
      %1931 = vmatprep.mubr.f32.mxu0 0.0
      %1932 = vmatmul.mubr.f32.gmra.mxu0 %v727
      %v1933 = vpop.f32.mrf.mxu0
      %v1934 = vadd.f32 %v1709, %v1933
      %v1935 = vpop.f32.mrf.mxu0
      %1936 = vmatprep.mubr.f32.mxu0 0.0
      %1937 = vmatmul.mubr.f32.gmra.mxu0 %v728
      %v1938 = vpop.f32.mrf.mxu0
      %v1939 = vadd.f32 %v1714, %v1938
      %v1940 = vpop.f32.mrf.mxu0
      %1941 = vmatprep.mubr.f32.mxu0 0.0
      %1942 = vmatmul.mubr.f32.gmra.mxu0 %v729
      %v1943 = vpop.f32.mrf.mxu0
      %v1944 = vadd.f32 %v1719, %v1943
      %v1945 = vpop.f32.mrf.mxu0
      %1946 = vmatprep.mubr.f32.mxu0 0.0
      %1947 = vmatmul.mubr.f32.gmra.mxu0 %v730
      %v1948 = vpop.f32.mrf.mxu0
      %v1949 = vadd.f32 %v1724, %v1948
      %v1950 = vpop.f32.mrf.mxu0
      %1951 = vmatprep.mubr.f32.mxu0 0.0
      %1952 = vmatmul.mubr.f32.gmra.mxu0 %v731
      %v1953 = vpop.f32.mrf.mxu0
      %v1954 = vadd.f32 %v1729, %v1953
      %v1955 = vpop.f32.mrf.mxu0
      %1956 = vmatprep.mubr.f32.mxu0 0.0
      %1957 = vmatmul.mubr.f32.gmra.mxu0 %v732
      %v1958 = vpop.f32.mrf.mxu0
      %v1959 = vadd.f32 %v1734, %v1958
      %v1960 = vpop.f32.mrf.mxu0
      %1961 = vmatprep.mubr.f32.mxu0 0.0
      %1962 = vmatmul.mubr.f32.gmra.mxu0 %v733
      %v1963 = vpop.f32.mrf.mxu0
      %v1964 = vadd.f32 %v1739, %v1963
      %v1965 = vpop.f32.mrf.mxu0
      %1966 = vmatprep.mubr.f32.mxu0 0.0
      %1967 = vmatmul.mubr.f32.gmra.mxu0 %v734
      %v1968 = vpop.f32.mrf.mxu0
      %v1969 = vadd.f32 %v1744, %v1968
      %v1970 = vpop.f32.mrf.mxu0
      %1971 = vmatprep.mubr.f32.mxu0 0.0
      %1972 = vmatmul.mubr.f32.gmra.mxu0 %v735
      %v1973 = vpop.f32.mrf.mxu0
      %v1974 = vadd.f32 %v1749, %v1973
      %v1975 = vpop.f32.mrf.mxu0
      %1976 = vmatprep.mubr.f32.mxu0 0.0
      %1977 = vmatmul.mubr.f32.gmra.mxu0 %v736
      %v1978 = vpop.f32.mrf.mxu0
      %v1979 = vadd.f32 %v1754, %v1978
      %v1980 = vpop.f32.mrf.mxu0
      %1981 = vmatprep.mubr.f32.mxu0 0.0
      %1982 = vmatmul.mubr.f32.gmra.mxu0 %v737
      %v1983 = vpop.f32.mrf.mxu0
      %v1984 = vadd.f32 %v1759, %v1983
      %v1985 = vpop.f32.mrf.mxu0
      %1986 = vmatprep.mubr.f32.mxu0 0.0
      %1987 = vmatmul.mubr.f32.gmra.mxu0 %v738
      %v1988 = vpop.f32.mrf.mxu0
      %v1989 = vadd.f32 %v1764, %v1988
      %v1990 = vpop.f32.mrf.mxu0
      %1991 = vmatprep.mubr.f32.mxu0 0.0
      %1992 = vmatmul.mubr.f32.gmra.mxu0 %v739
      %v1993 = vpop.f32.mrf.mxu0
      %v1994 = vadd.f32 %v1769, %v1993
      %v1995 = vpop.f32.mrf.mxu0
      %1996 = vmatprep.mubr.f32.mxu0 0.0
      %1997 = vmatmul.mubr.f32.gmra.mxu0 %v740
      %v1998 = vpop.f32.mrf.mxu0
      %v1999 = vadd.f32 %v1774, %v1998
      %v2000 = vpop.f32.mrf.mxu0
      %2001 = vmatprep.mubr.f32.mxu0 0.0
      %2002 = vmatmul.mubr.f32.gmra.mxu0 %v741
      %v2003 = vpop.f32.mrf.mxu0
      %v2004 = vadd.f32 %v1779, %v2003
      %v2005 = vpop.f32.mrf.mxu0
      %2006 = vmatprep.mubr.f32.mxu0 0.0
      %2007 = vmatmul.mubr.f32.gmra.mxu0 %v742
      %v2008 = vpop.f32.mrf.mxu0
      %v2009 = vadd.f32 %v1784, %v2008
      %v2010 = vpop.f32.mrf.mxu0
      %2011 = vdwg.mxu0
      %2012 = vst [vmem:[%s231] sm:$0xff] %v1854
      %2013 = vst [vmem:[%s231 + $0x8] sm:$0xff] %v1859
      %2014 = vst [vmem:[%s231 + $0x10] sm:$0xff] %v1864
      %2015 = vst [vmem:[%s231 + $0x18] sm:$0xff] %v1869
      %2016 = vst [vmem:[%s231 + $0x20] sm:$0xff] %v1874
      %2017 = vst [vmem:[%s231 + $0x28] sm:$0xff] %v1879
      %2018 = vst [vmem:[%s231 + $0x30] sm:$0xff] %v1884
      %2019 = vst [vmem:[%s231 + $0x38] sm:$0xff] %v1889
      %2020 = vst [vmem:[%s231 + $0x40] sm:$0xff] %v1894
      %2021 = vst [vmem:[%s231 + $0x48] sm:$0xff] %v1899
      %2022 = vst [vmem:[%s231 + $0x50] sm:$0xff] %v1904
      %2023 = vst [vmem:[%s231 + $0x58] sm:$0xff] %v1909
      %2024 = vst [vmem:[%s231 + $0x60] sm:$0xff] %v1914
      %2025 = vst [vmem:[%s231 + $0x68] sm:$0xff] %v1919
      %2026 = vst [vmem:[%s231 + $0x70] sm:$0xff] %v1924
      %2027 = vst [vmem:[%s231 + $0x78] sm:$0xff] %v1929
      %2028 = vst [vmem:[%s231 + $0x80] sm:$0xff] %v1934
      %2029 = vst [vmem:[%s231 + $0x88] sm:$0xff] %v1939
      %2030 = vst [vmem:[%s231 + $0x90] sm:$0xff] %v1944
      %2031 = vst [vmem:[%s231 + $0x98] sm:$0xff] %v1949
      %2032 = vst [vmem:[%s231 + $0xa0] sm:$0xff] %v1954
      %2033 = vst [vmem:[%s231 + $0xa8] sm:$0xff] %v1959
      %2034 = vst [vmem:[%s231 + $0xb0] sm:$0xff] %v1964
      %2035 = vst [vmem:[%s231 + $0xb8] sm:$0xff] %v1969
      %2036 = vst [vmem:[%s231 + $0xc0] sm:$0xff] %v1974
      %2037 = vst [vmem:[%s231 + $0xc8] sm:$0xff] %v1979
      %2038 = vst [vmem:[%s231 + $0xd0] sm:$0xff] %v1984
      %2039 = vst [vmem:[%s231 + $0xd8] sm:$0xff] %v1989
      %2040 = vst [vmem:[%s231 + $0xe0] sm:$0xff] %v1994
      %2041 = vst [vmem:[%s231 + $0xe8] sm:$0xff] %v1999
      %2042 = vst [vmem:[%s231 + $0xf0] sm:$0xff] %v2004
      %2043 = vst [vmem:[%s231 + $0xf8] sm:$0xff] %v2009
      %v2044 = vadd.f32 %v1854, %v1859
      %v2045 = vadd.f32 %v2044, %v1864
      %v2046 = vadd.f32 %v2045, %v1869
      %v2047 = vadd.f32 %v2046, %v1874
      %v2048 = vadd.f32 %v2047, %v1879
      %v2049 = vadd.f32 %v2048, %v1884
      %v2050 = vadd.f32 %v2049, %v1889
      %v2051 = vadd.f32 %v2050, %v1894
      %v2052 = vadd.f32 %v2051, %v1899
      %v2053 = vadd.f32 %v2052, %v1904
      %v2054 = vadd.f32 %v2053, %v1909
      %v2055 = vadd.f32 %v2054, %v1914
      %v2056 = vadd.f32 %v2055, %v1919
      %v2057 = vadd.f32 %v2056, %v1924
      %v2058 = vadd.f32 %v2057, %v1929
      %v2059 = vadd.f32 %v2058, %v1934
      %v2060 = vadd.f32 %v2059, %v1939
      %v2061 = vadd.f32 %v2060, %v1944
      %v2062 = vadd.f32 %v2061, %v1949
      %v2063 = vadd.f32 %v2062, %v1954
      %v2064 = vadd.f32 %v2063, %v1959
      %v2065 = vadd.f32 %v2064, %v1964
      %v2066 = vadd.f32 %v2065, %v1969
      %v2067 = vadd.f32 %v2066, %v1974
      %v2068 = vadd.f32 %v2067, %v1979
      %v2069 = vadd.f32 %v2068, %v1984
      %v2070 = vadd.f32 %v2069, %v1989
      %v2071 = vadd.f32 %v2070, %v1994
      %v2072 = vadd.f32 %v2071, %v1999
      %v2073 = vadd.f32 %v2072, %v2004
      %v2074 = vadd.f32 %v2073, %v2009
      %v2075 = vrot.slane %v2074, 4
      %v2076 = vadd.f32 %v2074, %v2075
      %v2077 = vrot.slane %v2076, 2
      %v2078 = vadd.f32 %v2076, %v2077
      %v2079 = vrot.slane %v2078, 1
      %v2080 = vadd.f32 %v2078, %v2079
      %v2081 = vmul.f32 %v1854, %v1854
      %v2082 = vmul.f32 %v1859, %v1859
      %v2083 = vmul.f32 %v1864, %v1864
      %v2084 = vmul.f32 %v1869, %v1869
      %v2085 = vmul.f32 %v1874, %v1874
      %v2086 = vmul.f32 %v1879, %v1879
      %v2087 = vmul.f32 %v1884, %v1884
      %v2088 = vmul.f32 %v1889, %v1889
      %v2089 = vmul.f32 %v1894, %v1894
      %v2090 = vmul.f32 %v1899, %v1899
      %v2091 = vmul.f32 %v1904, %v1904
      %v2092 = vmul.f32 %v1909, %v1909
      %v2093 = vmul.f32 %v1914, %v1914
      %v2094 = vmul.f32 %v1919, %v1919
      %v2095 = vmul.f32 %v1924, %v1924
      %v2096 = vmul.f32 %v1929, %v1929
      %v2097 = vmul.f32 %v1934, %v1934
      %v2098 = vmul.f32 %v1939, %v1939
      %v2099 = vmul.f32 %v1944, %v1944
      %v2100 = vmul.f32 %v1949, %v1949
      %v2101 = vmul.f32 %v1954, %v1954
      %v2102 = vmul.f32 %v1959, %v1959
      %v2103 = vmul.f32 %v1964, %v1964
      %v2104 = vmul.f32 %v1969, %v1969
      %v2105 = vmul.f32 %v1974, %v1974
      %v2106 = vmul.f32 %v1979, %v1979
      %v2107 = vmul.f32 %v1984, %v1984
      %v2108 = vmul.f32 %v1989, %v1989
      %v2109 = vmul.f32 %v1994, %v1994
      %v2110 = vmul.f32 %v1999, %v1999
      %v2111 = vmul.f32 %v2004, %v2004
      %v2112 = vmul.f32 %v2009, %v2009
      %v2113 = vadd.f32 %v2081, %v2082
      %v2114 = vadd.f32 %v2113, %v2083
      %v2115 = vadd.f32 %v2114, %v2084
      %v2116 = vadd.f32 %v2115, %v2085
      %v2117 = vadd.f32 %v2116, %v2086
      %v2118 = vadd.f32 %v2117, %v2087
      %v2119 = vadd.f32 %v2118, %v2088
      %v2120 = vadd.f32 %v2119, %v2089
      %v2121 = vadd.f32 %v2120, %v2090
      %v2122 = vadd.f32 %v2121, %v2091
      %v2123 = vadd.f32 %v2122, %v2092
      %v2124 = vadd.f32 %v2123, %v2093
      %v2125 = vadd.f32 %v2124, %v2094
      %v2126 = vadd.f32 %v2125, %v2095
      %v2127 = vadd.f32 %v2126, %v2096
      %v2128 = vadd.f32 %v2127, %v2097
      %v2129 = vadd.f32 %v2128, %v2098
      %v2130 = vadd.f32 %v2129, %v2099
      %v2131 = vadd.f32 %v2130, %v2100
      %v2132 = vadd.f32 %v2131, %v2101
      %v2133 = vadd.f32 %v2132, %v2102
      %v2134 = vadd.f32 %v2133, %v2103
      %v2135 = vadd.f32 %v2134, %v2104
      %v2136 = vadd.f32 %v2135, %v2105
      %v2137 = vadd.f32 %v2136, %v2106
      %v2138 = vadd.f32 %v2137, %v2107
      %v2139 = vadd.f32 %v2138, %v2108
      %v2140 = vadd.f32 %v2139, %v2109
      %v2141 = vadd.f32 %v2140, %v2110
      %v2142 = vadd.f32 %v2141, %v2111
      %v2143 = vadd.f32 %v2142, %v2112
      %v2144 = vrot.slane %v2143, 4
      %v2145 = vadd.f32 %v2143, %v2144
      %v2146 = vrot.slane %v2145, 2
      %v2147 = vadd.f32 %v2145, %v2146
      %v2148 = vrot.slane %v2147, 1
      %v2149 = vadd.f32 %v2147, %v2148
      %vm2150 = vcmask 1040384
      %v2151 = vsel %vm2150, %v2080, %v2149
      %2152 = vst [vmem:[%s235] sm:$0x3] %v2151
      %p2153 = scmp.lt.s32.totalorder %s17, 1
      %s2154 = scalar_select %p2153, %s17, 1
      %s2155 = smul.addr %s2154, 32
      %s2156 = smul.addr %s2155, 8
      %s2157 = scalar_lea.vmem %s4, %s2156
      %p2158 = scmp.lt.s32.totalorder %s17, 1
      %s2159 = scalar_select %p2158, %s17, 1
      %s2160 = smul.addr %s2159, 2
      %s2161 = scalar_lea.vmem %s5, %s2160
      // Predicated region
      $region37: #{bottleneck_forward.5} parent=35 // pred_check
        %p2162 = pneg %p124
      $region38: #{bottleneck_forward.5} parent=35 // pred_check_branch
        %2164 = sbr.rel (%p2162) target = $region40
      $region39: #{bottleneck_forward.5} parent=35 // pred_region
        _
      $region40: #{bottleneck_forward.5} parent=35 // pred_fallthru
        _
      // Predicated region
      $region41: #{bottleneck_forward.5} parent=35 // pred_check
        %p2165 = pneg %p150
      $region42: #{bottleneck_forward.5} parent=35 // pred_check_branch
        %2167 = sbr.rel (%p2165) target = $region44
      $region43: #{bottleneck_forward.5} parent=35 // pred_region
        _
      $region44: #{bottleneck_forward.5} parent=35 // pred_fallthru
        _
    $region36: #{bottleneck_forward.5} parent=5 // pred_fallthru
      _
    %p2168 = scmp.le.s32.totalorder 2, %s12
    // Predicated region
    $region45: #{bottleneck_forward.5} parent=5 // pred_check
      %p2169 = pneg %p2168
    $region46: #{bottleneck_forward.5} parent=5 // pred_check_branch
      %2171 = sbr.rel (%p2169) target = $region48
    $region47: #{bottleneck_forward.5} parent=5 // pred_region
      %s2172 = ssub.s32 %s12, 2
      // Predicated region
      $region49: #{bottleneck_forward.5} parent=47 // pred_check
        %p2173 = pneg %p130
      $region50: #{bottleneck_forward.5} parent=47 // pred_check_branch
        %2175 = sbr.rel (%p2173) target = $region52
      $region51: #{bottleneck_forward.5} parent=47 // pred_region
        %p2176 = scmp.lt.s32.totalorder %s18, 1
        %s2177 = scalar_select %p2176, %s18, 1
        %s2178 = smul.addr %s2177, 32
        %s2179 = smul.addr %s2178, 8
        %s2180 = scalar_lea.vmem %s4, %s2179
      $region52: #{bottleneck_forward.5} parent=47 // pred_fallthru
        _
      // Predicated region
      $region53: #{bottleneck_forward.5} parent=47 // pred_check
        %p2181 = pneg %p156
      $region54: #{bottleneck_forward.5} parent=47 // pred_check_branch
        %2183 = sbr.rel (%p2181) target = $region56
      $region55: #{bottleneck_forward.5} parent=47 // pred_region
        %p2184 = scmp.lt.s32.totalorder %s18, 1
        %s2185 = scalar_select %p2184, %s18, 1
        %s2186 = smul.addr %s2185, 2
        %s2187 = scalar_lea.vmem %s5, %s2186
      $region56: #{bottleneck_forward.5} parent=47 // pred_fallthru
        _
    $region48: #{bottleneck_forward.5} parent=5 // pred_fallthru
      _
  $region6: #{bottleneck_forward.5} parent=0 // loop_footer
    %s16 = sadd.s32 1, %s12
  $region7: #{bottleneck_forward.5} parent=0 // loop_footer_branch
    %11 = sbr.rel target = $region3
  $region8: #{bottleneck_forward.5} parent=0 // loop_exit
    _

</llo_original>
